<compile_context>
chip_gen: v7x
topology: tpu7x:2x2x1
jax: 0.10.0
libtpu: 0.0.40
codegen_flags: <defaults>
</compile_context>

<pallas_src>
import math
import functools

import jax
import jax.numpy as jnp
from jax.experimental import pallas as pl
from jax.experimental.pallas import tpu as pltpu

MAX_ROW_TILE = 512                       # rows per grid step (multiple of 8)
VMEM_LIMIT = 32 * 1024 * 1024            # safe on v5e/v6e/v7x; tiles sized to fit
BF16 = jnp.bfloat16
F32 = jnp.float32


# ------------------------------ grid helper ---------------------------------

def _row_tiled_call(kernel, x, consts, out_cols):
    """Row-tiled pallas_call: x (R, Cin) tiled over rows, consts VMEM-resident."""
    R, Cin = x.shape
    tile = R if R <= MAX_ROW_TILE else MAX_ROW_TILE
    grid = (pl.cdiv(R, tile),)
    in_specs = [pl.BlockSpec((tile, Cin), lambda i: (i, 0))]
    for c in consts:
        in_specs.append(pl.BlockSpec(c.shape, lambda i: (0, 0)))  # weights resident
    return pl.pallas_call(
        kernel,
        grid=grid,
        in_specs=in_specs,
        out_specs=pl.BlockSpec((tile, out_cols), lambda i: (i, 0)),
        out_shape=jax.ShapeDtypeStruct((R, out_cols), F32),
        compiler_params=pltpu.CompilerParams(
            dimension_semantics=("parallel",),
            vmem_limit_bytes=VMEM_LIMIT),
    )(x, *consts)


def _bdot(a_f32, w_bf16):
    """bf16 MXU operands, f32 accumulation."""
    return jnp.dot(a_f32.astype(BF16), w_bf16, preferred_element_type=F32)


# ------------------------------ Pallas kernels ------------------------------

def _sa_transformer_kernel(x_ref, w1, b1, w2, b2, wt1, bt1, wt2, bt2, o_ref):
    """Fused: SA point-wise MLP (relu, linear) + residual transformer stand-in."""
    x = x_ref[...]
    h = jnp.maximum(_bdot(x, w1[...]) + b1[...], 0.0)
    h = _bdot(h, w2[...]) + b2[...]
    t = jnp.maximum(_bdot(h, wt1[...]) + bt1[...], 0.0)   # hidden padded 64 -> 128
    o_ref[...] = _bdot(t, wt2[...]) + bt2[...] + h


def _mlp2_kernel(x_ref, w1, b1, w2, b2, o_ref):
    """Two-layer point-wise MLP (relu, linear) — used for the group_all SA."""
    x = x_ref[...]
    h = jnp.maximum(_bdot(x, w1[...]) + b1[...], 0.0)
    o_ref[...] = _bdot(h, w2[...]) + b2[...]


def _mlp1_kernel(u_ref, b1_ref, bs_ref, w1u, w2, b2, wsu, o_ref):
    """MLP_Res on cat([u0, l4]) with the l4 part folded into per-batch biases."""
    u = u_ref[0]                                      # (K0, 256)
    h = jnp.maximum(_bdot(u, w1u[...]) + b1_ref[0], 0.0)
    y = _bdot(h, w2[...]) + b2[...]
    s = _bdot(u, wsu[...]) + bs_ref[0]
    o_ref[0] = y + s


def _deconv_refine_kernel(x_ref, wd, bd, wq, bq, kt, dv, o_ref, *,
                          k_factor, cout, scale):
    """Fused ConvTranspose1d(k, stride=k) matmul + FeaRefine dictionary attention.

    Output stays in (rows, k*cout) layout (column group t = expanded point t);
    the free contiguous reshape to (B, N*k, cout) happens outside the kernel.
    """
    x = x_ref[...]
    y = _bdot(x, wd[...]) + bd[...]                   # (tile, k*cout) f32
    wq_v, bq_v, kt_v, dv_v = wq[...], bq[...], kt[...], dv[...]
    for t in range(k_factor):
        yt = y[:, t * cout:(t + 1) * cout]            # lane-aligned static slice
        q = _bdot(yt, wq_v) + bq_v                    # (tile, Hpad)
        s = _bdot(q, kt_v) * scale                    # (tile, D), k precomputed/transposed
        s = s - jnp.max(s, axis=-1, keepdims=True)
        p = jnp.exp(s)
        p = p * pl.reciprocal(jnp.sum(p, axis=-1, keepdims=True), approx=True)
        out = _bdot(p, dv_v)                          # (tile, cout)
        o_ref[:, t * cout:(t + 1) * cout] = (out + yt) * 0.5


# --------------------------- parameter helpers -------------------------------

def _dense(key, cin, cout, scale=0.05):
    kw, kb = jax.random.split(key)
    w = scale * jax.random.normal(kw, (cin, cout), F32)
    b = scale * jax.random.normal(kb, (1, cout), F32)
    return w, b


def dense_init(key, cin, cout):
    w, b = _dense(key, cin, cout)
    return {"w": w.astype(BF16), "b": b}


def sa_init(key, in_channel, mlp):
    keys = jax.random.split(key, len(mlp))
    layers, last = [], in_channel + 3                  # use_xyz=True
    for kk, out in zip(keys, mlp):
        layers.append(dense_init(kk, last, out))
        last = out
    return layers


def transformer_init(key, channel, dim=64, pad=128):
    # hidden dim zero-padded 64 -> 128 lanes (identical math, full MXU lanes)
    k1, k2 = jax.random.split(key)
    w1, b1 = _dense(k1, channel, dim)
    w2, b2 = _dense(k2, dim, channel)
    w1 = jnp.pad(w1, ((0, 0), (0, pad - dim)))
    b1 = jnp.pad(b1, ((0, 0), (0, pad - dim)))
    w2 = jnp.pad(w2, ((0, pad - dim), (0, 0)))
    return {"w1": w1.astype(BF16), "b1": b1, "w2": w2.astype(BF16), "b2": b2}


def fearefine_init(key, dim, hidd_dim, num_dicts, pad=128):
    k1, k2, k3 = jax.random.split(key, 3)
    embed = jax.random.normal(k1, (num_dicts, dim), F32)   # atoms as rows (= weight^T)
    wq, bq = _dense(k2, dim, hidd_dim)
    wk, bk = _dense(k3, dim, hidd_dim)
    wq = jnp.pad(wq, ((0, 0), (0, pad - hidd_dim)))
    bq = jnp.pad(bq, ((0, 0), (0, pad - hidd_dim)))
    wk = jnp.pad(wk, ((0, 0), (0, pad - hidd_dim)))
    bk = jnp.pad(bk, ((0, 0), (0, pad - hidd_dim)))
    return {"embed": embed, "wq": wq.astype(BF16), "bq": bq,
            "wk": wk, "bk": bk, "hidd": hidd_dim}


def convT_init(key, cin, cout, k_size, scale=0.05):
    # nn.ConvTranspose1d(cin, cout, k, stride=k): weight (cin, cout, k), bias (cout,)
    # pre-arranged as (cin, k*cout) so x @ w is lane-dense.
    kw, kb = jax.random.split(key)
    w = scale * jax.random.normal(kw, (cin, cout, k_size), F32)
    b = scale * jax.random.normal(kb, (cout,), F32)
    w2 = jnp.transpose(w, (0, 2, 1)).reshape(cin, k_size * cout)
    b2 = jnp.tile(b, (k_size,)).reshape(1, k_size * cout)
    return {"w": w2.astype(BF16), "b": b2, "cout": cout, "k": k_size}


def mlp1_init(key, u_dim, l_dim, hidden, out_dim):
    # MLP_Res with its first-layer / shortcut weights split by input rows
    # (u0 part in bf16 for the kernel, l4 part in f32 for the XLA per-batch bias).
    k1, k2, k3, k4, k5 = jax.random.split(key, 5)
    w1u, b1 = _dense(k1, u_dim, hidden)
    w1l, _ = _dense(k2, l_dim, hidden)
    w2, b2 = _dense(k3, hidden, out_dim)
    wsu, bs = _dense(k4, u_dim, out_dim)
    wsl, _ = _dense(k5, l_dim, out_dim)
    return {"w1u": w1u.astype(BF16), "w1l": w1l, "b1": b1,
            "w2": w2.astype(BF16), "b2": b2,
            "wsu": wsu.astype(BF16), "wsl": wsl, "bs": bs}


def mlp3_init(key, in_dim, hidden, out_dim):
    k1, k2, k3 = jax.random.split(key, 3)
    w1, b1 = _dense(k1, in_dim, hidden)
    w2, b2 = _dense(k2, hidden, out_dim)
    ws, bs = _dense(k3, in_dim, out_dim)
    return {"w1": w1, "b1": b1, "w2": w2, "b2": b2, "ws": ws, "bs": bs}


# ------------------------------ module blocks --------------------------------

def sa_with_transformer(sa_p, t_p, xyz, fea, npoint):
    # TODO(synk): PointNet_SA_Module_KNN / Transformer sources not provided;
    # stand-in = strided subsample + shared point-wise MLP + residual bottleneck
    # MLP (no FPS/KNN grouping, no point attention). Subsample-first is exact
    # for this point-wise stand-in and avoids wasted compute.
    B, N, _ = xyz.shape
    stride = max(N // npoint, 1)
    idx = jnp.arange(npoint) * stride
    xyz_s = xyz[:, idx, :]
    fea_s = fea[:, idx, :]
    x = jnp.concatenate([xyz_s, fea_s], axis=-1).reshape(B * npoint, -1)
    cout = sa_p[1]["w"].shape[1]
    consts = [sa_p[0]["w"], sa_p[0]["b"], sa_p[1]["w"], sa_p[1]["b"],
              t_p["w1"], t_p["b1"], t_p["w2"], t_p["b2"]]
    out = _row_tiled_call(_sa_transformer_kernel, x, consts, cout)
    return xyz_s, out.reshape(B, npoint, cout)


def sa_global(sa_p, xyz, fea):
    # group_all SA stand-in: point-wise MLP + global max-pool (pool in XLA, tiny).
    B, N, _ = xyz.shape
    x = jnp.concatenate([xyz, fea], axis=-1).reshape(B * N, -1)
    cout = sa_p[1]["w"].shape[1]
    consts = [sa_p[0]["w"], sa_p[0]["b"], sa_p[1]["w"], sa_p[1]["b"]]
    h = _row_tiled_call(_mlp2_kernel, x, consts, cout)
    return jnp.max(h.reshape(B, N, cout), axis=1, keepdims=True)      # (B, 1, cout)


def mlp1_call(p, u0, l4):
    """MLP_Res on cat([u0, repeat(l4)]) without materializing the broadcast/concat."""
    B, K0, C = u0.shape
    bias1 = (jnp.dot(l4, p["w1l"]) + p["b1"]).reshape(B, 1, C)        # l4 @ W1_bot + b1
    biasS = (jnp.dot(l4, p["wsl"]) + p["bs"]).reshape(B, 1, C)        # l4 @ Ws_bot + bs
    return pl.pallas_call(
        _mlp1_kernel,
        grid=(B,),
        in_specs=[pl.BlockSpec((1, K0, C), lambda b: (b, 0, 0)),
                  pl.BlockSpec((1, 1, C), lambda b: (b, 0, 0)),
                  pl.BlockSpec((1, 1, C), lambda b: (b, 0, 0)),
                  pl.BlockSpec(p["w1u"].shape, lambda b: (0, 0)),
                  pl.BlockSpec(p["w2"].shape, lambda b: (0, 0)),
                  pl.BlockSpec(p["b2"].shape, lambda b: (0, 0)),
                  pl.BlockSpec(p["wsu"].shape, lambda b: (0, 0))],
        out_specs=pl.BlockSpec((1, K0, C), lambda b: (b, 0, 0)),
        out_shape=jax.ShapeDtypeStruct((B, K0, C), F32),
        compiler_params=pltpu.CompilerParams(
            dimension_semantics=("parallel",),
            vmem_limit_bytes=VMEM_LIMIT),
    )(u0, bias1, biasS, p["w1u"], p["w2"], p["b2"], p["wsu"])


def deconv_refine(pd, pr, x_flat, B):
    """Fused ConvTranspose1d(k,stride=k) + FeaRefine. x_flat: (B*N, Cin).

    Returns ((B, N*k, cout), cons).
    """
    R = x_flat.shape[0]
    K, cout = pd["k"], pd["cout"]
    dict_f32 = pr["embed"]                                             # (D, cout)
    # cons (parameter-only, tiny) — plain XLA; equals normalize(weight, dim=0)^T @ ...
    norm = jnp.sqrt(jnp.sum(dict_f32 * dict_f32, axis=1, keepdims=True))
    fm = dict_f32 / jnp.maximum(norm, 1e-12)
    cons = fm @ fm.T
    # k = key(dict): batch/point invariant — precompute once, pass transposed (Hpad, D).
    kt = (jnp.dot(dict_f32, pr["wk"]) + pr["bk"]).T.astype(BF16)
    dv = dict_f32.astype(BF16)
    consts = [pd["w"], pd["b"], pr["wq"], pr["bq"], kt, dv]
    out = _row_tiled_call(
        functools.partial(_deconv_refine_kernel, k_factor=K, cout=cout,
                          scale=1.0 / math.sqrt(pr["hidd"])),
        x_flat, consts, K * cout)                                      # (R, K*cout)
    N = R // B
    return out.reshape(B, N * K, cout), cons                          # free reshape


# --------------------------------- UNet --------------------------------------

def unet_init(key, dim_feat, num_seeds, seed_fea, num_dicts):
    ks = jax.random.split(key, 12)
    return {
        "sa1": sa_init(ks[0], 3, [32, seed_fea]),
        "t1": transformer_init(ks[1], seed_fea, 64),
        "sa2": sa_init(ks[2], seed_fea, [128, 256]),
        "t2": transformer_init(ks[3], 256, 64),
        "sa4": sa_init(ks[4], 256, [384, dim_feat]),
        "ps0": convT_init(ks[5], dim_feat, 256, num_seeds // 16),
        "mlp1": mlp1_init(ks[6], 256, dim_feat, 256, 256),
        "ps1": convT_init(ks[7], 256, 256, 2),
        "ps2": convT_init(ks[8], 256, 128, 2),
        "ref1": fearefine_init(ks[9], 256, 64, num_dicts),
        "ref2": fearefine_init(ks[10], 128, 64, num_dicts // 2),
        "mlp3": mlp3_init(ks[11], seed_fea, 32, 3),
        "num_seeds": num_seeds,
    }


def unet_forward(p, point_cloud):
    """point_cloud: (B, 3, n) channels-first, as in the PyTorch module."""
    B = point_cloud.shape[0]
    num_seeds = p["num_seeds"]

    xyz0 = jnp.transpose(point_cloud, (0, 2, 1))                      # (B, n, 3)
    fea0 = xyz0

    l1_xyz, l1_fea = sa_with_transformer(p["sa1"], p["t1"], xyz0, fea0, num_seeds // 2)
    l2_xyz, l2_fea = sa_with_transformer(p["sa2"], p["t2"], l1_xyz, l1_fea, num_seeds // 8)
    l4_fea = sa_global(p["sa4"], l2_xyz, l2_fea)                      # (B, 1, dim_feat)

    dim_feat = l4_fea.shape[-1]
    l4 = l4_fea.reshape(B, dim_feat)

    # ps_0: ConvTranspose1d(dim_feat, 256, K0) on a single point — only B rows,
    # keep it in XLA (avoids an underfilled sublane Pallas launch).
    ps0 = p["ps0"]
    u0 = (jnp.dot(l4, ps0["w"].astype(F32)) + ps0["b"]).reshape(B, ps0["k"], ps0["cout"])
    K0 = u0.shape[1]

    # mlp_1(cat([u0, repeat(l4)])) with the broadcast/concat eliminated.
    u0 = mlp1_call(p["mlp1"], u0, l4)                                 # (B, K0, 256)

    u1, cons1 = deconv_refine(p["ps1"], p["ref1"], u0.reshape(B * K0, 256), B)
    u1 = jnp.concatenate([l2_fea, u1], axis=1)                        # (B, N2+2K0, 256)

    Nu1 = u1.shape[1]
    u2, cons2 = deconv_refine(p["ps2"], p["ref2"], u1.reshape(B * Nu1, 256), B)
    N2 = u2.shape[1]                                                  # (B, 2*Nu1, 128)

    # mlp_3 xyz head (Cout=3): lane-hostile 3-wide output — plain XLA (tiny op).
    m3 = p["mlp3"]
    u2_flat = u2.reshape(B * N2, u2.shape[-1])
    h = jnp.maximum(jnp.dot(u2_flat, m3["w1"]) + m3["b1"], 0.0)
    xyz_head = (jnp.dot(h, m3["w2"]) + m3["b2"]
                + jnp.dot(u2_flat, m3["ws"]) + m3["bs"])
    u2_xyz = jnp.concatenate([l1_xyz, xyz_head.reshape(B, N2, 3)], axis=1)
    u2_fea = jnp.concatenate([l1_fea, u2], axis=1)

    # back to the PyTorch (B, C, N) convention for outputs
    return (jnp.transpose(l4_fea, (0, 2, 1)),
            jnp.transpose(u2_xyz, (0, 2, 1)),
            jnp.transpose(u2_fea, (0, 2, 1)),
            cons1, cons2)


# ---------------------------------- main --------------------------------------

if __name__ == "__main__":
    key = jax.random.PRNGKey(0)
    kp, kx = jax.random.split(key)

    # Small but self-consistent hyper-params (seed_fea must be 128 for the concats).
    B, n_points = 2, 64
    dim_feat, num_seeds, seed_fea, num_dicts = 128, 32, 128, 32

    params = unet_init(kp, dim_feat, num_seeds, seed_fea, num_dicts)
    point_cloud = jax.random.normal(kx, (B, 3, n_points), F32)

    fwd = jax.jit(functools.partial(unet_forward, params))
    outs = jax.block_until_ready(fwd(point_cloud))
    l4_fea, u2_xyz, u2_fea, cons1, cons2 = outs

    assert l4_fea.shape == (B, dim_feat, 1)
    assert u2_xyz.shape == (B, 3, num_seeds)
    assert u2_fea.shape == (B, seed_fea, num_seeds)
    assert cons1.shape == (num_dicts, num_dicts)
    assert cons2.shape == (num_dicts // 2, num_dicts // 2)
    print("KERNEL_OK")
</pallas_src>

<mosaic_0001>
module attributes {stable_mosaic.version = 11 : i64} {
  func.func @_sa_transformer_kernel(%arg0: i32, %arg1: memref<32x6xf32, #tpu.memory_space<vmem>>, %arg2: memref<6x32xbf16, #tpu.memory_space<vmem>>, %arg3: memref<1x32xf32, #tpu.memory_space<vmem>>, %arg4: memref<32x128xbf16, #tpu.memory_space<vmem>>, %arg5: memref<1x128xf32, #tpu.memory_space<vmem>>, %arg6: memref<128x128xbf16, #tpu.memory_space<vmem>>, %arg7: memref<1x128xf32, #tpu.memory_space<vmem>>, %arg8: memref<128x128xbf16, #tpu.memory_space<vmem>>, %arg9: memref<1x128xf32, #tpu.memory_space<vmem>>, %arg10: memref<32x128xf32, #tpu.memory_space<vmem>>) attributes {dimension_semantics = [#tpu.dimension_semantics<parallel>], iteration_bounds = array<i64: 1>, scalar_prefetch = 0 : i64, scratch_operands = 0 : i64, tpu.core_type = #tpu.core_type<tc>, window_params = [{transform_indices = @transform_0, window_bounds = array<i64: 32, 6>}, {pipeline_mode = #tpu.pipeline_mode<synchronous>, transform_indices = @transform_1, window_bounds = array<i64: 6, 32>}, {pipeline_mode = #tpu.pipeline_mode<synchronous>, transform_indices = @transform_2, window_bounds = array<i64: 1, 32>}, {pipeline_mode = #tpu.pipeline_mode<synchronous>, transform_indices = @transform_3, window_bounds = array<i64: 32, 128>}, {pipeline_mode = #tpu.pipeline_mode<synchronous>, transform_indices = @transform_4, window_bounds = array<i64: 1, 128>}, {pipeline_mode = #tpu.pipeline_mode<synchronous>, transform_indices = @transform_5, window_bounds = array<i64: 128, 128>}, {pipeline_mode = #tpu.pipeline_mode<synchronous>, transform_indices = @transform_6, window_bounds = array<i64: 1, 128>}, {pipeline_mode = #tpu.pipeline_mode<synchronous>, transform_indices = @transform_7, window_bounds = array<i64: 128, 128>}, {pipeline_mode = #tpu.pipeline_mode<synchronous>, transform_indices = @transform_8, window_bounds = array<i64: 1, 128>}, {transform_indices = @transform_9, window_bounds = array<i64: 32, 128>}]} {
    %c0 = arith.constant 0 : index
    %c0_0 = arith.constant 0 : index
    %0 = vector.load %arg1[%c0, %c0_0] : memref<32x6xf32, #tpu.memory_space<vmem>>, vector<32x6xf32>
    %c0_1 = arith.constant 0 : index
    %c0_2 = arith.constant 0 : index
    %1 = vector.load %arg2[%c0_1, %c0_2] : memref<6x32xbf16, #tpu.memory_space<vmem>>, vector<6x32xbf16>
    %2 = arith.truncf %0 : vector<32x6xf32> to vector<32x6xbf16>
    %cst = arith.constant dense<0.000000e+00> : vector<32x32xf32>
    %3 = tpu.matmul %2, %1, %cst {dimension_numbers = #tpu.dot_dimension_numbers<[1], [0], [0], [1], [0, 0, 1, 1], [], []>} : vector<32x6xbf16>, vector<6x32xbf16>, vector<32x32xf32> -> vector<32x32xf32>
    %c0_3 = arith.constant 0 : index
    %c0_4 = arith.constant 0 : index
    %4 = vector.load %arg3[%c0_3, %c0_4] : memref<1x32xf32, #tpu.memory_space<vmem>>, vector<1x32xf32>
    %5 = vector.broadcast %4 : vector<1x32xf32> to vector<32x32xf32>
    %6 = arith.addf %3, %5 : vector<32x32xf32>
    %cst_5 = arith.constant 0.000000e+00 : f32
    %7 = vector.broadcast %cst_5 : f32 to vector<32x32xf32>
    %8 = arith.maximumf %6, %7 : vector<32x32xf32>
    %c0_6 = arith.constant 0 : index
    %c0_7 = arith.constant 0 : index
    %9 = vector.load %arg4[%c0_6, %c0_7] : memref<32x128xbf16, #tpu.memory_space<vmem>>, vector<32x128xbf16>
    %10 = arith.truncf %8 : vector<32x32xf32> to vector<32x32xbf16>
    %cst_8 = arith.constant dense<0.000000e+00> : vector<32x128xf32>
    %11 = tpu.matmul %10, %9, %cst_8 {dimension_numbers = #tpu.dot_dimension_numbers<[1], [0], [0], [1], [0, 0, 1, 1], [], []>} : vector<32x32xbf16>, vector<32x128xbf16>, vector<32x128xf32> -> vector<32x128xf32>
    %c0_9 = arith.constant 0 : index
    %c0_10 = arith.constant 0 : index
    %12 = vector.load %arg5[%c0_9, %c0_10] : memref<1x128xf32, #tpu.memory_space<vmem>>, vector<1x128xf32>
    %13 = vector.broadcast %12 : vector<1x128xf32> to vector<32x128xf32>
    %14 = arith.addf %11, %13 : vector<32x128xf32>
    %c0_11 = arith.constant 0 : index
    %c0_12 = arith.constant 0 : index
    %15 = vector.load %arg6[%c0_11, %c0_12] : memref<128x128xbf16, #tpu.memory_space<vmem>>, vector<128x128xbf16>
    %16 = arith.truncf %14 : vector<32x128xf32> to vector<32x128xbf16>
    %cst_13 = arith.constant dense<0.000000e+00> : vector<32x128xf32>
    %17 = tpu.matmul %16, %15, %cst_13 {dimension_numbers = #tpu.dot_dimension_numbers<[1], [0], [0], [1], [0, 0, 1, 1], [], []>} : vector<32x128xbf16>, vector<128x128xbf16>, vector<32x128xf32> -> vector<32x128xf32>
    %c0_14 = arith.constant 0 : index
    %c0_15 = arith.constant 0 : index
    %18 = vector.load %arg7[%c0_14, %c0_15] : memref<1x128xf32, #tpu.memory_space<vmem>>, vector<1x128xf32>
    %19 = vector.broadcast %18 : vector<1x128xf32> to vector<32x128xf32>
    %20 = arith.addf %17, %19 : vector<32x128xf32>
    %cst_16 = arith.constant 0.000000e+00 : f32
    %21 = vector.broadcast %cst_16 : f32 to vector<32x128xf32>
    %22 = arith.maximumf %20, %21 : vector<32x128xf32>
    %c0_17 = arith.constant 0 : index
    %c0_18 = arith.constant 0 : index
    %23 = vector.load %arg8[%c0_17, %c0_18] : memref<128x128xbf16, #tpu.memory_space<vmem>>, vector<128x128xbf16>
    %24 = arith.truncf %22 : vector<32x128xf32> to vector<32x128xbf16>
    %cst_19 = arith.constant dense<0.000000e+00> : vector<32x128xf32>
    %25 = tpu.matmul %24, %23, %cst_19 {dimension_numbers = #tpu.dot_dimension_numbers<[1], [0], [0], [1], [0, 0, 1, 1], [], []>} : vector<32x128xbf16>, vector<128x128xbf16>, vector<32x128xf32> -> vector<32x128xf32>
    %c0_20 = arith.constant 0 : index
    %c0_21 = arith.constant 0 : index
    %26 = vector.load %arg9[%c0_20, %c0_21] : memref<1x128xf32, #tpu.memory_space<vmem>>, vector<1x128xf32>
    %27 = vector.broadcast %26 : vector<1x128xf32> to vector<32x128xf32>
    %28 = arith.addf %25, %27 : vector<32x128xf32>
    %29 = arith.addf %28, %14 : vector<32x128xf32>
    %c0_22 = arith.constant 0 : index
    %c0_23 = arith.constant 0 : index
    %30 = vector.load %arg10[%c0_22, %c0_23] : memref<32x128xf32, #tpu.memory_space<vmem>>, vector<32x128xf32>
    tpu.vector_store %arg10[%c0_22, %c0_23], %29 {strides = array<i32>} : memref<32x128xf32, #tpu.memory_space<vmem>>, vector<32x128xf32>,
    return
  }
  func.func @transform_0(%arg0: i32) -> (i32, i32) {
    %c0_i32 = arith.constant 0 : i32
    %c0_i32_0 = arith.constant 0 : i32
    return %arg0, %c0_i32 : i32, i32
  }
  func.func @transform_1(%arg0: i32) -> (i32, i32) {
    %c0_i32 = arith.constant 0 : i32
    %c0_i32_0 = arith.constant 0 : i32
    %c0_i32_1 = arith.constant 0 : i32
    return %c0_i32, %c0_i32_0 : i32, i32
  }
  func.func @transform_2(%arg0: i32) -> (i32, i32) {
    %c0_i32 = arith.constant 0 : i32
    %c0_i32_0 = arith.constant 0 : i32
    %c0_i32_1 = arith.constant 0 : i32
    return %c0_i32, %c0_i32_0 : i32, i32
  }
  func.func @transform_3(%arg0: i32) -> (i32, i32) {
    %c0_i32 = arith.constant 0 : i32
    %c0_i32_0 = arith.constant 0 : i32
    %c0_i32_1 = arith.constant 0 : i32
    return %c0_i32, %c0_i32_0 : i32, i32
  }
  func.func @transform_4(%arg0: i32) -> (i32, i32) {
    %c0_i32 = arith.constant 0 : i32
    %c0_i32_0 = arith.constant 0 : i32
    %c0_i32_1 = arith.constant 0 : i32
    return %c0_i32, %c0_i32_0 : i32, i32
  }
  func.func @transform_5(%arg0: i32) -> (i32, i32) {
    %c0_i32 = arith.constant 0 : i32
    %c0_i32_0 = arith.constant 0 : i32
    %c0_i32_1 = arith.constant 0 : i32
    return %c0_i32, %c0_i32_0 : i32, i32
  }
  func.func @transform_6(%arg0: i32) -> (i32, i32) {
    %c0_i32 = arith.constant 0 : i32
    %c0_i32_0 = arith.constant 0 : i32
    %c0_i32_1 = arith.constant 0 : i32
    return %c0_i32, %c0_i32_0 : i32, i32
  }
  func.func @transform_7(%arg0: i32) -> (i32, i32) {
    %c0_i32 = arith.constant 0 : i32
    %c0_i32_0 = arith.constant 0 : i32
    %c0_i32_1 = arith.constant 0 : i32
    return %c0_i32, %c0_i32_0 : i32, i32
  }
  func.func @transform_8(%arg0: i32) -> (i32, i32) {
    %c0_i32 = arith.constant 0 : i32
    %c0_i32_0 = arith.constant 0 : i32
    %c0_i32_1 = arith.constant 0 : i32
    return %c0_i32, %c0_i32_0 : i32, i32
  }
  func.func @transform_9(%arg0: i32) -> (i32, i32) {
    %c0_i32 = arith.constant 0 : i32
    %c0_i32_0 = arith.constant 0 : i32
    return %arg0, %c0_i32 : i32, i32
  }
}

module attributes {stable_mosaic.version = 11 : i64} {
  func.func @_sa_transformer_kernel(%arg0: i32, %arg1: memref<8x131xf32, #tpu.memory_space<vmem>>, %arg2: memref<131x128xbf16, #tpu.memory_space<vmem>>, %arg3: memref<1x128xf32, #tpu.memory_space<vmem>>, %arg4: memref<128x256xbf16, #tpu.memory_space<vmem>>, %arg5: memref<1x256xf32, #tpu.memory_space<vmem>>, %arg6: memref<256x128xbf16, #tpu.memory_space<vmem>>, %arg7: memref<1x128xf32, #tpu.memory_space<vmem>>, %arg8: memref<128x256xbf16, #tpu.memory_space<vmem>>, %arg9: memref<1x256xf32, #tpu.memory_space<vmem>>, %arg10: memref<8x256xf32, #tpu.memory_space<vmem>>) attributes {dimension_semantics = [#tpu.dimension_semantics<parallel>], iteration_bounds = array<i64: 1>, scalar_prefetch = 0 : i64, scratch_operands = 0 : i64, tpu.core_type = #tpu.core_type<tc>, window_params = [{transform_indices = @transform_0, window_bounds = array<i64: 8, 131>}, {pipeline_mode = #tpu.pipeline_mode<synchronous>, transform_indices = @transform_1, window_bounds = array<i64: 131, 128>}, {pipeline_mode = #tpu.pipeline_mode<synchronous>, transform_indices = @transform_2, window_bounds = array<i64: 1, 128>}, {pipeline_mode = #tpu.pipeline_mode<synchronous>, transform_indices = @transform_3, window_bounds = array<i64: 128, 256>}, {pipeline_mode = #tpu.pipeline_mode<synchronous>, transform_indices = @transform_4, window_bounds = array<i64: 1, 256>}, {pipeline_mode = #tpu.pipeline_mode<synchronous>, transform_indices = @transform_5, window_bounds = array<i64: 256, 128>}, {pipeline_mode = #tpu.pipeline_mode<synchronous>, transform_indices = @transform_6, window_bounds = array<i64: 1, 128>}, {pipeline_mode = #tpu.pipeline_mode<synchronous>, transform_indices = @transform_7, window_bounds = array<i64: 128, 256>}, {pipeline_mode = #tpu.pipeline_mode<synchronous>, transform_indices = @transform_8, window_bounds = array<i64: 1, 256>}, {transform_indices = @transform_9, window_bounds = array<i64: 8, 256>}]} {
    %c0 = arith.constant 0 : index
    %c0_0 = arith.constant 0 : index
    %0 = vector.load %arg1[%c0, %c0_0] : memref<8x131xf32, #tpu.memory_space<vmem>>, vector<8x131xf32>
    %c0_1 = arith.constant 0 : index
    %c0_2 = arith.constant 0 : index
    %1 = vector.load %arg2[%c0_1, %c0_2] : memref<131x128xbf16, #tpu.memory_space<vmem>>, vector<131x128xbf16>
    %2 = arith.truncf %0 : vector<8x131xf32> to vector<8x131xbf16>
    %cst = arith.constant dense<0.000000e+00> : vector<8x128xf32>
    %3 = tpu.matmul %2, %1, %cst {dimension_numbers = #tpu.dot_dimension_numbers<[1], [0], [0], [1], [0, 0, 1, 1], [], []>} : vector<8x131xbf16>, vector<131x128xbf16>, vector<8x128xf32> -> vector<8x128xf32>
    %c0_3 = arith.constant 0 : index
    %c0_4 = arith.constant 0 : index
    %4 = vector.load %arg3[%c0_3, %c0_4] : memref<1x128xf32, #tpu.memory_space<vmem>>, vector<1x128xf32>
    %5 = vector.broadcast %4 : vector<1x128xf32> to vector<8x128xf32>
    %6 = arith.addf %3, %5 : vector<8x128xf32>
    %cst_5 = arith.constant 0.000000e+00 : f32
    %7 = vector.broadcast %cst_5 : f32 to vector<8x128xf32>
    %8 = arith.maximumf %6, %7 : vector<8x128xf32>
    %c0_6 = arith.constant 0 : index
    %c0_7 = arith.constant 0 : index
    %9 = vector.load %arg4[%c0_6, %c0_7] : memref<128x256xbf16, #tpu.memory_space<vmem>>, vector<128x256xbf16>
    %10 = arith.truncf %8 : vector<8x128xf32> to vector<8x128xbf16>
    %cst_8 = arith.constant dense<0.000000e+00> : vector<8x256xf32>
    %11 = tpu.matmul %10, %9, %cst_8 {dimension_numbers = #tpu.dot_dimension_numbers<[1], [0], [0], [1], [0, 0, 1, 1], [], []>} : vector<8x128xbf16>, vector<128x256xbf16>, vector<8x256xf32> -> vector<8x256xf32>
    %c0_9 = arith.constant 0 : index
    %c0_10 = arith.constant 0 : index
    %12 = vector.load %arg5[%c0_9, %c0_10] : memref<1x256xf32, #tpu.memory_space<vmem>>, vector<1x256xf32>
    %13 = vector.broadcast %12 : vector<1x256xf32> to vector<8x256xf32>
    %14 = arith.addf %11, %13 : vector<8x256xf32>
    %c0_11 = arith.constant 0 : index
    %c0_12 = arith.constant 0 : index
    %15 = vector.load %arg6[%c0_11, %c0_12] : memref<256x128xbf16, #tpu.memory_space<vmem>>, vector<256x128xbf16>
    %16 = arith.truncf %14 : vector<8x256xf32> to vector<8x256xbf16>
    %cst_13 = arith.constant dense<0.000000e+00> : vector<8x128xf32>
    %17 = tpu.matmul %16, %15, %cst_13 {dimension_numbers = #tpu.dot_dimension_numbers<[1], [0], [0], [1], [0, 0, 1, 1], [], []>} : vector<8x256xbf16>, vector<256x128xbf16>, vector<8x128xf32> -> vector<8x128xf32>
    %c0_14 = arith.constant 0 : index
    %c0_15 = arith.constant 0 : index
    %18 = vector.load %arg7[%c0_14, %c0_15] : memref<1x128xf32, #tpu.memory_space<vmem>>, vector<1x128xf32>
    %19 = vector.broadcast %18 : vector<1x128xf32> to vector<8x128xf32>
    %20 = arith.addf %17, %19 : vector<8x128xf32>
    %cst_16 = arith.constant 0.000000e+00 : f32
    %21 = vector.broadcast %cst_16 : f32 to vector<8x128xf32>
    %22 = arith.maximumf %20, %21 : vector<8x128xf32>
    %c0_17 = arith.constant 0 : index
    %c0_18 = arith.constant 0 : index
    %23 = vector.load %arg8[%c0_17, %c0_18] : memref<128x256xbf16, #tpu.memory_space<vmem>>, vector<128x256xbf16>
    %24 = arith.truncf %22 : vector<8x128xf32> to vector<8x128xbf16>
    %cst_19 = arith.constant dense<0.000000e+00> : vector<8x256xf32>
    %25 = tpu.matmul %24, %23, %cst_19 {dimension_numbers = #tpu.dot_dimension_numbers<[1], [0], [0], [1], [0, 0, 1, 1], [], []>} : vector<8x128xbf16>, vector<128x256xbf16>, vector<8x256xf32> -> vector<8x256xf32>
    %c0_20 = arith.constant 0 : index
    %c0_21 = arith.constant 0 : index
    %26 = vector.load %arg9[%c0_20, %c0_21] : memref<1x256xf32, #tpu.memory_space<vmem>>, vector<1x256xf32>
    %27 = vector.broadcast %26 : vector<1x256xf32> to vector<8x256xf32>
    %28 = arith.addf %25, %27 : vector<8x256xf32>
    %29 = arith.addf %28, %14 : vector<8x256xf32>
    %c0_22 = arith.constant 0 : index
    %c0_23 = arith.constant 0 : index
    %30 = vector.load %arg10[%c0_22, %c0_23] : memref<8x256xf32, #tpu.memory_space<vmem>>, vector<8x256xf32>
    tpu.vector_store %arg10[%c0_22, %c0_23], %29 {strides = array<i32>} : memref<8x256xf32, #tpu.memory_space<vmem>>, vector<8x256xf32>,
    return
  }
  func.func @transform_0(%arg0: i32) -> (i32, i32) {
    %c0_i32 = arith.constant 0 : i32
    %c0_i32_0 = arith.constant 0 : i32
    return %arg0, %c0_i32 : i32, i32
  }
  func.func @transform_1(%arg0: i32) -> (i32, i32) {
    %c0_i32 = arith.constant 0 : i32
    %c0_i32_0 = arith.constant 0 : i32
    %c0_i32_1 = arith.constant 0 : i32
    return %c0_i32, %c0_i32_0 : i32, i32
  }
  func.func @transform_2(%arg0: i32) -> (i32, i32) {
    %c0_i32 = arith.constant 0 : i32
    %c0_i32_0 = arith.constant 0 : i32
    %c0_i32_1 = arith.constant 0 : i32
    return %c0_i32, %c0_i32_0 : i32, i32
  }
  func.func @transform_3(%arg0: i32) -> (i32, i32) {
    %c0_i32 = arith.constant 0 : i32
    %c0_i32_0 = arith.constant 0 : i32
    %c0_i32_1 = arith.constant 0 : i32
    return %c0_i32, %c0_i32_0 : i32, i32
  }
  func.func @transform_4(%arg0: i32) -> (i32, i32) {
    %c0_i32 = arith.constant 0 : i32
    %c0_i32_0 = arith.constant 0 : i32
    %c0_i32_1 = arith.constant 0 : i32
    return %c0_i32, %c0_i32_0 : i32, i32
  }
  func.func @transform_5(%arg0: i32) -> (i32, i32) {
    %c0_i32 = arith.constant 0 : i32
    %c0_i32_0 = arith.constant 0 : i32
    %c0_i32_1 = arith.constant 0 : i32
    return %c0_i32, %c0_i32_0 : i32, i32
  }
  func.func @transform_6(%arg0: i32) -> (i32, i32) {
    %c0_i32 = arith.constant 0 : i32
    %c0_i32_0 = arith.constant 0 : i32
    %c0_i32_1 = arith.constant 0 : i32
    return %c0_i32, %c0_i32_0 : i32, i32
  }
  func.func @transform_7(%arg0: i32) -> (i32, i32) {
    %c0_i32 = arith.constant 0 : i32
    %c0_i32_0 = arith.constant 0 : i32
    %c0_i32_1 = arith.constant 0 : i32
    return %c0_i32, %c0_i32_0 : i32, i32
  }
  func.func @transform_8(%arg0: i32) -> (i32, i32) {
    %c0_i32 = arith.constant 0 : i32
    %c0_i32_0 = arith.constant 0 : i32
    %c0_i32_1 = arith.constant 0 : i32
    return %c0_i32, %c0_i32_0 : i32, i32
  }
  func.func @transform_9(%arg0: i32) -> (i32, i32) {
    %c0_i32 = arith.constant 0 : i32
    %c0_i32_0 = arith.constant 0 : i32
    return %arg0, %c0_i32 : i32, i32
  }
}

module attributes {stable_mosaic.version = 11 : i64} {
  func.func @_mlp2_kernel(%arg0: i32, %arg1: memref<8x259xf32, #tpu.memory_space<vmem>>, %arg2: memref<259x384xbf16, #tpu.memory_space<vmem>>, %arg3: memref<1x384xf32, #tpu.memory_space<vmem>>, %arg4: memref<384x128xbf16, #tpu.memory_space<vmem>>, %arg5: memref<1x128xf32, #tpu.memory_space<vmem>>, %arg6: memref<8x128xf32, #tpu.memory_space<vmem>>) attributes {dimension_semantics = [#tpu.dimension_semantics<parallel>], iteration_bounds = array<i64: 1>, scalar_prefetch = 0 : i64, scratch_operands = 0 : i64, tpu.core_type = #tpu.core_type<tc>, window_params = [{transform_indices = @transform_0, window_bounds = array<i64: 8, 259>}, {pipeline_mode = #tpu.pipeline_mode<synchronous>, transform_indices = @transform_1, window_bounds = array<i64: 259, 384>}, {pipeline_mode = #tpu.pipeline_mode<synchronous>, transform_indices = @transform_2, window_bounds = array<i64: 1, 384>}, {pipeline_mode = #tpu.pipeline_mode<synchronous>, transform_indices = @transform_3, window_bounds = array<i64: 384, 128>}, {pipeline_mode = #tpu.pipeline_mode<synchronous>, transform_indices = @transform_4, window_bounds = array<i64: 1, 128>}, {transform_indices = @transform_5, window_bounds = array<i64: 8, 128>}]} {
    %c0 = arith.constant 0 : index
    %c0_0 = arith.constant 0 : index
    %0 = vector.load %arg1[%c0, %c0_0] : memref<8x259xf32, #tpu.memory_space<vmem>>, vector<8x259xf32>
    %c0_1 = arith.constant 0 : index
    %c0_2 = arith.constant 0 : index
    %1 = vector.load %arg2[%c0_1, %c0_2] : memref<259x384xbf16, #tpu.memory_space<vmem>>, vector<259x384xbf16>
    %2 = arith.truncf %0 : vector<8x259xf32> to vector<8x259xbf16>
    %cst = arith.constant dense<0.000000e+00> : vector<8x384xf32>
    %3 = tpu.matmul %2, %1, %cst {dimension_numbers = #tpu.dot_dimension_numbers<[1], [0], [0], [1], [0, 0, 1, 1], [], []>} : vector<8x259xbf16>, vector<259x384xbf16>, vector<8x384xf32> -> vector<8x384xf32>
    %c0_3 = arith.constant 0 : index
    %c0_4 = arith.constant 0 : index
    %4 = vector.load %arg3[%c0_3, %c0_4] : memref<1x384xf32, #tpu.memory_space<vmem>>, vector<1x384xf32>
    %5 = vector.broadcast %4 : vector<1x384xf32> to vector<8x384xf32>
    %6 = arith.addf %3, %5 : vector<8x384xf32>
    %cst_5 = arith.constant 0.000000e+00 : f32
    %7 = vector.broadcast %cst_5 : f32 to vector<8x384xf32>
    %8 = arith.maximumf %6, %7 : vector<8x384xf32>
    %c0_6 = arith.constant 0 : index
    %c0_7 = arith.constant 0 : index
    %9 = vector.load %arg4[%c0_6, %c0_7] : memref<384x128xbf16, #tpu.memory_space<vmem>>, vector<384x128xbf16>
    %10 = arith.truncf %8 : vector<8x384xf32> to vector<8x384xbf16>
    %cst_8 = arith.constant dense<0.000000e+00> : vector<8x128xf32>
    %11 = tpu.matmul %10, %9, %cst_8 {dimension_numbers = #tpu.dot_dimension_numbers<[1], [0], [0], [1], [0, 0, 1, 1], [], []>} : vector<8x384xbf16>, vector<384x128xbf16>, vector<8x128xf32> -> vector<8x128xf32>
    %c0_9 = arith.constant 0 : index
    %c0_10 = arith.constant 0 : index
    %12 = vector.load %arg5[%c0_9, %c0_10] : memref<1x128xf32, #tpu.memory_space<vmem>>, vector<1x128xf32>
    %13 = vector.broadcast %12 : vector<1x128xf32> to vector<8x128xf32>
    %14 = arith.addf %11, %13 : vector<8x128xf32>
    %c0_11 = arith.constant 0 : index
    %c0_12 = arith.constant 0 : index
    %15 = vector.load %arg6[%c0_11, %c0_12] : memref<8x128xf32, #tpu.memory_space<vmem>>, vector<8x128xf32>
    tpu.vector_store %arg6[%c0_11, %c0_12], %14 {strides = array<i32>} : memref<8x128xf32, #tpu.memory_space<vmem>>, vector<8x128xf32>,
    return
  }
  func.func @transform_0(%arg0: i32) -> (i32, i32) {
    %c0_i32 = arith.constant 0 : i32
    %c0_i32_0 = arith.constant 0 : i32
    return %arg0, %c0_i32 : i32, i32
  }
  func.func @transform_1(%arg0: i32) -> (i32, i32) {
    %c0_i32 = arith.constant 0 : i32
    %c0_i32_0 = arith.constant 0 : i32
    %c0_i32_1 = arith.constant 0 : i32
    return %c0_i32, %c0_i32_0 : i32, i32
  }
  func.func @transform_2(%arg0: i32) -> (i32, i32) {
    %c0_i32 = arith.constant 0 : i32
    %c0_i32_0 = arith.constant 0 : i32
    %c0_i32_1 = arith.constant 0 : i32
    return %c0_i32, %c0_i32_0 : i32, i32
  }
  func.func @transform_3(%arg0: i32) -> (i32, i32) {
    %c0_i32 = arith.constant 0 : i32
    %c0_i32_0 = arith.constant 0 : i32
    %c0_i32_1 = arith.constant 0 : i32
    return %c0_i32, %c0_i32_0 : i32, i32
  }
  func.func @transform_4(%arg0: i32) -> (i32, i32) {
    %c0_i32 = arith.constant 0 : i32
    %c0_i32_0 = arith.constant 0 : i32
    %c0_i32_1 = arith.constant 0 : i32
    return %c0_i32, %c0_i32_0 : i32, i32
  }
  func.func @transform_5(%arg0: i32) -> (i32, i32) {
    %c0_i32 = arith.constant 0 : i32
    %c0_i32_0 = arith.constant 0 : i32
    return %arg0, %c0_i32 : i32, i32
  }
}

module attributes {stable_mosaic.version = 11 : i64} {
  func.func @_mlp1_kernel(%arg0: i32, %arg1: memref<1x2x256xf32, #tpu.memory_space<vmem>>, %arg2: memref<1x1x256xf32, #tpu.memory_space<vmem>>, %arg3: memref<1x1x256xf32, #tpu.memory_space<vmem>>, %arg4: memref<256x256xbf16, #tpu.memory_space<vmem>>, %arg5: memref<256x256xbf16, #tpu.memory_space<vmem>>, %arg6: memref<1x256xf32, #tpu.memory_space<vmem>>, %arg7: memref<256x256xbf16, #tpu.memory_space<vmem>>, %arg8: memref<1x2x256xf32, #tpu.memory_space<vmem>>) attributes {dimension_semantics = [#tpu.dimension_semantics<parallel>], iteration_bounds = array<i64: 2>, scalar_prefetch = 0 : i64, scratch_operands = 0 : i64, tpu.core_type = #tpu.core_type<tc>, window_params = [{transform_indices = @transform_0, window_bounds = array<i64: 1, 2, 256>}, {transform_indices = @transform_1, window_bounds = array<i64: 1, 1, 256>}, {transform_indices = @transform_2, window_bounds = array<i64: 1, 1, 256>}, {pipeline_mode = #tpu.pipeline_mode<synchronous>, transform_indices = @transform_3, window_bounds = array<i64: 256, 256>}, {pipeline_mode = #tpu.pipeline_mode<synchronous>, transform_indices = @transform_4, window_bounds = array<i64: 256, 256>}, {pipeline_mode = #tpu.pipeline_mode<synchronous>, transform_indices = @transform_5, window_bounds = array<i64: 1, 256>}, {pipeline_mode = #tpu.pipeline_mode<synchronous>, transform_indices = @transform_6, window_bounds = array<i64: 256, 256>}, {transform_indices = @transform_7, window_bounds = array<i64: 1, 2, 256>}]} {
    %c0 = arith.constant 0 : index
    %c0_0 = arith.constant 0 : index
    %c0_1 = arith.constant 0 : index
    %0 = vector.load %arg1[%c0, %c0_0, %c0_1] : memref<1x2x256xf32, #tpu.memory_space<vmem>>, vector<1x2x256xf32>
    %1 = vector.shape_cast %0 : vector<1x2x256xf32> to vector<2x256xf32>
    %c0_2 = arith.constant 0 : index
    %c0_3 = arith.constant 0 : index
    %2 = vector.load %arg4[%c0_2, %c0_3] : memref<256x256xbf16, #tpu.memory_space<vmem>>, vector<256x256xbf16>
    %3 = arith.truncf %1 : vector<2x256xf32> to vector<2x256xbf16>
    %cst = arith.constant dense<0.000000e+00> : vector<2x256xf32>
    %4 = tpu.matmul %3, %2, %cst {dimension_numbers = #tpu.dot_dimension_numbers<[1], [0], [0], [1], [0, 0, 1, 1], [], []>} : vector<2x256xbf16>, vector<256x256xbf16>, vector<2x256xf32> -> vector<2x256xf32>
    %c0_4 = arith.constant 0 : index
    %c0_5 = arith.constant 0 : index
    %c0_6 = arith.constant 0 : index
    %5 = vector.load %arg2[%c0_4, %c0_5, %c0_6] : memref<1x1x256xf32, #tpu.memory_space<vmem>>, vector<1x1x256xf32>
    %6 = vector.shape_cast %5 : vector<1x1x256xf32> to vector<1x256xf32>
    %7 = vector.broadcast %6 : vector<1x256xf32> to vector<2x256xf32>
    %8 = arith.addf %4, %7 : vector<2x256xf32>
    %cst_7 = arith.constant 0.000000e+00 : f32
    %9 = vector.broadcast %cst_7 : f32 to vector<2x256xf32>
    %10 = arith.maximumf %8, %9 : vector<2x256xf32>
    %c0_8 = arith.constant 0 : index
    %c0_9 = arith.constant 0 : index
    %11 = vector.load %arg5[%c0_8, %c0_9] : memref<256x256xbf16, #tpu.memory_space<vmem>>, vector<256x256xbf16>
    %12 = arith.truncf %10 : vector<2x256xf32> to vector<2x256xbf16>
    %cst_10 = arith.constant dense<0.000000e+00> : vector<2x256xf32>
    %13 = tpu.matmul %12, %11, %cst_10 {dimension_numbers = #tpu.dot_dimension_numbers<[1], [0], [0], [1], [0, 0, 1, 1], [], []>} : vector<2x256xbf16>, vector<256x256xbf16>, vector<2x256xf32> -> vector<2x256xf32>
    %c0_11 = arith.constant 0 : index
    %c0_12 = arith.constant 0 : index
    %14 = vector.load %arg6[%c0_11, %c0_12] : memref<1x256xf32, #tpu.memory_space<vmem>>, vector<1x256xf32>
    %15 = vector.broadcast %14 : vector<1x256xf32> to vector<2x256xf32>
    %16 = arith.addf %13, %15 : vector<2x256xf32>
    %c0_13 = arith.constant 0 : index
    %c0_14 = arith.constant 0 : index
    %17 = vector.load %arg7[%c0_13, %c0_14] : memref<256x256xbf16, #tpu.memory_space<vmem>>, vector<256x256xbf16>
    %18 = arith.truncf %1 : vector<2x256xf32> to vector<2x256xbf16>
    %cst_15 = arith.constant dense<0.000000e+00> : vector<2x256xf32>
    %19 = tpu.matmul %18, %17, %cst_15 {dimension_numbers = #tpu.dot_dimension_numbers<[1], [0], [0], [1], [0, 0, 1, 1], [], []>} : vector<2x256xbf16>, vector<256x256xbf16>, vector<2x256xf32> -> vector<2x256xf32>
    %c0_16 = arith.constant 0 : index
    %c0_17 = arith.constant 0 : index
    %c0_18 = arith.constant 0 : index
    %20 = vector.load %arg3[%c0_16, %c0_17, %c0_18] : memref<1x1x256xf32, #tpu.memory_space<vmem>>, vector<1x1x256xf32>
    %21 = vector.shape_cast %20 : vector<1x1x256xf32> to vector<1x256xf32>
    %22 = vector.broadcast %21 : vector<1x256xf32> to vector<2x256xf32>
    %23 = arith.addf %19, %22 : vector<2x256xf32>
    %24 = arith.addf %16, %23 : vector<2x256xf32>
    %c0_19 = arith.constant 0 : index
    %c0_20 = arith.constant 0 : index
    %c0_21 = arith.constant 0 : index
    %25 = vector.load %arg8[%c0_19, %c0_20, %c0_21] : memref<1x2x256xf32, #tpu.memory_space<vmem>>, vector<1x2x256xf32>
    %26 = vector.shape_cast %25 : vector<1x2x256xf32> to vector<2x256xf32>
    %27 = vector.shape_cast %24 : vector<2x256xf32> to vector<1x2x256xf32>
    tpu.vector_store %arg8[%c0_19, %c0_20, %c0_21], %27 {strides = array<i32>} : memref<1x2x256xf32, #tpu.memory_space<vmem>>, vector<1x2x256xf32>,
    return
  }
  func.func @transform_0(%arg0: i32) -> (i32, i32, i32) {
    %c0_i32 = arith.constant 0 : i32
    %c0_i32_0 = arith.constant 0 : i32
    %c0_i32_1 = arith.constant 0 : i32
    return %arg0, %c0_i32, %c0_i32_0 : i32, i32, i32
  }
  func.func @transform_1(%arg0: i32) -> (i32, i32, i32) {
    %c0_i32 = arith.constant 0 : i32
    %c0_i32_0 = arith.constant 0 : i32
    %c0_i32_1 = arith.constant 0 : i32
    return %arg0, %c0_i32, %c0_i32_0 : i32, i32, i32
  }
  func.func @transform_2(%arg0: i32) -> (i32, i32, i32) {
    %c0_i32 = arith.constant 0 : i32
    %c0_i32_0 = arith.constant 0 : i32
    %c0_i32_1 = arith.constant 0 : i32
    return %arg0, %c0_i32, %c0_i32_0 : i32, i32, i32
  }
  func.func @transform_3(%arg0: i32) -> (i32, i32) {
    %c0_i32 = arith.constant 0 : i32
    %c0_i32_0 = arith.constant 0 : i32
    %c0_i32_1 = arith.constant 0 : i32
    return %c0_i32, %c0_i32_0 : i32, i32
  }
  func.func @transform_4(%arg0: i32) -> (i32, i32) {
    %c0_i32 = arith.constant 0 : i32
    %c0_i32_0 = arith.constant 0 : i32
    %c0_i32_1 = arith.constant 0 : i32
    return %c0_i32, %c0_i32_0 : i32, i32
  }
  func.func @transform_5(%arg0: i32) -> (i32, i32) {
    %c0_i32 = arith.constant 0 : i32
    %c0_i32_0 = arith.constant 0 : i32
    %c0_i32_1 = arith.constant 0 : i32
    return %c0_i32, %c0_i32_0 : i32, i32
  }
  func.func @transform_6(%arg0: i32) -> (i32, i32) {
    %c0_i32 = arith.constant 0 : i32
    %c0_i32_0 = arith.constant 0 : i32
    %c0_i32_1 = arith.constant 0 : i32
    return %c0_i32, %c0_i32_0 : i32, i32
  }
  func.func @transform_7(%arg0: i32) -> (i32, i32, i32) {
    %c0_i32 = arith.constant 0 : i32
    %c0_i32_0 = arith.constant 0 : i32
    %c0_i32_1 = arith.constant 0 : i32
    return %arg0, %c0_i32, %c0_i32_0 : i32, i32, i32
  }
}

module attributes {stable_mosaic.version = 11 : i64} {
  func.func @_deconv_refine_kernel(%arg0: i32, %arg1: memref<4x256xf32, #tpu.memory_space<vmem>>, %arg2: memref<256x512xbf16, #tpu.memory_space<vmem>>, %arg3: memref<1x512xf32, #tpu.memory_space<vmem>>, %arg4: memref<256x128xbf16, #tpu.memory_space<vmem>>, %arg5: memref<1x128xf32, #tpu.memory_space<vmem>>, %arg6: memref<128x32xbf16, #tpu.memory_space<vmem>>, %arg7: memref<32x256xbf16, #tpu.memory_space<vmem>>, %arg8: memref<4x512xf32, #tpu.memory_space<vmem>>) attributes {dimension_semantics = [#tpu.dimension_semantics<parallel>], iteration_bounds = array<i64: 1>, scalar_prefetch = 0 : i64, scratch_operands = 0 : i64, tpu.core_type = #tpu.core_type<tc>, window_params = [{transform_indices = @transform_0, window_bounds = array<i64: 4, 256>}, {pipeline_mode = #tpu.pipeline_mode<synchronous>, transform_indices = @transform_1, window_bounds = array<i64: 256, 512>}, {pipeline_mode = #tpu.pipeline_mode<synchronous>, transform_indices = @transform_2, window_bounds = array<i64: 1, 512>}, {pipeline_mode = #tpu.pipeline_mode<synchronous>, transform_indices = @transform_3, window_bounds = array<i64: 256, 128>}, {pipeline_mode = #tpu.pipeline_mode<synchronous>, transform_indices = @transform_4, window_bounds = array<i64: 1, 128>}, {pipeline_mode = #tpu.pipeline_mode<synchronous>, transform_indices = @transform_5, window_bounds = array<i64: 128, 32>}, {pipeline_mode = #tpu.pipeline_mode<synchronous>, transform_indices = @transform_6, window_bounds = array<i64: 32, 256>}, {transform_indices = @transform_7, window_bounds = array<i64: 4, 512>}]} {
    %c0 = arith.constant 0 : index
    %c0_0 = arith.constant 0 : index
    %0 = vector.load %arg1[%c0, %c0_0] : memref<4x256xf32, #tpu.memory_space<vmem>>, vector<4x256xf32>
    %c0_1 = arith.constant 0 : index
    %c0_2 = arith.constant 0 : index
    %1 = vector.load %arg2[%c0_1, %c0_2] : memref<256x512xbf16, #tpu.memory_space<vmem>>, vector<256x512xbf16>
    %2 = arith.truncf %0 : vector<4x256xf32> to vector<4x256xbf16>
    %cst = arith.constant dense<0.000000e+00> : vector<4x512xf32>
    %3 = tpu.matmul %2, %1, %cst {dimension_numbers = #tpu.dot_dimension_numbers<[1], [0], [0], [1], [0, 0, 1, 1], [], []>} : vector<4x256xbf16>, vector<256x512xbf16>, vector<4x512xf32> -> vector<4x512xf32>
    %c0_3 = arith.constant 0 : index
    %c0_4 = arith.constant 0 : index
    %4 = vector.load %arg3[%c0_3, %c0_4] : memref<1x512xf32, #tpu.memory_space<vmem>>, vector<1x512xf32>
    %5 = vector.broadcast %4 : vector<1x512xf32> to vector<4x512xf32>
    %6 = arith.addf %3, %5 : vector<4x512xf32>
    %c0_5 = arith.constant 0 : index
    %c0_6 = arith.constant 0 : index
    %7 = vector.load %arg4[%c0_5, %c0_6] : memref<256x128xbf16, #tpu.memory_space<vmem>>, vector<256x128xbf16>
    %c0_7 = arith.constant 0 : index
    %c0_8 = arith.constant 0 : index
    %8 = vector.load %arg5[%c0_7, %c0_8] : memref<1x128xf32, #tpu.memory_space<vmem>>, vector<1x128xf32>
    %c0_9 = arith.constant 0 : index
    %c0_10 = arith.constant 0 : index
    %9 = vector.load %arg6[%c0_9, %c0_10] : memref<128x32xbf16, #tpu.memory_space<vmem>>, vector<128x32xbf16>
    %c0_11 = arith.constant 0 : index
    %c0_12 = arith.constant 0 : index
    %10 = vector.load %arg7[%c0_11, %c0_12] : memref<32x256xbf16, #tpu.memory_space<vmem>>, vector<32x256xbf16>
    %11 = vector.extract_strided_slice %6 {offsets = [0, 0], sizes = [4, 256], strides = [1, 1]} : vector<4x512xf32> to vector<4x256xf32>
    %12 = arith.truncf %11 : vector<4x256xf32> to vector<4x256xbf16>
    %cst_13 = arith.constant dense<0.000000e+00> : vector<4x128xf32>
    %13 = tpu.matmul %12, %7, %cst_13 {dimension_numbers = #tpu.dot_dimension_numbers<[1], [0], [0], [1], [0, 0, 1, 1], [], []>} : vector<4x256xbf16>, vector<256x128xbf16>, vector<4x128xf32> -> vector<4x128xf32>
    %14 = vector.broadcast %8 : vector<1x128xf32> to vector<4x128xf32>
    %15 = arith.addf %13, %14 : vector<4x128xf32>
    %16 = arith.truncf %15 : vector<4x128xf32> to vector<4x128xbf16>
    %cst_14 = arith.constant dense<0.000000e+00> : vector<4x32xf32>
    %17 = tpu.matmul %16, %9, %cst_14 {dimension_numbers = #tpu.dot_dimension_numbers<[1], [0], [0], [1], [0, 0, 1, 1], [], []>} : vector<4x128xbf16>, vector<128x32xbf16>, vector<4x32xf32> -> vector<4x32xf32>
    %cst_15 = arith.constant 1.250000e-01 : f32
    %18 = vector.broadcast %cst_15 : f32 to vector<4x32xf32>
    %19 = arith.mulf %17, %18 : vector<4x32xf32>
    %cst_16 = arith.constant dense<0xFF800000> : vector<4xf32>
    %20 = vector.multi_reduction <maximumf>, %19, %cst_16 [1] : vector<4x32xf32> to vector<4xf32>
    %21 = vector.shape_cast %20 : vector<4xf32> to vector<4x1xf32>
    %22 = vector.broadcast %21 : vector<4x1xf32> to vector<4x32xf32>
    %23 = arith.subf %19, %22 : vector<4x32xf32>
    %24 = math.exp %23 : vector<4x32xf32>
    %cst_17 = arith.constant dense<0.000000e+00> : vector<4xf32>
    %25 = vector.multi_reduction <add>, %24, %cst_17 [1] : vector<4x32xf32> to vector<4xf32>
    %26 = vector.shape_cast %25 : vector<4xf32> to vector<4x1xf32>
    %27 = tpu.reciprocal %26 {approx = true} : vector<4x1xf32> -> vector<4x1xf32>
    %28 = vector.broadcast %27 : vector<4x1xf32> to vector<4x32xf32>
    %29 = arith.mulf %24, %28 : vector<4x32xf32>
    %30 = arith.truncf %29 : vector<4x32xf32> to vector<4x32xbf16>
    %cst_18 = arith.constant dense<0.000000e+00> : vector<4x256xf32>
    %31 = tpu.matmul %30, %10, %cst_18 {dimension_numbers = #tpu.dot_dimension_numbers<[1], [0], [0], [1], [0, 0, 1, 1], [], []>} : vector<4x32xbf16>, vector<32x256xbf16>, vector<4x256xf32> -> vector<4x256xf32>
    %32 = arith.addf %31, %11 : vector<4x256xf32>
    %cst_19 = arith.constant 5.000000e-01 : f32
    %33 = vector.broadcast %cst_19 : f32 to vector<4x256xf32>
    %34 = arith.mulf %32, %33 : vector<4x256xf32>
    %c0_20 = arith.constant 0 : index
    %c0_21 = arith.constant 0 : index
    %35 = vector.load %arg8[%c0_20, %c0_21] : memref<4x512xf32, #tpu.memory_space<vmem>>, vector<4x256xf32>
    tpu.vector_store %arg8[%c0_20, %c0_21], %34 {strides = array<i32>} : memref<4x512xf32, #tpu.memory_space<vmem>>, vector<4x256xf32>,
    %36 = vector.extract_strided_slice %6 {offsets = [0, 256], sizes = [4, 256], strides = [1, 1]} : vector<4x512xf32> to vector<4x256xf32>
    %37 = arith.truncf %36 : vector<4x256xf32> to vector<4x256xbf16>
    %cst_22 = arith.constant dense<0.000000e+00> : vector<4x128xf32>
    %38 = tpu.matmul %37, %7, %cst_22 {dimension_numbers = #tpu.dot_dimension_numbers<[1], [0], [0], [1], [0, 0, 1, 1], [], []>} : vector<4x256xbf16>, vector<256x128xbf16>, vector<4x128xf32> -> vector<4x128xf32>
    %39 = vector.broadcast %8 : vector<1x128xf32> to vector<4x128xf32>
    %40 = arith.addf %38, %39 : vector<4x128xf32>
    %41 = arith.truncf %40 : vector<4x128xf32> to vector<4x128xbf16>
    %cst_23 = arith.constant dense<0.000000e+00> : vector<4x32xf32>
    %42 = tpu.matmul %41, %9, %cst_23 {dimension_numbers = #tpu.dot_dimension_numbers<[1], [0], [0], [1], [0, 0, 1, 1], [], []>} : vector<4x128xbf16>, vector<128x32xbf16>, vector<4x32xf32> -> vector<4x32xf32>
    %cst_24 = arith.constant 1.250000e-01 : f32
    %43 = vector.broadcast %cst_24 : f32 to vector<4x32xf32>
    %44 = arith.mulf %42, %43 : vector<4x32xf32>
    %cst_25 = arith.constant dense<0xFF800000> : vector<4xf32>
    %45 = vector.multi_reduction <maximumf>, %44, %cst_25 [1] : vector<4x32xf32> to vector<4xf32>
    %46 = vector.shape_cast %45 : vector<4xf32> to vector<4x1xf32>
    %47 = vector.broadcast %46 : vector<4x1xf32> to vector<4x32xf32>
    %48 = arith.subf %44, %47 : vector<4x32xf32>
    %49 = math.exp %48 : vector<4x32xf32>
    %cst_26 = arith.constant dense<0.000000e+00> : vector<4xf32>
    %50 = vector.multi_reduction <add>, %49, %cst_26 [1] : vector<4x32xf32> to vector<4xf32>
    %51 = vector.shape_cast %50 : vector<4xf32> to vector<4x1xf32>
    %52 = tpu.reciprocal %51 {approx = true} : vector<4x1xf32> -> vector<4x1xf32>
    %53 = vector.broadcast %52 : vector<4x1xf32> to vector<4x32xf32>
    %54 = arith.mulf %49, %53 : vector<4x32xf32>
    %55 = arith.truncf %54 : vector<4x32xf32> to vector<4x32xbf16>
    %cst_27 = arith.constant dense<0.000000e+00> : vector<4x256xf32>
    %56 = tpu.matmul %55, %10, %cst_27 {dimension_numbers = #tpu.dot_dimension_numbers<[1], [0], [0], [1], [0, 0, 1, 1], [], []>} : vector<4x32xbf16>, vector<32x256xbf16>, vector<4x256xf32> -> vector<4x256xf32>
    %57 = arith.addf %56, %36 : vector<4x256xf32>
    %cst_28 = arith.constant 5.000000e-01 : f32
    %58 = vector.broadcast %cst_28 : f32 to vector<4x256xf32>
    %59 = arith.mulf %57, %58 : vector<4x256xf32>
    %c0_29 = arith.constant 0 : index
    %c256 = arith.constant 256 : index
    %60 = vector.load %arg8[%c0_29, %c256] : memref<4x512xf32, #tpu.memory_space<vmem>>, vector<4x256xf32>
    tpu.vector_store %arg8[%c0_29, %c256], %59 {strides = array<i32>} : memref<4x512xf32, #tpu.memory_space<vmem>>, vector<4x256xf32>,
    return
  }
  func.func @transform_0(%arg0: i32) -> (i32, i32) {
    %c0_i32 = arith.constant 0 : i32
    %c0_i32_0 = arith.constant 0 : i32
    return %arg0, %c0_i32 : i32, i32
  }
  func.func @transform_1(%arg0: i32) -> (i32, i32) {
    %c0_i32 = arith.constant 0 : i32
    %c0_i32_0 = arith.constant 0 : i32
    %c0_i32_1 = arith.constant 0 : i32
    return %c0_i32, %c0_i32_0 : i32, i32
  }
  func.func @transform_2(%arg0: i32) -> (i32, i32) {
    %c0_i32 = arith.constant 0 : i32
    %c0_i32_0 = arith.constant 0 : i32
    %c0_i32_1 = arith.constant 0 : i32
    return %c0_i32, %c0_i32_0 : i32, i32
  }
  func.func @transform_3(%arg0: i32) -> (i32, i32) {
    %c0_i32 = arith.constant 0 : i32
    %c0_i32_0 = arith.constant 0 : i32
    %c0_i32_1 = arith.constant 0 : i32
    return %c0_i32, %c0_i32_0 : i32, i32
  }
  func.func @transform_4(%arg0: i32) -> (i32, i32) {
    %c0_i32 = arith.constant 0 : i32
    %c0_i32_0 = arith.constant 0 : i32
    %c0_i32_1 = arith.constant 0 : i32
    return %c0_i32, %c0_i32_0 : i32, i32
  }
  func.func @transform_5(%arg0: i32) -> (i32, i32) {
    %c0_i32 = arith.constant 0 : i32
    %c0_i32_0 = arith.constant 0 : i32
    %c0_i32_1 = arith.constant 0 : i32
    return %c0_i32, %c0_i32_0 : i32, i32
  }
  func.func @transform_6(%arg0: i32) -> (i32, i32) {
    %c0_i32 = arith.constant 0 : i32
    %c0_i32_0 = arith.constant 0 : i32
    %c0_i32_1 = arith.constant 0 : i32
    return %c0_i32, %c0_i32_0 : i32, i32
  }
  func.func @transform_7(%arg0: i32) -> (i32, i32) {
    %c0_i32 = arith.constant 0 : i32
    %c0_i32_0 = arith.constant 0 : i32
    return %arg0, %c0_i32 : i32, i32
  }
}

module attributes {stable_mosaic.version = 11 : i64} {
  func.func @_deconv_refine_kernel(%arg0: i32, %arg1: memref<16x256xf32, #tpu.memory_space<vmem>>, %arg2: memref<256x256xbf16, #tpu.memory_space<vmem>>, %arg3: memref<1x256xf32, #tpu.memory_space<vmem>>, %arg4: memref<128x128xbf16, #tpu.memory_space<vmem>>, %arg5: memref<1x128xf32, #tpu.memory_space<vmem>>, %arg6: memref<128x16xbf16, #tpu.memory_space<vmem>>, %arg7: memref<16x128xbf16, #tpu.memory_space<vmem>>, %arg8: memref<16x256xf32, #tpu.memory_space<vmem>>) attributes {dimension_semantics = [#tpu.dimension_semantics<parallel>], iteration_bounds = array<i64: 1>, scalar_prefetch = 0 : i64, scratch_operands = 0 : i64, tpu.core_type = #tpu.core_type<tc>, window_params = [{transform_indices = @transform_0, window_bounds = array<i64: 16, 256>}, {pipeline_mode = #tpu.pipeline_mode<synchronous>, transform_indices = @transform_1, window_bounds = array<i64: 256, 256>}, {pipeline_mode = #tpu.pipeline_mode<synchronous>, transform_indices = @transform_2, window_bounds = array<i64: 1, 256>}, {pipeline_mode = #tpu.pipeline_mode<synchronous>, transform_indices = @transform_3, window_bounds = array<i64: 128, 128>}, {pipeline_mode = #tpu.pipeline_mode<synchronous>, transform_indices = @transform_4, window_bounds = array<i64: 1, 128>}, {pipeline_mode = #tpu.pipeline_mode<synchronous>, transform_indices = @transform_5, window_bounds = array<i64: 128, 16>}, {pipeline_mode = #tpu.pipeline_mode<synchronous>, transform_indices = @transform_6, window_bounds = array<i64: 16, 128>}, {transform_indices = @transform_7, window_bounds = array<i64: 16, 256>}]} {
    %c0 = arith.constant 0 : index
    %c0_0 = arith.constant 0 : index
    %0 = vector.load %arg1[%c0, %c0_0] : memref<16x256xf32, #tpu.memory_space<vmem>>, vector<16x256xf32>
    %c0_1 = arith.constant 0 : index
    %c0_2 = arith.constant 0 : index
    %1 = vector.load %arg2[%c0_1, %c0_2] : memref<256x256xbf16, #tpu.memory_space<vmem>>, vector<256x256xbf16>
    %2 = arith.truncf %0 : vector<16x256xf32> to vector<16x256xbf16>
    %cst = arith.constant dense<0.000000e+00> : vector<16x256xf32>
    %3 = tpu.matmul %2, %1, %cst {dimension_numbers = #tpu.dot_dimension_numbers<[1], [0], [0], [1], [0, 0, 1, 1], [], []>} : vector<16x256xbf16>, vector<256x256xbf16>, vector<16x256xf32> -> vector<16x256xf32>
    %c0_3 = arith.constant 0 : index
    %c0_4 = arith.constant 0 : index
    %4 = vector.load %arg3[%c0_3, %c0_4] : memref<1x256xf32, #tpu.memory_space<vmem>>, vector<1x256xf32>
    %5 = vector.broadcast %4 : vector<1x256xf32> to vector<16x256xf32>
    %6 = arith.addf %3, %5 : vector<16x256xf32>
    %c0_5 = arith.constant 0 : index
    %c0_6 = arith.constant 0 : index
    %7 = vector.load %arg4[%c0_5, %c0_6] : memref<128x128xbf16, #tpu.memory_space<vmem>>, vector<128x128xbf16>
    %c0_7 = arith.constant 0 : index
    %c0_8 = arith.constant 0 : index
    %8 = vector.load %arg5[%c0_7, %c0_8] : memref<1x128xf32, #tpu.memory_space<vmem>>, vector<1x128xf32>
    %c0_9 = arith.constant 0 : index
    %c0_10 = arith.constant 0 : index
    %9 = vector.load %arg6[%c0_9, %c0_10] : memref<128x16xbf16, #tpu.memory_space<vmem>>, vector<128x16xbf16>
    %c0_11 = arith.constant 0 : index
    %c0_12 = arith.constant 0 : index
    %10 = vector.load %arg7[%c0_11, %c0_12] : memref<16x128xbf16, #tpu.memory_space<vmem>>, vector<16x128xbf16>
    %11 = vector.extract_strided_slice %6 {offsets = [0, 0], sizes = [16, 128], strides = [1, 1]} : vector<16x256xf32> to vector<16x128xf32>
    %12 = arith.truncf %11 : vector<16x128xf32> to vector<16x128xbf16>
    %cst_13 = arith.constant dense<0.000000e+00> : vector<16x128xf32>
    %13 = tpu.matmul %12, %7, %cst_13 {dimension_numbers = #tpu.dot_dimension_numbers<[1], [0], [0], [1], [0, 0, 1, 1], [], []>} : vector<16x128xbf16>, vector<128x128xbf16>, vector<16x128xf32> -> vector<16x128xf32>
    %14 = vector.broadcast %8 : vector<1x128xf32> to vector<16x128xf32>
    %15 = arith.addf %13, %14 : vector<16x128xf32>
    %16 = arith.truncf %15 : vector<16x128xf32> to vector<16x128xbf16>
    %cst_14 = arith.constant dense<0.000000e+00> : vector<16x16xf32>
    %17 = tpu.matmul %16, %9, %cst_14 {dimension_numbers = #tpu.dot_dimension_numbers<[1], [0], [0], [1], [0, 0, 1, 1], [], []>} : vector<16x128xbf16>, vector<128x16xbf16>, vector<16x16xf32> -> vector<16x16xf32>
    %cst_15 = arith.constant 1.250000e-01 : f32
    %18 = vector.broadcast %cst_15 : f32 to vector<16x16xf32>
    %19 = arith.mulf %17, %18 : vector<16x16xf32>
    %cst_16 = arith.constant dense<0xFF800000> : vector<16xf32>
    %20 = vector.multi_reduction <maximumf>, %19, %cst_16 [1] : vector<16x16xf32> to vector<16xf32>
    %21 = vector.shape_cast %20 : vector<16xf32> to vector<16x1xf32>
    %22 = vector.broadcast %21 : vector<16x1xf32> to vector<16x16xf32>
    %23 = arith.subf %19, %22 : vector<16x16xf32>
    %24 = math.exp %23 : vector<16x16xf32>
    %cst_17 = arith.constant dense<0.000000e+00> : vector<16xf32>
    %25 = vector.multi_reduction <add>, %24, %cst_17 [1] : vector<16x16xf32> to vector<16xf32>
    %26 = vector.shape_cast %25 : vector<16xf32> to vector<16x1xf32>
    %27 = tpu.reciprocal %26 {approx = true} : vector<16x1xf32> -> vector<16x1xf32>
    %28 = vector.broadcast %27 : vector<16x1xf32> to vector<16x16xf32>
    %29 = arith.mulf %24, %28 : vector<16x16xf32>
    %30 = arith.truncf %29 : vector<16x16xf32> to vector<16x16xbf16>
    %cst_18 = arith.constant dense<0.000000e+00> : vector<16x128xf32>
    %31 = tpu.matmul %30, %10, %cst_18 {dimension_numbers = #tpu.dot_dimension_numbers<[1], [0], [0], [1], [0, 0, 1, 1], [], []>} : vector<16x16xbf16>, vector<16x128xbf16>, vector<16x128xf32> -> vector<16x128xf32>
    %32 = arith.addf %31, %11 : vector<16x128xf32>
    %cst_19 = arith.constant 5.000000e-01 : f32
    %33 = vector.broadcast %cst_19 : f32 to vector<16x128xf32>
    %34 = arith.mulf %32, %33 : vector<16x128xf32>
    %c0_20 = arith.constant 0 : index
    %c0_21 = arith.constant 0 : index
    %35 = vector.load %arg8[%c0_20, %c0_21] : memref<16x256xf32, #tpu.memory_space<vmem>>, vector<16x128xf32>
    tpu.vector_store %arg8[%c0_20, %c0_21], %34 {strides = array<i32>} : memref<16x256xf32, #tpu.memory_space<vmem>>, vector<16x128xf32>,
    %36 = vector.extract_strided_slice %6 {offsets = [0, 128], sizes = [16, 128], strides = [1, 1]} : vector<16x256xf32> to vector<16x128xf32>
    %37 = arith.truncf %36 : vector<16x128xf32> to vector<16x128xbf16>
    %cst_22 = arith.constant dense<0.000000e+00> : vector<16x128xf32>
    %38 = tpu.matmul %37, %7, %cst_22 {dimension_numbers = #tpu.dot_dimension_numbers<[1], [0], [0], [1], [0, 0, 1, 1], [], []>} : vector<16x128xbf16>, vector<128x128xbf16>, vector<16x128xf32> -> vector<16x128xf32>
    %39 = vector.broadcast %8 : vector<1x128xf32> to vector<16x128xf32>
    %40 = arith.addf %38, %39 : vector<16x128xf32>
    %41 = arith.truncf %40 : vector<16x128xf32> to vector<16x128xbf16>
    %cst_23 = arith.constant dense<0.000000e+00> : vector<16x16xf32>
    %42 = tpu.matmul %41, %9, %cst_23 {dimension_numbers = #tpu.dot_dimension_numbers<[1], [0], [0], [1], [0, 0, 1, 1], [], []>} : vector<16x128xbf16>, vector<128x16xbf16>, vector<16x16xf32> -> vector<16x16xf32>
    %cst_24 = arith.constant 1.250000e-01 : f32
    %43 = vector.broadcast %cst_24 : f32 to vector<16x16xf32>
    %44 = arith.mulf %42, %43 : vector<16x16xf32>
    %cst_25 = arith.constant dense<0xFF800000> : vector<16xf32>
    %45 = vector.multi_reduction <maximumf>, %44, %cst_25 [1] : vector<16x16xf32> to vector<16xf32>
    %46 = vector.shape_cast %45 : vector<16xf32> to vector<16x1xf32>
    %47 = vector.broadcast %46 : vector<16x1xf32> to vector<16x16xf32>
    %48 = arith.subf %44, %47 : vector<16x16xf32>
    %49 = math.exp %48 : vector<16x16xf32>
    %cst_26 = arith.constant dense<0.000000e+00> : vector<16xf32>
    %50 = vector.multi_reduction <add>, %49, %cst_26 [1] : vector<16x16xf32> to vector<16xf32>
    %51 = vector.shape_cast %50 : vector<16xf32> to vector<16x1xf32>
    %52 = tpu.reciprocal %51 {approx = true} : vector<16x1xf32> -> vector<16x1xf32>
    %53 = vector.broadcast %52 : vector<16x1xf32> to vector<16x16xf32>
    %54 = arith.mulf %49, %53 : vector<16x16xf32>
    %55 = arith.truncf %54 : vector<16x16xf32> to vector<16x16xbf16>
    %cst_27 = arith.constant dense<0.000000e+00> : vector<16x128xf32>
    %56 = tpu.matmul %55, %10, %cst_27 {dimension_numbers = #tpu.dot_dimension_numbers<[1], [0], [0], [1], [0, 0, 1, 1], [], []>} : vector<16x16xbf16>, vector<16x128xbf16>, vector<16x128xf32> -> vector<16x128xf32>
    %57 = arith.addf %56, %36 : vector<16x128xf32>
    %cst_28 = arith.constant 5.000000e-01 : f32
    %58 = vector.broadcast %cst_28 : f32 to vector<16x128xf32>
    %59 = arith.mulf %57, %58 : vector<16x128xf32>
    %c0_29 = arith.constant 0 : index
    %c128 = arith.constant 128 : index
    %60 = vector.load %arg8[%c0_29, %c128] : memref<16x256xf32, #tpu.memory_space<vmem>>, vector<16x128xf32>
    tpu.vector_store %arg8[%c0_29, %c128], %59 {strides = array<i32>} : memref<16x256xf32, #tpu.memory_space<vmem>>, vector<16x128xf32>,
    return
  }
  func.func @transform_0(%arg0: i32) -> (i32, i32) {
    %c0_i32 = arith.constant 0 : i32
    %c0_i32_0 = arith.constant 0 : i32
    return %arg0, %c0_i32 : i32, i32
  }
  func.func @transform_1(%arg0: i32) -> (i32, i32) {
    %c0_i32 = arith.constant 0 : i32
    %c0_i32_0 = arith.constant 0 : i32
    %c0_i32_1 = arith.constant 0 : i32
    return %c0_i32, %c0_i32_0 : i32, i32
  }
  func.func @transform_2(%arg0: i32) -> (i32, i32) {
    %c0_i32 = arith.constant 0 : i32
    %c0_i32_0 = arith.constant 0 : i32
    %c0_i32_1 = arith.constant 0 : i32
    return %c0_i32, %c0_i32_0 : i32, i32
  }
  func.func @transform_3(%arg0: i32) -> (i32, i32) {
    %c0_i32 = arith.constant 0 : i32
    %c0_i32_0 = arith.constant 0 : i32
    %c0_i32_1 = arith.constant 0 : i32
    return %c0_i32, %c0_i32_0 : i32, i32
  }
  func.func @transform_4(%arg0: i32) -> (i32, i32) {
    %c0_i32 = arith.constant 0 : i32
    %c0_i32_0 = arith.constant 0 : i32
    %c0_i32_1 = arith.constant 0 : i32
    return %c0_i32, %c0_i32_0 : i32, i32
  }
  func.func @transform_5(%arg0: i32) -> (i32, i32) {
    %c0_i32 = arith.constant 0 : i32
    %c0_i32_0 = arith.constant 0 : i32
    %c0_i32_1 = arith.constant 0 : i32
    return %c0_i32, %c0_i32_0 : i32, i32
  }
  func.func @transform_6(%arg0: i32) -> (i32, i32) {
    %c0_i32 = arith.constant 0 : i32
    %c0_i32_0 = arith.constant 0 : i32
    %c0_i32_1 = arith.constant 0 : i32
    return %c0_i32, %c0_i32_0 : i32, i32
  }
  func.func @transform_7(%arg0: i32) -> (i32, i32) {
    %c0_i32 = arith.constant 0 : i32
    %c0_i32_0 = arith.constant 0 : i32
    return %arg0, %c0_i32 : i32, i32
  }
}

</mosaic_0001>

<llo_original>
// kernel: unet_forward.6
$region0: #{unet_forward.6}
  #allocation0 [shape = 'u32[]', space=smem, size = 0x4, offset = 0x4, fixed_abs, tag = 'smem constant byte address 0x4 - core index']
  #allocation1 [shape = 'u32[144,128]{1,0:T(1,128)}', space=vmem, size = 0x12000, scoped, tag = 'internal scratch']
  %s0 = inlined_call_operand.vmem [shape: f32[32,6], index: 0, kind: input, shape index: {}]
  %s1 = inlined_call_operand.vmem [shape: bf16[6,32], index: 1, kind: input, shape index: {}]
  %s2 = inlined_call_operand.vmem [shape: f32[1,32], index: 2, kind: input, shape index: {}]
  %s3 = inlined_call_operand.vmem [shape: bf16[32,128], index: 3, kind: input, shape index: {}]
  %s4 = inlined_call_operand.vmem [shape: f32[1,128], index: 4, kind: input, shape index: {}]
  %s5 = inlined_call_operand.vmem [shape: bf16[128,128], index: 5, kind: input, shape index: {}]
  %s6 = inlined_call_operand.vmem [shape: f32[1,128], index: 6, kind: input, shape index: {}]
  %s7 = inlined_call_operand.vmem [shape: bf16[128,128], index: 7, kind: input, shape index: {}]
  %s8 = inlined_call_operand.vmem [shape: f32[1,128], index: 8, kind: input, shape index: {}]
  %s9 = inlined_call_operand.vmem [shape: f32[32,128], index: 9, kind: output, shape index: {}]
  %s10 = sld [smem:[#allocation0]]
  $region46: #{unet_forward.6} parent=0
    _
  %s12 = ssub.s32 1, %s10
  %s13 = scalar_select 0, %s12, %s10
  // Predicated region
  $region2: #{unet_forward.6} parent=0 // pred_check
    _
  $region3: #{unet_forward.6} parent=0 // pred_check_branch
    %15 = sbr.rel (0) target = $region5
  $region4: #{unet_forward.6} parent=0 // pred_region
    _
  $region5: #{unet_forward.6} parent=0 // pred_fallthru
    _
  // Predicated region
  $region6: #{unet_forward.6} parent=0 // pred_check
    _
  $region7: #{unet_forward.6} parent=0 // pred_check_branch
    %17 = sbr.rel (0) target = $region9
  $region8: #{unet_forward.6} parent=0 // pred_region
    _
  $region9: #{unet_forward.6} parent=0 // pred_fallthru
    _
  // Predicated region
  $region10: #{unet_forward.6} parent=0 // pred_check
    _
  $region11: #{unet_forward.6} parent=0 // pred_check_branch
    %19 = sbr.rel (0) target = $region13
  $region12: #{unet_forward.6} parent=0 // pred_region
    _
  $region13: #{unet_forward.6} parent=0 // pred_fallthru
    _
  // Predicated region
  $region14: #{unet_forward.6} parent=0 // pred_check
    _
  $region15: #{unet_forward.6} parent=0 // pred_check_branch
    %21 = sbr.rel (0) target = $region17
  $region16: #{unet_forward.6} parent=0 // pred_region
    _
  $region17: #{unet_forward.6} parent=0 // pred_fallthru
    _
  // Predicated region
  $region18: #{unet_forward.6} parent=0 // pred_check
    _
  $region19: #{unet_forward.6} parent=0 // pred_check_branch
    %23 = sbr.rel (0) target = $region21
  $region20: #{unet_forward.6} parent=0 // pred_region
    _
  $region21: #{unet_forward.6} parent=0 // pred_fallthru
    _
  // Predicated region
  $region22: #{unet_forward.6} parent=0 // pred_check
    _
  $region23: #{unet_forward.6} parent=0 // pred_check_branch
    %25 = sbr.rel (0) target = $region25
  $region24: #{unet_forward.6} parent=0 // pred_region
    _
  $region25: #{unet_forward.6} parent=0 // pred_fallthru
    _
  // Predicated region
  $region26: #{unet_forward.6} parent=0 // pred_check
    _
  $region27: #{unet_forward.6} parent=0 // pred_check_branch
    %27 = sbr.rel (0) target = $region29
  $region28: #{unet_forward.6} parent=0 // pred_region
    _
  $region29: #{unet_forward.6} parent=0 // pred_fallthru
    _
  // Predicated region
  $region30: #{unet_forward.6} parent=0 // pred_check
    _
  $region31: #{unet_forward.6} parent=0 // pred_check_branch
    %29 = sbr.rel (0) target = $region33
  $region32: #{unet_forward.6} parent=0 // pred_region
    _
  $region33: #{unet_forward.6} parent=0 // pred_fallthru
    _
  // Predicated region
  $region34: #{unet_forward.6} parent=0 // pred_check
    _
  $region35: #{unet_forward.6} parent=0 // pred_check_branch
    %31 = sbr.rel (0) target = $region37
  $region36: #{unet_forward.6} parent=0 // pred_region
    _
  $region37: #{unet_forward.6} parent=0 // pred_fallthru
    _
  %v33 = vld [vmem:[%s0] sm:$0xff]
  %v34 = vld [vmem:[%s0 + $0x8] sm:$0xff]
  %v35 = vld [vmem:[%s0 + $0x10] sm:$0xff]
  %v36 = vld [vmem:[%s0 + $0x18] sm:$0xff]
  %v37 = vld [vmem:[%s1] sm:$0x7]
  %v38 = vpack.c.bf16 %v34, %v33
  %v39 = vpack.c.bf16 %v36, %v35
  %v40 = vld [vmem:[%s2] sm:$0x1]
  %v42 = vlaneseq
  %v43 = vshrl.u32 %v42, 7
  %v44 = vsub.s32 0, %v43
  %v45 = vrot.slane %v40, %v44
  %vm47 = vcmask 48128
  %v49 = vsel %vm47, %v38, 0
  %v52 = vsel %vm47, %v39, 0
  %vm54 = vcmask 1042432
  %v56 = vsel %vm54, %v37, 0
  %58 = vmatprep.subr.bf16.mxu0 0
  %59 = vmatpush1.bf16.msra.mxu0 %v56
  %60 = vmatprep.subr.bf16.mxu0 0
  %61 = vmatpush1.bf16.msra.mxu0 0
  %62 = vmatprep.subr.bf16.mxu0 0
  %63 = vmatpush1.bf16.msra.mxu0 0
  %64 = vmatprep.subr.bf16.mxu0 0
  %65 = vmatpush1.bf16.msra.mxu0 0
  %66 = vmatprep.subr.bf16.mxu0 0
  %67 = vmatpush1.bf16.msra.mxu0 0
  %68 = vmatprep.subr.bf16.mxu0 0
  %69 = vmatpush1.bf16.msra.mxu0 0
  %70 = vmatprep.subr.bf16.mxu0 0
  %71 = vmatpush1.bf16.msra.mxu0 0
  %72 = vmatprep.subr.bf16.mxu0 0
  %73 = vmatpush1.bf16.msra.mxu0 0
  %74 = vmatprep.subr.bf16.mxu0 0
  %75 = vmatpush1.bf16.msra.mxu0 0
  %76 = vmatprep.subr.bf16.mxu0 0
  %77 = vmatpush1.bf16.msra.mxu0 0
  %78 = vmatprep.subr.bf16.mxu0 0
  %79 = vmatpush1.bf16.msra.mxu0 0
  %80 = vmatprep.subr.bf16.mxu0 0
  %81 = vmatpush1.bf16.msra.mxu0 0
  %82 = vmatprep.subr.bf16.mxu0 0
  %83 = vmatpush1.bf16.msra.mxu0 0
  %84 = vmatprep.subr.bf16.mxu0 0
  %85 = vmatpush1.bf16.msra.mxu0 0
  %86 = vmatprep.subr.bf16.mxu0 0
  %87 = vmatpush1.bf16.msra.mxu0 0
  %88 = vmatprep.subr.bf16.mxu0 0
  %89 = vmatpush1.bf16.msra.mxu0 0
  %90 = vmatprep.mubr.bf16.mxu0 0
  %91 = vmatmul.mubr.bf16.gmra.mrb[0].mxu0 %v49
  %v92 = vpop.f32.mrb[0].mxu0
  %v93 = vadd.f32 %v45, %v92
  %v94 = vpop.f32.mrb[0].mxu0
  %v95 = vpop.f32.mrb[0].mxu0
  %v96 = vadd.f32 %v45, %v95
  %v97 = vpop.f32.mrb[0].mxu0
  %98 = vmatprep.mubr.bf16.mxu0 0
  %99 = vmatmul.mubr.bf16.gmra.mrb[0].mxu0 %v52
  %v100 = vpop.f32.mrb[0].mxu0
  %v101 = vadd.f32 %v45, %v100
  %v102 = vpop.f32.mrb[0].mxu0
  %v103 = vpop.f32.mrb[0].mxu0
  %v104 = vadd.f32 %v45, %v103
  %v105 = vpop.f32.mrb[0].mxu0
  %106 = vdwg.mxu0
  %v107 = vmax.f32 %v93, 0.0
  %v108 = vmax.f32 %v96, 0.0
  %v109 = vmax.f32 %v101, 0.0
  %v110 = vmax.f32 %v104, 0.0
  %v111 = vld [vmem:[%s3] sm:$0xf]
  %v112 = vld [vmem:[%s3 + $0x4] sm:$0xf]
  %v113 = vld [vmem:[%s3 + $0x8] sm:$0xf]
  %v114 = vld [vmem:[%s3 + $0xc] sm:$0xf]
  %v115 = vpack.c.bf16 %v108, %v107
  %v116 = vpack.c.bf16 %v110, %v109
  %v117 = vld [vmem:[%s4] sm:$0x1]
  %v119 = vlaneseq
  %v120 = vshrl.u32 %v119, 7
  %v121 = vsub.s32 0, %v120
  %v122 = vrot.slane %v117, %v121
  %v128 = vunpack.c.l.b16 %v111
  %v129 = vunpack.c.l.b16 %v112
  %v130 = vunpack.c.l.b16 %v113
  %v131 = vunpack.c.l.b16 %v114
  %v132 = vpack.c.b16 %v129, %v128
  %v133 = vpack.c.b16 %v131, %v130
  %vm136 = vcmask 261120
  %v138 = vsel %vm136, %v115, 0
  %v141 = vsel %vm136, %v116, 0
  %143 = vmatprep.subr.bf16.mxu0 0
  %144 = vmatpush1.bf16.msra.mxu0 %v132
  %145 = vmatprep.subr.bf16.mxu0 0
  %146 = vmatpush1.bf16.msra.mxu0 %v133
  %147 = vmatprep.subr.bf16.mxu0 0
  %148 = vmatpush1.bf16.msra.mxu0 0
  %149 = vmatprep.subr.bf16.mxu0 0
  %150 = vmatpush1.bf16.msra.mxu0 0
  %151 = vmatprep.subr.bf16.mxu0 0
  %152 = vmatpush1.bf16.msra.mxu0 0
  %153 = vmatprep.subr.bf16.mxu0 0
  %154 = vmatpush1.bf16.msra.mxu0 0
  %155 = vmatprep.subr.bf16.mxu0 0
  %156 = vmatpush1.bf16.msra.mxu0 0
  %157 = vmatprep.subr.bf16.mxu0 0
  %158 = vmatpush1.bf16.msra.mxu0 0
  %159 = vmatprep.subr.bf16.mxu0 0
  %160 = vmatpush1.bf16.msra.mxu0 0
  %161 = vmatprep.subr.bf16.mxu0 0
  %162 = vmatpush1.bf16.msra.mxu0 0
  %163 = vmatprep.subr.bf16.mxu0 0
  %164 = vmatpush1.bf16.msra.mxu0 0
  %165 = vmatprep.subr.bf16.mxu0 0
  %166 = vmatpush1.bf16.msra.mxu0 0
  %167 = vmatprep.subr.bf16.mxu0 0
  %168 = vmatpush1.bf16.msra.mxu0 0
  %169 = vmatprep.subr.bf16.mxu0 0
  %170 = vmatpush1.bf16.msra.mxu0 0
  %171 = vmatprep.subr.bf16.mxu0 0
  %172 = vmatpush1.bf16.msra.mxu0 0
  %173 = vmatprep.subr.bf16.mxu0 0
  %174 = vmatpush1.bf16.msra.mxu0 0
  %175 = vmatprep.mubr.bf16.mxu0 0
  %176 = vmatmul.mubr.bf16.gmra.mrb[0].mxu0 %v138
  %v177 = vpop.f32.mrb[0].mxu0
  %v178 = vadd.f32 %v122, %v177
  %v179 = vpop.f32.mrb[0].mxu0
  %v180 = vpop.f32.mrb[0].mxu0
  %v181 = vadd.f32 %v122, %v180
  %v182 = vpop.f32.mrb[0].mxu0
  %183 = vmatprep.mubr.bf16.mxu0 0
  %184 = vmatmul.mubr.bf16.gmra.mrb[0].mxu0 %v141
  %v185 = vpop.f32.mrb[0].mxu0
  %v186 = vadd.f32 %v122, %v185
  %v187 = vpop.f32.mrb[0].mxu0
  %v188 = vpop.f32.mrb[0].mxu0
  %v189 = vadd.f32 %v122, %v188
  %v190 = vpop.f32.mrb[0].mxu0
  %191 = vdwg.mxu0
  %v192 = vld [vmem:[%s5] sm:$0xf]
  %v193 = vld [vmem:[%s5 + $0x4] sm:$0xf]
  %v194 = vld [vmem:[%s5 + $0x8] sm:$0xf]
  %v195 = vld [vmem:[%s5 + $0xc] sm:$0xf]
  %v196 = vld [vmem:[%s5 + $0x10] sm:$0xf]
  %v197 = vld [vmem:[%s5 + $0x14] sm:$0xf]
  %v198 = vld [vmem:[%s5 + $0x18] sm:$0xf]
  %v199 = vld [vmem:[%s5 + $0x1c] sm:$0xf]
  %v200 = vld [vmem:[%s5 + $0x20] sm:$0xf]
  %v201 = vld [vmem:[%s5 + $0x24] sm:$0xf]
  %v202 = vld [vmem:[%s5 + $0x28] sm:$0xf]
  %v203 = vld [vmem:[%s5 + $0x2c] sm:$0xf]
  %v204 = vld [vmem:[%s5 + $0x30] sm:$0xf]
  %v205 = vld [vmem:[%s5 + $0x34] sm:$0xf]
  %v206 = vld [vmem:[%s5 + $0x38] sm:$0xf]
  %v207 = vld [vmem:[%s5 + $0x3c] sm:$0xf]
  %v208 = vpack.c.bf16 %v181, %v178
  %v209 = vpack.c.bf16 %v189, %v186
  %v210 = vld [vmem:[%s6] sm:$0x1]
  %v212 = vlaneseq
  %v213 = vshrl.u32 %v212, 7
  %v214 = vsub.s32 0, %v213
  %v215 = vrot.slane %v210, %v214
  %v233 = vunpack.c.l.b16 %v192
  %v234 = vunpack.c.l.b16 %v193
  %v235 = vunpack.c.l.b16 %v194
  %v236 = vunpack.c.l.b16 %v195
  %v237 = vunpack.c.l.b16 %v196
  %v238 = vunpack.c.l.b16 %v197
  %v239 = vunpack.c.l.b16 %v198
  %v240 = vunpack.c.l.b16 %v199
  %v241 = vunpack.c.l.b16 %v200
  %v242 = vunpack.c.l.b16 %v201
  %v243 = vunpack.c.l.b16 %v202
  %v244 = vunpack.c.l.b16 %v203
  %v245 = vunpack.c.l.b16 %v204
  %v246 = vunpack.c.l.b16 %v205
  %v247 = vunpack.c.l.b16 %v206
  %v248 = vunpack.c.l.b16 %v207
  %v249 = vpack.c.b16 %v234, %v233
  %v250 = vpack.c.b16 %v236, %v235
  %v251 = vpack.c.b16 %v238, %v237
  %v252 = vpack.c.b16 %v240, %v239
  %v253 = vpack.c.b16 %v242, %v241
  %v254 = vpack.c.b16 %v244, %v243
  %v255 = vpack.c.b16 %v246, %v245
  %v256 = vpack.c.b16 %v248, %v247
  %265 = vmatprep.subr.bf16.mxu0 0
  %266 = vmatpush1.bf16.msra.mxu0 %v249
  %267 = vmatprep.subr.bf16.mxu0 0
  %268 = vmatpush1.bf16.msra.mxu0 %v250
  %269 = vmatprep.subr.bf16.mxu0 0
  %270 = vmatpush1.bf16.msra.mxu0 %v251
  %271 = vmatprep.subr.bf16.mxu0 0
  %272 = vmatpush1.bf16.msra.mxu0 %v252
  %273 = vmatprep.subr.bf16.mxu0 0
  %274 = vmatpush1.bf16.msra.mxu0 %v253
  %275 = vmatprep.subr.bf16.mxu0 0
  %276 = vmatpush1.bf16.msra.mxu0 %v254
  %277 = vmatprep.subr.bf16.mxu0 0
  %278 = vmatpush1.bf16.msra.mxu0 %v255
  %279 = vmatprep.subr.bf16.mxu0 0
  %280 = vmatpush1.bf16.msra.mxu0 %v256
  %281 = vmatprep.subr.bf16.mxu0 0
  %282 = vmatpush1.bf16.msra.mxu0 0
  %283 = vmatprep.subr.bf16.mxu0 0
  %284 = vmatpush1.bf16.msra.mxu0 0
  %285 = vmatprep.subr.bf16.mxu0 0
  %286 = vmatpush1.bf16.msra.mxu0 0
  %287 = vmatprep.subr.bf16.mxu0 0
  %288 = vmatpush1.bf16.msra.mxu0 0
  %289 = vmatprep.subr.bf16.mxu0 0
  %290 = vmatpush1.bf16.msra.mxu0 0
  %291 = vmatprep.subr.bf16.mxu0 0
  %292 = vmatpush1.bf16.msra.mxu0 0
  %293 = vmatprep.subr.bf16.mxu0 0
  %294 = vmatpush1.bf16.msra.mxu0 0
  %295 = vmatprep.subr.bf16.mxu0 0
  %296 = vmatpush1.bf16.msra.mxu0 0
  %297 = vmatprep.mubr.bf16.mxu0 0
  %298 = vmatmul.mubr.bf16.gmra.mrb[0].mxu0 %v208
  %v299 = vpop.f32.mrb[0].mxu0
  %v300 = vadd.f32 %v215, %v299
  %v301 = vpop.f32.mrb[0].mxu0
  %v302 = vpop.f32.mrb[0].mxu0
  %v303 = vadd.f32 %v215, %v302
  %v304 = vpop.f32.mrb[0].mxu0
  %305 = vmatprep.mubr.bf16.mxu0 0
  %306 = vmatmul.mubr.bf16.gmra.mrb[0].mxu0 %v209
  %v307 = vpop.f32.mrb[0].mxu0
  %v308 = vadd.f32 %v215, %v307
  %v309 = vpop.f32.mrb[0].mxu0
  %v310 = vpop.f32.mrb[0].mxu0
  %v311 = vadd.f32 %v215, %v310
  %v312 = vpop.f32.mrb[0].mxu0
  %313 = vdwg.mxu0
  %v314 = vmax.f32 %v300, 0.0
  %v315 = vmax.f32 %v303, 0.0
  %v316 = vmax.f32 %v308, 0.0
  %v317 = vmax.f32 %v311, 0.0
  %v318 = vld [vmem:[%s7] sm:$0xf]
  %v319 = vld [vmem:[%s7 + $0x4] sm:$0xf]
  %v320 = vld [vmem:[%s7 + $0x8] sm:$0xf]
  %v321 = vld [vmem:[%s7 + $0xc] sm:$0xf]
  %v322 = vld [vmem:[%s7 + $0x10] sm:$0xf]
  %v323 = vld [vmem:[%s7 + $0x14] sm:$0xf]
  %v324 = vld [vmem:[%s7 + $0x18] sm:$0xf]
  %v325 = vld [vmem:[%s7 + $0x1c] sm:$0xf]
  %v326 = vld [vmem:[%s7 + $0x20] sm:$0xf]
  %v327 = vld [vmem:[%s7 + $0x24] sm:$0xf]
  %v328 = vld [vmem:[%s7 + $0x28] sm:$0xf]
  %v329 = vld [vmem:[%s7 + $0x2c] sm:$0xf]
  %v330 = vld [vmem:[%s7 + $0x30] sm:$0xf]
  %v331 = vld [vmem:[%s7 + $0x34] sm:$0xf]
  %v332 = vld [vmem:[%s7 + $0x38] sm:$0xf]
  %v333 = vld [vmem:[%s7 + $0x3c] sm:$0xf]
  %v334 = vpack.c.bf16 %v315, %v314
  %v335 = vpack.c.bf16 %v317, %v316
  %v336 = vld [vmem:[%s8] sm:$0x1]
  %v338 = vlaneseq
  %v339 = vshrl.u32 %v338, 7
  %v340 = vsub.s32 0, %v339
  %v341 = vrot.slane %v336, %v340
  %v359 = vunpack.c.l.b16 %v318
  %v360 = vunpack.c.l.b16 %v319
  %v361 = vunpack.c.l.b16 %v320
  %v362 = vunpack.c.l.b16 %v321
  %v363 = vunpack.c.l.b16 %v322
  %v364 = vunpack.c.l.b16 %v323
  %v365 = vunpack.c.l.b16 %v324
  %v366 = vunpack.c.l.b16 %v325
  %v367 = vunpack.c.l.b16 %v326
  %v368 = vunpack.c.l.b16 %v327
  %v369 = vunpack.c.l.b16 %v328
  %v370 = vunpack.c.l.b16 %v329
  %v371 = vunpack.c.l.b16 %v330
  %v372 = vunpack.c.l.b16 %v331
  %v373 = vunpack.c.l.b16 %v332
  %v374 = vunpack.c.l.b16 %v333
  %v375 = vpack.c.b16 %v360, %v359
  %v376 = vpack.c.b16 %v362, %v361
  %v377 = vpack.c.b16 %v364, %v363
  %v378 = vpack.c.b16 %v366, %v365
  %v379 = vpack.c.b16 %v368, %v367
  %v380 = vpack.c.b16 %v370, %v369
  %v381 = vpack.c.b16 %v372, %v371
  %v382 = vpack.c.b16 %v374, %v373
  %391 = vmatprep.subr.bf16.mxu0 0
  %392 = vmatpush1.bf16.msra.mxu0 %v375
  %393 = vmatprep.subr.bf16.mxu0 0
  %394 = vmatpush1.bf16.msra.mxu0 %v376
  %395 = vmatprep.subr.bf16.mxu0 0
  %396 = vmatpush1.bf16.msra.mxu0 %v377
  %397 = vmatprep.subr.bf16.mxu0 0
  %398 = vmatpush1.bf16.msra.mxu0 %v378
  %399 = vmatprep.subr.bf16.mxu0 0
  %400 = vmatpush1.bf16.msra.mxu0 %v379
  %401 = vmatprep.subr.bf16.mxu0 0
  %402 = vmatpush1.bf16.msra.mxu0 %v380
  %403 = vmatprep.subr.bf16.mxu0 0
  %404 = vmatpush1.bf16.msra.mxu0 %v381
  %405 = vmatprep.subr.bf16.mxu0 0
  %406 = vmatpush1.bf16.msra.mxu0 %v382
  %407 = vmatprep.subr.bf16.mxu0 0
  %408 = vmatpush1.bf16.msra.mxu0 0
  %409 = vmatprep.subr.bf16.mxu0 0
  %410 = vmatpush1.bf16.msra.mxu0 0
  %411 = vmatprep.subr.bf16.mxu0 0
  %412 = vmatpush1.bf16.msra.mxu0 0
  %413 = vmatprep.subr.bf16.mxu0 0
  %414 = vmatpush1.bf16.msra.mxu0 0
  %415 = vmatprep.subr.bf16.mxu0 0
  %416 = vmatpush1.bf16.msra.mxu0 0
  %417 = vmatprep.subr.bf16.mxu0 0
  %418 = vmatpush1.bf16.msra.mxu0 0
  %419 = vmatprep.subr.bf16.mxu0 0
  %420 = vmatpush1.bf16.msra.mxu0 0
  %421 = vmatprep.subr.bf16.mxu0 0
  %422 = vmatpush1.bf16.msra.mxu0 0
  %423 = vmatprep.mubr.bf16.mxu0 0
  %424 = vmatmul.mubr.bf16.gmra.mrb[0].mxu0 %v334
  %v425 = vpop.f32.mrb[0].mxu0
  %v426 = vadd.f32 %v341, %v425
  %v427 = vpop.f32.mrb[0].mxu0
  %v428 = vpop.f32.mrb[0].mxu0
  %v429 = vadd.f32 %v341, %v428
  %v430 = vpop.f32.mrb[0].mxu0
  %431 = vmatprep.mubr.bf16.mxu0 0
  %432 = vmatmul.mubr.bf16.gmra.mrb[0].mxu0 %v335
  %v433 = vpop.f32.mrb[0].mxu0
  %v434 = vadd.f32 %v341, %v433
  %v435 = vpop.f32.mrb[0].mxu0
  %v436 = vpop.f32.mrb[0].mxu0
  %v437 = vadd.f32 %v341, %v436
  %v438 = vpop.f32.mrb[0].mxu0
  %439 = vdwg.mxu0
  %v440 = vadd.f32 %v426, %v178
  %v441 = vadd.f32 %v429, %v181
  %v442 = vadd.f32 %v434, %v186
  %v443 = vadd.f32 %v437, %v189
  %444 = vst [vmem:[%s9] sm:$0xff] %v440
  %445 = vst [vmem:[%s9 + $0x8] sm:$0xff] %v441
  %446 = vst [vmem:[%s9 + $0x10] sm:$0xff] %v442
  %447 = vst [vmem:[%s9 + $0x18] sm:$0xff] %v443
  // Predicated region
  $region38: #{unet_forward.6} parent=0 // pred_check
    _
  $region39: #{unet_forward.6} parent=0 // pred_check_branch
    %449 = sbr.rel (0) target = $region41
  $region40: #{unet_forward.6} parent=0 // pred_region
    _
  $region41: #{unet_forward.6} parent=0 // pred_fallthru
    _
  // Predicated region
  $region42: #{unet_forward.6} parent=0 // pred_check
    _
  $region43: #{unet_forward.6} parent=0 // pred_check_branch
    %451 = sbr.rel (0) target = $region45
  $region44: #{unet_forward.6} parent=0 // pred_region
    _
  $region45: #{unet_forward.6} parent=0 // pred_fallthru
    _

// kernel: unet_forward.7
$region0: #{unet_forward.7}
  #allocation0 [shape = 'u32[]', space=smem, size = 0x4, offset = 0x4, fixed_abs, tag = 'smem constant byte address 0x4 - core index']
  #allocation1 [shape = 'u32[144,128]{1,0:T(1,128)}', space=vmem, size = 0x12000, scoped, tag = 'internal scratch']
  %s0 = inlined_call_operand.vmem [shape: f32[8,131], index: 0, kind: input, shape index: {}]
  %s1 = inlined_call_operand.vmem [shape: bf16[131,128], index: 1, kind: input, shape index: {}]
  %s2 = inlined_call_operand.vmem [shape: f32[1,128], index: 2, kind: input, shape index: {}]
  %s3 = inlined_call_operand.vmem [shape: bf16[128,256], index: 3, kind: input, shape index: {}]
  %s4 = inlined_call_operand.vmem [shape: f32[1,256], index: 4, kind: input, shape index: {}]
  %s5 = inlined_call_operand.vmem [shape: bf16[256,128], index: 5, kind: input, shape index: {}]
  %s6 = inlined_call_operand.vmem [shape: f32[1,128], index: 6, kind: input, shape index: {}]
  %s7 = inlined_call_operand.vmem [shape: bf16[128,256], index: 7, kind: input, shape index: {}]
  %s8 = inlined_call_operand.vmem [shape: f32[1,256], index: 8, kind: input, shape index: {}]
  %s9 = inlined_call_operand.vmem [shape: f32[8,256], index: 9, kind: output, shape index: {}]
  %s10 = sld [smem:[#allocation0]]
  $region46: #{unet_forward.7} parent=0
    _
  %s12 = ssub.s32 1, %s10
  %s13 = scalar_select 0, %s12, %s10
  // Predicated region
  $region2: #{unet_forward.7} parent=0 // pred_check
    _
  $region3: #{unet_forward.7} parent=0 // pred_check_branch
    %15 = sbr.rel (0) target = $region5
  $region4: #{unet_forward.7} parent=0 // pred_region
    _
  $region5: #{unet_forward.7} parent=0 // pred_fallthru
    _
  // Predicated region
  $region6: #{unet_forward.7} parent=0 // pred_check
    _
  $region7: #{unet_forward.7} parent=0 // pred_check_branch
    %17 = sbr.rel (0) target = $region9
  $region8: #{unet_forward.7} parent=0 // pred_region
    _
  $region9: #{unet_forward.7} parent=0 // pred_fallthru
    _
  // Predicated region
  $region10: #{unet_forward.7} parent=0 // pred_check
    _
  $region11: #{unet_forward.7} parent=0 // pred_check_branch
    %19 = sbr.rel (0) target = $region13
  $region12: #{unet_forward.7} parent=0 // pred_region
    _
  $region13: #{unet_forward.7} parent=0 // pred_fallthru
    _
  // Predicated region
  $region14: #{unet_forward.7} parent=0 // pred_check
    _
  $region15: #{unet_forward.7} parent=0 // pred_check_branch
    %21 = sbr.rel (0) target = $region17
  $region16: #{unet_forward.7} parent=0 // pred_region
    _
  $region17: #{unet_forward.7} parent=0 // pred_fallthru
    _
  // Predicated region
  $region18: #{unet_forward.7} parent=0 // pred_check
    _
  $region19: #{unet_forward.7} parent=0 // pred_check_branch
    %23 = sbr.rel (0) target = $region21
  $region20: #{unet_forward.7} parent=0 // pred_region
    _
  $region21: #{unet_forward.7} parent=0 // pred_fallthru
    _
  // Predicated region
  $region22: #{unet_forward.7} parent=0 // pred_check
    _
  $region23: #{unet_forward.7} parent=0 // pred_check_branch
    %25 = sbr.rel (0) target = $region25
  $region24: #{unet_forward.7} parent=0 // pred_region
    _
  $region25: #{unet_forward.7} parent=0 // pred_fallthru
    _
  // Predicated region
  $region26: #{unet_forward.7} parent=0 // pred_check
    _
  $region27: #{unet_forward.7} parent=0 // pred_check_branch
    %27 = sbr.rel (0) target = $region29
  $region28: #{unet_forward.7} parent=0 // pred_region
    _
  $region29: #{unet_forward.7} parent=0 // pred_fallthru
    _
  // Predicated region
  $region30: #{unet_forward.7} parent=0 // pred_check
    _
  $region31: #{unet_forward.7} parent=0 // pred_check_branch
    %29 = sbr.rel (0) target = $region33
  $region32: #{unet_forward.7} parent=0 // pred_region
    _
  $region33: #{unet_forward.7} parent=0 // pred_fallthru
    _
  // Predicated region
  $region34: #{unet_forward.7} parent=0 // pred_check
    _
  $region35: #{unet_forward.7} parent=0 // pred_check_branch
    %31 = sbr.rel (0) target = $region37
  $region36: #{unet_forward.7} parent=0 // pred_region
    _
  $region37: #{unet_forward.7} parent=0 // pred_fallthru
    _
  %v33 = vld [vmem:[%s0] sm:$0xff]
  %v34 = vld [vmem:[%s0 + $0x8] sm:$0xff]
  %v35 = vld [vmem:[%s1] sm:$0xf]
  %v36 = vld [vmem:[%s1 + $0x4] sm:$0xf]
  %v37 = vld [vmem:[%s1 + $0x8] sm:$0xf]
  %v38 = vld [vmem:[%s1 + $0xc] sm:$0xf]
  %v39 = vld [vmem:[%s1 + $0x10] sm:$0xf]
  %v40 = vld [vmem:[%s1 + $0x14] sm:$0xf]
  %v41 = vld [vmem:[%s1 + $0x18] sm:$0xf]
  %v42 = vld [vmem:[%s1 + $0x1c] sm:$0xf]
  %v43 = vld [vmem:[%s1 + $0x20] sm:$0xf]
  %v44 = vld [vmem:[%s1 + $0x24] sm:$0xf]
  %v45 = vld [vmem:[%s1 + $0x28] sm:$0xf]
  %v46 = vld [vmem:[%s1 + $0x2c] sm:$0xf]
  %v47 = vld [vmem:[%s1 + $0x30] sm:$0xf]
  %v48 = vld [vmem:[%s1 + $0x34] sm:$0xf]
  %v49 = vld [vmem:[%s1 + $0x38] sm:$0xf]
  %v50 = vld [vmem:[%s1 + $0x3c] sm:$0xf]
  %v51 = vld [vmem:[%s1 + $0x40] sm:$0x3]
  %v52 = vpack.c.bf16 %v33, %v33
  %v53 = vpack.c.bf16 %v34, %v34
  %v54 = vld [vmem:[%s2] sm:$0x1]
  %v56 = vlaneseq
  %v57 = vshrl.u32 %v56, 7
  %v58 = vsub.s32 0, %v57
  %v59 = vrot.slane %v54, %v58
  %v78 = vunpack.c.l.b16 %v35
  %v79 = vunpack.c.l.b16 %v36
  %v80 = vunpack.c.l.b16 %v37
  %v81 = vunpack.c.l.b16 %v38
  %v82 = vunpack.c.l.b16 %v39
  %v83 = vunpack.c.l.b16 %v40
  %v84 = vunpack.c.l.b16 %v41
  %v85 = vunpack.c.l.b16 %v42
  %v86 = vunpack.c.l.b16 %v43
  %v87 = vunpack.c.l.b16 %v44
  %v88 = vunpack.c.l.b16 %v45
  %v89 = vunpack.c.l.b16 %v46
  %v90 = vunpack.c.l.b16 %v47
  %v91 = vunpack.c.l.b16 %v48
  %v92 = vunpack.c.l.b16 %v49
  %v93 = vunpack.c.l.b16 %v50
  %v94 = vunpack.c.l.b16 %v51
  %v95 = vpack.c.b16 %v79, %v78
  %v96 = vpack.c.b16 %v81, %v80
  %v97 = vpack.c.b16 %v83, %v82
  %v98 = vpack.c.b16 %v85, %v84
  %v99 = vpack.c.b16 %v87, %v86
  %v100 = vpack.c.b16 %v89, %v88
  %v101 = vpack.c.b16 %v91, %v90
  %v102 = vpack.c.b16 %v93, %v92
  %v103 = vpack.c.b16 %v94, %v94
  %vm112 = vcmask 23552
  %v114 = vsel %vm112, %v53, 0
  %vm116 = vcmask 1040384
  %vm117 = vcmask 1041408
  %v118 = vsel %vm116, 4294967295, 65535
  %v119 = vsel %vm117, %v118, 0
  %v121 = vand.u32 %v103, %v119
  %123 = vmatprep.subr.bf16.mxu0 0
  %124 = vmatpush1.bf16.msra.mxu0 %v95
  %125 = vmatprep.subr.bf16.mxu0 0
  %126 = vmatpush1.bf16.msra.mxu0 %v96
  %127 = vmatprep.subr.bf16.mxu0 0
  %128 = vmatpush1.bf16.msra.mxu0 %v97
  %129 = vmatprep.subr.bf16.mxu0 0
  %130 = vmatpush1.bf16.msra.mxu0 %v98
  %131 = vmatprep.subr.bf16.mxu0 0
  %132 = vmatpush1.bf16.msra.mxu0 %v99
  %133 = vmatprep.subr.bf16.mxu0 0
  %134 = vmatpush1.bf16.msra.mxu0 %v100
  %135 = vmatprep.subr.bf16.mxu0 0
  %136 = vmatpush1.bf16.msra.mxu0 %v101
  %137 = vmatprep.subr.bf16.mxu0 0
  %138 = vmatpush1.bf16.msra.mxu0 %v102
  %139 = vmatprep.subr.bf16.mxu0 0
  %140 = vmatpush1.bf16.msra.mxu0 %v121
  %141 = vmatprep.subr.bf16.mxu0 0
  %142 = vmatpush1.bf16.msra.mxu0 0
  %143 = vmatprep.subr.bf16.mxu0 0
  %144 = vmatpush1.bf16.msra.mxu0 0
  %145 = vmatprep.subr.bf16.mxu0 0
  %146 = vmatpush1.bf16.msra.mxu0 0
  %147 = vmatprep.subr.bf16.mxu0 0
  %148 = vmatpush1.bf16.msra.mxu0 0
  %149 = vmatprep.subr.bf16.mxu0 0
  %150 = vmatpush1.bf16.msra.mxu0 0
  %151 = vmatprep.subr.bf16.mxu0 0
  %152 = vmatpush1.bf16.msra.mxu0 0
  %153 = vmatprep.subr.bf16.mxu0 0
  %154 = vmatpush1.bf16.msra.mxu0 0
  %155 = vmatprep.mubr.bf16.mxu0 %v114
  %156 = vmatmul.mubr.bf16.gmra.mrb[0].mxu0 %v52
  %v157 = vpop.f32.mrb[0].mxu0
  %v158 = vadd.f32 %v59, %v157
  %v159 = vpop.f32.mrb[0].mxu0
  %v160 = vpop.f32.mrb[0].mxu0
  %v161 = vpop.f32.mrb[0].mxu0
  %162 = vdwg.mxu0
  %v163 = vmax.f32 %v158, 0.0
  %v164 = vld [vmem:[%s3] sm:$0xff]
  %v165 = vld [vmem:[%s3 + $0x8] sm:$0xff]
  %v166 = vld [vmem:[%s3 + $0x10] sm:$0xff]
  %v167 = vld [vmem:[%s3 + $0x18] sm:$0xff]
  %v168 = vld [vmem:[%s3 + $0x20] sm:$0xff]
  %v169 = vld [vmem:[%s3 + $0x28] sm:$0xff]
  %v170 = vld [vmem:[%s3 + $0x30] sm:$0xff]
  %v171 = vld [vmem:[%s3 + $0x38] sm:$0xff]
  %v172 = vld [vmem:[%s3 + $0x40] sm:$0xff]
  %v173 = vld [vmem:[%s3 + $0x48] sm:$0xff]
  %v174 = vld [vmem:[%s3 + $0x50] sm:$0xff]
  %v175 = vld [vmem:[%s3 + $0x58] sm:$0xff]
  %v176 = vld [vmem:[%s3 + $0x60] sm:$0xff]
  %v177 = vld [vmem:[%s3 + $0x68] sm:$0xff]
  %v178 = vld [vmem:[%s3 + $0x70] sm:$0xff]
  %v179 = vld [vmem:[%s3 + $0x78] sm:$0xff]
  %v180 = vpack.c.bf16 %v163, %v163
  %v181 = vld [vmem:[%s4] sm:$0x3]
  %v183 = vlaneseq
  %v184 = vshrl.u32 %v183, 7
  %v185 = vsub.s32 0, %v184
  %v186 = vrot.slane %v181, %v185
  %v187 = vlaneseq
  %v188 = vshrl.u32 %v187, 7
  %v189 = vsub.s32 1, %v188
  %v190 = vrot.slane %v181, %v189
  %v209 = vunpack.c.l.b16 %v164
  %v210 = vunpack.c.h.b16 %v164
  %v211 = vunpack.c.l.b16 %v165
  %v212 = vunpack.c.h.b16 %v165
  %v213 = vunpack.c.l.b16 %v166
  %v214 = vunpack.c.h.b16 %v166
  %v215 = vunpack.c.l.b16 %v167
  %v216 = vunpack.c.h.b16 %v167
  %v217 = vunpack.c.l.b16 %v168
  %v218 = vunpack.c.h.b16 %v168
  %v219 = vunpack.c.l.b16 %v169
  %v220 = vunpack.c.h.b16 %v169
  %v221 = vunpack.c.l.b16 %v170
  %v222 = vunpack.c.h.b16 %v170
  %v223 = vunpack.c.l.b16 %v171
  %v224 = vunpack.c.h.b16 %v171
  %v225 = vunpack.c.l.b16 %v172
  %v226 = vunpack.c.h.b16 %v172
  %v227 = vunpack.c.l.b16 %v173
  %v228 = vunpack.c.h.b16 %v173
  %v229 = vunpack.c.l.b16 %v174
  %v230 = vunpack.c.h.b16 %v174
  %v231 = vunpack.c.l.b16 %v175
  %v232 = vunpack.c.h.b16 %v175
  %v233 = vunpack.c.l.b16 %v176
  %v234 = vunpack.c.h.b16 %v176
  %v235 = vunpack.c.l.b16 %v177
  %v236 = vunpack.c.h.b16 %v177
  %v237 = vunpack.c.l.b16 %v178
  %v238 = vunpack.c.h.b16 %v178
  %v239 = vunpack.c.l.b16 %v179
  %v240 = vunpack.c.h.b16 %v179
  %v241 = vpack.c.b16 %v211, %v209
  %v242 = vpack.c.b16 %v212, %v210
  %v243 = vpack.c.b16 %v215, %v213
  %v244 = vpack.c.b16 %v216, %v214
  %v245 = vpack.c.b16 %v219, %v217
  %v246 = vpack.c.b16 %v220, %v218
  %v247 = vpack.c.b16 %v223, %v221
  %v248 = vpack.c.b16 %v224, %v222
  %v249 = vpack.c.b16 %v227, %v225
  %v250 = vpack.c.b16 %v228, %v226
  %v251 = vpack.c.b16 %v231, %v229
  %v252 = vpack.c.b16 %v232, %v230
  %v253 = vpack.c.b16 %v235, %v233
  %v254 = vpack.c.b16 %v236, %v234
  %v255 = vpack.c.b16 %v239, %v237
  %v256 = vpack.c.b16 %v240, %v238
  %273 = vmatprep.subr.bf16.mxu0 %v242
  %274 = vmatpush1.bf16.msra.mxu0 %v241
  %275 = vmatprep.subr.bf16.mxu0 %v244
  %276 = vmatpush1.bf16.msra.mxu0 %v243
  %277 = vmatprep.subr.bf16.mxu0 %v246
  %278 = vmatpush1.bf16.msra.mxu0 %v245
  %279 = vmatprep.subr.bf16.mxu0 %v248
  %280 = vmatpush1.bf16.msra.mxu0 %v247
  %281 = vmatprep.subr.bf16.mxu0 %v250
  %282 = vmatpush1.bf16.msra.mxu0 %v249
  %283 = vmatprep.subr.bf16.mxu0 %v252
  %284 = vmatpush1.bf16.msra.mxu0 %v251
  %285 = vmatprep.subr.bf16.mxu0 %v254
  %286 = vmatpush1.bf16.msra.mxu0 %v253
  %287 = vmatprep.subr.bf16.mxu0 %v256
  %288 = vmatpush1.bf16.msra.mxu0 %v255
  %289 = vmatprep.subr.bf16.mxu0 0
  %290 = vmatpush1.bf16.msra.mxu0 0
  %291 = vmatprep.subr.bf16.mxu0 0
  %292 = vmatpush1.bf16.msra.mxu0 0
  %293 = vmatprep.subr.bf16.mxu0 0
  %294 = vmatpush1.bf16.msra.mxu0 0
  %295 = vmatprep.subr.bf16.mxu0 0
  %296 = vmatpush1.bf16.msra.mxu0 0
  %297 = vmatprep.subr.bf16.mxu0 0
  %298 = vmatpush1.bf16.msra.mxu0 0
  %299 = vmatprep.subr.bf16.mxu0 0
  %300 = vmatpush1.bf16.msra.mxu0 0
  %301 = vmatprep.subr.bf16.mxu0 0
  %302 = vmatpush1.bf16.msra.mxu0 0
  %303 = vmatprep.subr.bf16.mxu0 0
  %304 = vmatpush1.bf16.msra.mxu0 0
  %305 = vmatprep.mubr.bf16.mxu0 0
  %306 = vmatmul.mubr.bf16.gmra.mrb[0].mxu0 %v180
  %v307 = vpop.f32.mrb[0].mxu0
  %v308 = vadd.f32 %v186, %v307
  %v309 = vpop.f32.mrb[0].mxu0
  %v310 = vadd.f32 %v190, %v309
  %v311 = vpop.f32.mrb[0].mxu0
  %v312 = vpop.f32.mrb[0].mxu0
  %313 = vdwg.mxu0
  %v314 = vld [vmem:[%s5] sm:$0xf]
  %v315 = vld [vmem:[%s5 + $0x4] sm:$0xf]
  %v316 = vld [vmem:[%s5 + $0x8] sm:$0xf]
  %v317 = vld [vmem:[%s5 + $0xc] sm:$0xf]
  %v318 = vld [vmem:[%s5 + $0x10] sm:$0xf]
  %v319 = vld [vmem:[%s5 + $0x14] sm:$0xf]
  %v320 = vld [vmem:[%s5 + $0x18] sm:$0xf]
  %v321 = vld [vmem:[%s5 + $0x1c] sm:$0xf]
  %v322 = vld [vmem:[%s5 + $0x20] sm:$0xf]
  %v323 = vld [vmem:[%s5 + $0x24] sm:$0xf]
  %v324 = vld [vmem:[%s5 + $0x28] sm:$0xf]
  %v325 = vld [vmem:[%s5 + $0x2c] sm:$0xf]
  %v326 = vld [vmem:[%s5 + $0x30] sm:$0xf]
  %v327 = vld [vmem:[%s5 + $0x34] sm:$0xf]
  %v328 = vld [vmem:[%s5 + $0x38] sm:$0xf]
  %v329 = vld [vmem:[%s5 + $0x3c] sm:$0xf]
  %v330 = vld [vmem:[%s5 + $0x40] sm:$0xf]
  %v331 = vld [vmem:[%s5 + $0x44] sm:$0xf]
  %v332 = vld [vmem:[%s5 + $0x48] sm:$0xf]
  %v333 = vld [vmem:[%s5 + $0x4c] sm:$0xf]
  %v334 = vld [vmem:[%s5 + $0x50] sm:$0xf]
  %v335 = vld [vmem:[%s5 + $0x54] sm:$0xf]
  %v336 = vld [vmem:[%s5 + $0x58] sm:$0xf]
  %v337 = vld [vmem:[%s5 + $0x5c] sm:$0xf]
  %v338 = vld [vmem:[%s5 + $0x60] sm:$0xf]
  %v339 = vld [vmem:[%s5 + $0x64] sm:$0xf]
  %v340 = vld [vmem:[%s5 + $0x68] sm:$0xf]
  %v341 = vld [vmem:[%s5 + $0x6c] sm:$0xf]
  %v342 = vld [vmem:[%s5 + $0x70] sm:$0xf]
  %v343 = vld [vmem:[%s5 + $0x74] sm:$0xf]
  %v344 = vld [vmem:[%s5 + $0x78] sm:$0xf]
  %v345 = vld [vmem:[%s5 + $0x7c] sm:$0xf]
  %v346 = vpack.c.bf16 %v308, %v308
  %v347 = vpack.c.bf16 %v310, %v310
  %v348 = vld [vmem:[%s6] sm:$0x1]
  %v350 = vlaneseq
  %v351 = vshrl.u32 %v350, 7
  %v352 = vsub.s32 0, %v351
  %v353 = vrot.slane %v348, %v352
  %v387 = vunpack.c.l.b16 %v314
  %v388 = vunpack.c.l.b16 %v315
  %v389 = vunpack.c.l.b16 %v316
  %v390 = vunpack.c.l.b16 %v317
  %v391 = vunpack.c.l.b16 %v318
  %v392 = vunpack.c.l.b16 %v319
  %v393 = vunpack.c.l.b16 %v320
  %v394 = vunpack.c.l.b16 %v321
  %v395 = vunpack.c.l.b16 %v322
  %v396 = vunpack.c.l.b16 %v323
  %v397 = vunpack.c.l.b16 %v324
  %v398 = vunpack.c.l.b16 %v325
  %v399 = vunpack.c.l.b16 %v326
  %v400 = vunpack.c.l.b16 %v327
  %v401 = vunpack.c.l.b16 %v328
  %v402 = vunpack.c.l.b16 %v329
  %v403 = vunpack.c.l.b16 %v330
  %v404 = vunpack.c.l.b16 %v331
  %v405 = vunpack.c.l.b16 %v332
  %v406 = vunpack.c.l.b16 %v333
  %v407 = vunpack.c.l.b16 %v334
  %v408 = vunpack.c.l.b16 %v335
  %v409 = vunpack.c.l.b16 %v336
  %v410 = vunpack.c.l.b16 %v337
  %v411 = vunpack.c.l.b16 %v338
  %v412 = vunpack.c.l.b16 %v339
  %v413 = vunpack.c.l.b16 %v340
  %v414 = vunpack.c.l.b16 %v341
  %v415 = vunpack.c.l.b16 %v342
  %v416 = vunpack.c.l.b16 %v343
  %v417 = vunpack.c.l.b16 %v344
  %v418 = vunpack.c.l.b16 %v345
  %v419 = vpack.c.b16 %v388, %v387
  %v420 = vpack.c.b16 %v390, %v389
  %v421 = vpack.c.b16 %v392, %v391
  %v422 = vpack.c.b16 %v394, %v393
  %v423 = vpack.c.b16 %v396, %v395
  %v424 = vpack.c.b16 %v398, %v397
  %v425 = vpack.c.b16 %v400, %v399
  %v426 = vpack.c.b16 %v402, %v401
  %v427 = vpack.c.b16 %v404, %v403
  %v428 = vpack.c.b16 %v406, %v405
  %v429 = vpack.c.b16 %v408, %v407
  %v430 = vpack.c.b16 %v410, %v409
  %v431 = vpack.c.b16 %v412, %v411
  %v432 = vpack.c.b16 %v414, %v413
  %v433 = vpack.c.b16 %v416, %v415
  %v434 = vpack.c.b16 %v418, %v417
  %451 = vmatprep.subr.bf16.mxu0 0
  %452 = vmatpush1.bf16.msra.mxu0 %v419
  %453 = vmatprep.subr.bf16.mxu0 0
  %454 = vmatpush1.bf16.msra.mxu0 %v420
  %455 = vmatprep.subr.bf16.mxu0 0
  %456 = vmatpush1.bf16.msra.mxu0 %v421
  %457 = vmatprep.subr.bf16.mxu0 0
  %458 = vmatpush1.bf16.msra.mxu0 %v422
  %459 = vmatprep.subr.bf16.mxu0 0
  %460 = vmatpush1.bf16.msra.mxu0 %v423
  %461 = vmatprep.subr.bf16.mxu0 0
  %462 = vmatpush1.bf16.msra.mxu0 %v424
  %463 = vmatprep.subr.bf16.mxu0 0
  %464 = vmatpush1.bf16.msra.mxu0 %v425
  %465 = vmatprep.subr.bf16.mxu0 0
  %466 = vmatpush1.bf16.msra.mxu0 %v426
  %467 = vmatprep.subr.bf16.mxu0 0
  %468 = vmatpush1.bf16.msra.mxu0 %v427
  %469 = vmatprep.subr.bf16.mxu0 0
  %470 = vmatpush1.bf16.msra.mxu0 %v428
  %471 = vmatprep.subr.bf16.mxu0 0
  %472 = vmatpush1.bf16.msra.mxu0 %v429
  %473 = vmatprep.subr.bf16.mxu0 0
  %474 = vmatpush1.bf16.msra.mxu0 %v430
  %475 = vmatprep.subr.bf16.mxu0 0
  %476 = vmatpush1.bf16.msra.mxu0 %v431
  %477 = vmatprep.subr.bf16.mxu0 0
  %478 = vmatpush1.bf16.msra.mxu0 %v432
  %479 = vmatprep.subr.bf16.mxu0 0
  %480 = vmatpush1.bf16.msra.mxu0 %v433
  %481 = vmatprep.subr.bf16.mxu0 0
  %482 = vmatpush1.bf16.msra.mxu0 %v434
  %483 = vmatprep.mubr.bf16.mxu0 %v347
  %484 = vmatmul.mubr.bf16.gmra.mrb[0].mxu0 %v346
  %v485 = vpop.f32.mrb[0].mxu0
  %v486 = vadd.f32 %v353, %v485
  %v487 = vpop.f32.mrb[0].mxu0
  %v488 = vpop.f32.mrb[0].mxu0
  %v489 = vpop.f32.mrb[0].mxu0
  %490 = vdwg.mxu0
  %v491 = vmax.f32 %v486, 0.0
  %v492 = vld [vmem:[%s7] sm:$0xff]
  %v493 = vld [vmem:[%s7 + $0x8] sm:$0xff]
  %v494 = vld [vmem:[%s7 + $0x10] sm:$0xff]
  %v495 = vld [vmem:[%s7 + $0x18] sm:$0xff]
  %v496 = vld [vmem:[%s7 + $0x20] sm:$0xff]
  %v497 = vld [vmem:[%s7 + $0x28] sm:$0xff]
  %v498 = vld [vmem:[%s7 + $0x30] sm:$0xff]
  %v499 = vld [vmem:[%s7 + $0x38] sm:$0xff]
  %v500 = vld [vmem:[%s7 + $0x40] sm:$0xff]
  %v501 = vld [vmem:[%s7 + $0x48] sm:$0xff]
  %v502 = vld [vmem:[%s7 + $0x50] sm:$0xff]
  %v503 = vld [vmem:[%s7 + $0x58] sm:$0xff]
  %v504 = vld [vmem:[%s7 + $0x60] sm:$0xff]
  %v505 = vld [vmem:[%s7 + $0x68] sm:$0xff]
  %v506 = vld [vmem:[%s7 + $0x70] sm:$0xff]
  %v507 = vld [vmem:[%s7 + $0x78] sm:$0xff]
  %v508 = vpack.c.bf16 %v491, %v491
  %v509 = vld [vmem:[%s8] sm:$0x3]
  %v511 = vlaneseq
  %v512 = vshrl.u32 %v511, 7
  %v513 = vsub.s32 0, %v512
  %v514 = vrot.slane %v509, %v513
  %v515 = vlaneseq
  %v516 = vshrl.u32 %v515, 7
  %v517 = vsub.s32 1, %v516
  %v518 = vrot.slane %v509, %v517
  %v537 = vunpack.c.l.b16 %v492
  %v538 = vunpack.c.h.b16 %v492
  %v539 = vunpack.c.l.b16 %v493
  %v540 = vunpack.c.h.b16 %v493
  %v541 = vunpack.c.l.b16 %v494
  %v542 = vunpack.c.h.b16 %v494
  %v543 = vunpack.c.l.b16 %v495
  %v544 = vunpack.c.h.b16 %v495
  %v545 = vunpack.c.l.b16 %v496
  %v546 = vunpack.c.h.b16 %v496
  %v547 = vunpack.c.l.b16 %v497
  %v548 = vunpack.c.h.b16 %v497
  %v549 = vunpack.c.l.b16 %v498
  %v550 = vunpack.c.h.b16 %v498
  %v551 = vunpack.c.l.b16 %v499
  %v552 = vunpack.c.h.b16 %v499
  %v553 = vunpack.c.l.b16 %v500
  %v554 = vunpack.c.h.b16 %v500
  %v555 = vunpack.c.l.b16 %v501
  %v556 = vunpack.c.h.b16 %v501
  %v557 = vunpack.c.l.b16 %v502
  %v558 = vunpack.c.h.b16 %v502
  %v559 = vunpack.c.l.b16 %v503
  %v560 = vunpack.c.h.b16 %v503
  %v561 = vunpack.c.l.b16 %v504
  %v562 = vunpack.c.h.b16 %v504
  %v563 = vunpack.c.l.b16 %v505
  %v564 = vunpack.c.h.b16 %v505
  %v565 = vunpack.c.l.b16 %v506
  %v566 = vunpack.c.h.b16 %v506
  %v567 = vunpack.c.l.b16 %v507
  %v568 = vunpack.c.h.b16 %v507
  %v569 = vpack.c.b16 %v539, %v537
  %v570 = vpack.c.b16 %v540, %v538
  %v571 = vpack.c.b16 %v543, %v541
  %v572 = vpack.c.b16 %v544, %v542
  %v573 = vpack.c.b16 %v547, %v545
  %v574 = vpack.c.b16 %v548, %v546
  %v575 = vpack.c.b16 %v551, %v549
  %v576 = vpack.c.b16 %v552, %v550
  %v577 = vpack.c.b16 %v555, %v553
  %v578 = vpack.c.b16 %v556, %v554
  %v579 = vpack.c.b16 %v559, %v557
  %v580 = vpack.c.b16 %v560, %v558
  %v581 = vpack.c.b16 %v563, %v561
  %v582 = vpack.c.b16 %v564, %v562
  %v583 = vpack.c.b16 %v567, %v565
  %v584 = vpack.c.b16 %v568, %v566
  %601 = vmatprep.subr.bf16.mxu0 %v570
  %602 = vmatpush1.bf16.msra.mxu0 %v569
  %603 = vmatprep.subr.bf16.mxu0 %v572
  %604 = vmatpush1.bf16.msra.mxu0 %v571
  %605 = vmatprep.subr.bf16.mxu0 %v574
  %606 = vmatpush1.bf16.msra.mxu0 %v573
  %607 = vmatprep.subr.bf16.mxu0 %v576
  %608 = vmatpush1.bf16.msra.mxu0 %v575
  %609 = vmatprep.subr.bf16.mxu0 %v578
  %610 = vmatpush1.bf16.msra.mxu0 %v577
  %611 = vmatprep.subr.bf16.mxu0 %v580
  %612 = vmatpush1.bf16.msra.mxu0 %v579
  %613 = vmatprep.subr.bf16.mxu0 %v582
  %614 = vmatpush1.bf16.msra.mxu0 %v581
  %615 = vmatprep.subr.bf16.mxu0 %v584
  %616 = vmatpush1.bf16.msra.mxu0 %v583
  %617 = vmatprep.subr.bf16.mxu0 0
  %618 = vmatpush1.bf16.msra.mxu0 0
  %619 = vmatprep.subr.bf16.mxu0 0
  %620 = vmatpush1.bf16.msra.mxu0 0
  %621 = vmatprep.subr.bf16.mxu0 0
  %622 = vmatpush1.bf16.msra.mxu0 0
  %623 = vmatprep.subr.bf16.mxu0 0
  %624 = vmatpush1.bf16.msra.mxu0 0
  %625 = vmatprep.subr.bf16.mxu0 0
  %626 = vmatpush1.bf16.msra.mxu0 0
  %627 = vmatprep.subr.bf16.mxu0 0
  %628 = vmatpush1.bf16.msra.mxu0 0
  %629 = vmatprep.subr.bf16.mxu0 0
  %630 = vmatpush1.bf16.msra.mxu0 0
  %631 = vmatprep.subr.bf16.mxu0 0
  %632 = vmatpush1.bf16.msra.mxu0 0
  %633 = vmatprep.mubr.bf16.mxu0 0
  %634 = vmatmul.mubr.bf16.gmra.mrb[0].mxu0 %v508
  %v635 = vpop.f32.mrb[0].mxu0
  %v636 = vadd.f32 %v514, %v635
  %v637 = vpop.f32.mrb[0].mxu0
  %v638 = vadd.f32 %v518, %v637
  %v639 = vpop.f32.mrb[0].mxu0
  %v640 = vpop.f32.mrb[0].mxu0
  %641 = vdwg.mxu0
  %v642 = vadd.f32 %v636, %v308
  %v643 = vadd.f32 %v638, %v310
  %644 = vst [vmem:[%s9] sm:$0xff] %v642
  %645 = vst [vmem:[%s9 + $0x8] sm:$0xff] %v643
  // Predicated region
  $region38: #{unet_forward.7} parent=0 // pred_check
    _
  $region39: #{unet_forward.7} parent=0 // pred_check_branch
    %647 = sbr.rel (0) target = $region41
  $region40: #{unet_forward.7} parent=0 // pred_region
    _
  $region41: #{unet_forward.7} parent=0 // pred_fallthru
    _
  // Predicated region
  $region42: #{unet_forward.7} parent=0 // pred_check
    _
  $region43: #{unet_forward.7} parent=0 // pred_check_branch
    %649 = sbr.rel (0) target = $region45
  $region44: #{unet_forward.7} parent=0 // pred_region
    _
  $region45: #{unet_forward.7} parent=0 // pred_fallthru
    _

// kernel: unet_forward.8
$region0: #{unet_forward.8}
  #allocation0 [shape = 'u32[]', space=smem, size = 0x4, offset = 0x4, fixed_abs, tag = 'smem constant byte address 0x4 - core index']
  #allocation1 [shape = 'u32[144,128]{1,0:T(1,128)}', space=vmem, size = 0x12000, scoped, tag = 'internal scratch']
  %s0 = inlined_call_operand.vmem [shape: f32[8,259], index: 0, kind: input, shape index: {}]
  %s1 = inlined_call_operand.vmem [shape: bf16[259,384], index: 1, kind: input, shape index: {}]
  %s2 = inlined_call_operand.vmem [shape: f32[1,384], index: 2, kind: input, shape index: {}]
  %s3 = inlined_call_operand.vmem [shape: bf16[384,128], index: 3, kind: input, shape index: {}]
  %s4 = inlined_call_operand.vmem [shape: f32[1,128], index: 4, kind: input, shape index: {}]
  %s5 = inlined_call_operand.vmem [shape: f32[8,128], index: 5, kind: output, shape index: {}]
  %s6 = sld [smem:[#allocation0]]
  $region30: #{unet_forward.8} parent=0
    _
  %s8 = ssub.s32 1, %s6
  %s9 = scalar_select 0, %s8, %s6
  // Predicated region
  $region2: #{unet_forward.8} parent=0 // pred_check
    _
  $region3: #{unet_forward.8} parent=0 // pred_check_branch
    %11 = sbr.rel (0) target = $region5
  $region4: #{unet_forward.8} parent=0 // pred_region
    _
  $region5: #{unet_forward.8} parent=0 // pred_fallthru
    _
  // Predicated region
  $region6: #{unet_forward.8} parent=0 // pred_check
    _
  $region7: #{unet_forward.8} parent=0 // pred_check_branch
    %13 = sbr.rel (0) target = $region9
  $region8: #{unet_forward.8} parent=0 // pred_region
    _
  $region9: #{unet_forward.8} parent=0 // pred_fallthru
    _
  // Predicated region
  $region10: #{unet_forward.8} parent=0 // pred_check
    _
  $region11: #{unet_forward.8} parent=0 // pred_check_branch
    %15 = sbr.rel (0) target = $region13
  $region12: #{unet_forward.8} parent=0 // pred_region
    _
  $region13: #{unet_forward.8} parent=0 // pred_fallthru
    _
  // Predicated region
  $region14: #{unet_forward.8} parent=0 // pred_check
    _
  $region15: #{unet_forward.8} parent=0 // pred_check_branch
    %17 = sbr.rel (0) target = $region17
  $region16: #{unet_forward.8} parent=0 // pred_region
    _
  $region17: #{unet_forward.8} parent=0 // pred_fallthru
    _
  // Predicated region
  $region18: #{unet_forward.8} parent=0 // pred_check
    _
  $region19: #{unet_forward.8} parent=0 // pred_check_branch
    %19 = sbr.rel (0) target = $region21
  $region20: #{unet_forward.8} parent=0 // pred_region
    _
  $region21: #{unet_forward.8} parent=0 // pred_fallthru
    _
  %v21 = vld [vmem:[%s0] sm:$0xff]
  %v22 = vld [vmem:[%s0 + $0x8] sm:$0xff]
  %v23 = vld [vmem:[%s0 + $0x10] sm:$0xff]
  %v24 = vld [vmem:[%s1] sm:$0xff]
  %v25 = vld [vmem:[%s1 + $0x8] sm:$0xf]
  %v26 = vld [vmem:[%s1 + $0xc] sm:$0xff]
  %v27 = vld [vmem:[%s1 + $0x14] sm:$0xf]
  %v28 = vld [vmem:[%s1 + $0x18] sm:$0xff]
  %v29 = vld [vmem:[%s1 + $0x20] sm:$0xf]
  %v30 = vld [vmem:[%s1 + $0x24] sm:$0xff]
  %v31 = vld [vmem:[%s1 + $0x2c] sm:$0xf]
  %v32 = vld [vmem:[%s1 + $0x30] sm:$0xff]
  %v33 = vld [vmem:[%s1 + $0x38] sm:$0xf]
  %v34 = vld [vmem:[%s1 + $0x3c] sm:$0xff]
  %v35 = vld [vmem:[%s1 + $0x44] sm:$0xf]
  %v36 = vld [vmem:[%s1 + $0x48] sm:$0xff]
  %v37 = vld [vmem:[%s1 + $0x50] sm:$0xf]
  %v38 = vld [vmem:[%s1 + $0x54] sm:$0xff]
  %v39 = vld [vmem:[%s1 + $0x5c] sm:$0xf]
  %v40 = vld [vmem:[%s1 + $0x60] sm:$0xff]
  %v41 = vld [vmem:[%s1 + $0x68] sm:$0xf]
  %v42 = vld [vmem:[%s1 + $0x6c] sm:$0xff]
  %v43 = vld [vmem:[%s1 + $0x74] sm:$0xf]
  %v44 = vld [vmem:[%s1 + $0x78] sm:$0xff]
  %v45 = vld [vmem:[%s1 + $0x80] sm:$0xf]
  %v46 = vld [vmem:[%s1 + $0x84] sm:$0xff]
  %v47 = vld [vmem:[%s1 + $0x8c] sm:$0xf]
  %v48 = vld [vmem:[%s1 + $0x90] sm:$0xff]
  %v49 = vld [vmem:[%s1 + $0x98] sm:$0xf]
  %v50 = vld [vmem:[%s1 + $0x9c] sm:$0xff]
  %v51 = vld [vmem:[%s1 + $0xa4] sm:$0xf]
  %v52 = vld [vmem:[%s1 + $0xa8] sm:$0xff]
  %v53 = vld [vmem:[%s1 + $0xb0] sm:$0xf]
  %v54 = vld [vmem:[%s1 + $0xb4] sm:$0xff]
  %v55 = vld [vmem:[%s1 + $0xbc] sm:$0xf]
  %v56 = vld [vmem:[%s1 + $0xc0] sm:$0xff]
  %v57 = vld [vmem:[%s1 + $0xc8] sm:$0xf]
  %v58 = vld [vmem:[%s1 + $0xcc] sm:$0xff]
  %v59 = vld [vmem:[%s1 + $0xd4] sm:$0xf]
  %v60 = vld [vmem:[%s1 + $0xd8] sm:$0xff]
  %v61 = vld [vmem:[%s1 + $0xe0] sm:$0xf]
  %v62 = vld [vmem:[%s1 + $0xe4] sm:$0xff]
  %v63 = vld [vmem:[%s1 + $0xec] sm:$0xf]
  %v64 = vld [vmem:[%s1 + $0xf0] sm:$0xff]
  %v65 = vld [vmem:[%s1 + $0xf8] sm:$0xf]
  %v66 = vld [vmem:[%s1 + $0xfc] sm:$0xff]
  %v67 = vld [vmem:[%s1 + $0x104] sm:$0xf]
  %v68 = vld [vmem:[%s1 + $0x108] sm:$0xff]
  %v69 = vld [vmem:[%s1 + $0x110] sm:$0xf]
  %v70 = vld [vmem:[%s1 + $0x114] sm:$0xff]
  %v71 = vld [vmem:[%s1 + $0x11c] sm:$0xf]
  %v72 = vld [vmem:[%s1 + $0x120] sm:$0xff]
  %v73 = vld [vmem:[%s1 + $0x128] sm:$0xf]
  %v74 = vld [vmem:[%s1 + $0x12c] sm:$0xff]
  %v75 = vld [vmem:[%s1 + $0x134] sm:$0xf]
  %v76 = vld [vmem:[%s1 + $0x138] sm:$0xff]
  %v77 = vld [vmem:[%s1 + $0x140] sm:$0xf]
  %v78 = vld [vmem:[%s1 + $0x144] sm:$0xff]
  %v79 = vld [vmem:[%s1 + $0x14c] sm:$0xf]
  %v80 = vld [vmem:[%s1 + $0x150] sm:$0xff]
  %v81 = vld [vmem:[%s1 + $0x158] sm:$0xf]
  %v82 = vld [vmem:[%s1 + $0x15c] sm:$0xff]
  %v83 = vld [vmem:[%s1 + $0x164] sm:$0xf]
  %v84 = vld [vmem:[%s1 + $0x168] sm:$0xff]
  %v85 = vld [vmem:[%s1 + $0x170] sm:$0xf]
  %v86 = vld [vmem:[%s1 + $0x174] sm:$0xff]
  %v87 = vld [vmem:[%s1 + $0x17c] sm:$0xf]
  %v88 = vld [vmem:[%s1 + $0x180] sm:$0x33]
  %v89 = vld [vmem:[%s1 + $0x188] sm:$0x3]
  %v90 = vpack.c.bf16 %v21, %v21
  %v91 = vpack.c.bf16 %v22, %v22
  %v92 = vpack.c.bf16 %v23, %v23
  %v93 = vld [vmem:[%s2] sm:$0x7]
  %v95 = vlaneseq
  %v96 = vshrl.u32 %v95, 7
  %v97 = vsub.s32 0, %v96
  %v98 = vrot.slane %v93, %v97
  %v99 = vlaneseq
  %v100 = vshrl.u32 %v99, 7
  %v101 = vsub.s32 1, %v100
  %v102 = vrot.slane %v93, %v101
  %v103 = vlaneseq
  %v104 = vshrl.u32 %v103, 7
  %v105 = vsub.s32 2, %v104
  %v106 = vrot.slane %v93, %v105
  %v176 = vunpack.c.l.b16 %v24
  %v177 = vunpack.c.h.b16 %v24
  %v178 = vunpack.c.l.b16 %v25
  %v179 = vunpack.c.l.b16 %v26
  %v180 = vunpack.c.h.b16 %v26
  %v181 = vunpack.c.l.b16 %v27
  %v182 = vunpack.c.l.b16 %v28
  %v183 = vunpack.c.h.b16 %v28
  %v184 = vunpack.c.l.b16 %v29
  %v185 = vunpack.c.l.b16 %v30
  %v186 = vunpack.c.h.b16 %v30
  %v187 = vunpack.c.l.b16 %v31
  %v188 = vunpack.c.l.b16 %v32
  %v189 = vunpack.c.h.b16 %v32
  %v190 = vunpack.c.l.b16 %v33
  %v191 = vunpack.c.l.b16 %v34
  %v192 = vunpack.c.h.b16 %v34
  %v193 = vunpack.c.l.b16 %v35
  %v194 = vunpack.c.l.b16 %v36
  %v195 = vunpack.c.h.b16 %v36
  %v196 = vunpack.c.l.b16 %v37
  %v197 = vunpack.c.l.b16 %v38
  %v198 = vunpack.c.h.b16 %v38
  %v199 = vunpack.c.l.b16 %v39
  %v200 = vunpack.c.l.b16 %v40
  %v201 = vunpack.c.h.b16 %v40
  %v202 = vunpack.c.l.b16 %v41
  %v203 = vunpack.c.l.b16 %v42
  %v204 = vunpack.c.h.b16 %v42
  %v205 = vunpack.c.l.b16 %v43
  %v206 = vunpack.c.l.b16 %v44
  %v207 = vunpack.c.h.b16 %v44
  %v208 = vunpack.c.l.b16 %v45
  %v209 = vunpack.c.l.b16 %v46
  %v210 = vunpack.c.h.b16 %v46
  %v211 = vunpack.c.l.b16 %v47
  %v212 = vunpack.c.l.b16 %v48
  %v213 = vunpack.c.h.b16 %v48
  %v214 = vunpack.c.l.b16 %v49
  %v215 = vunpack.c.l.b16 %v50
  %v216 = vunpack.c.h.b16 %v50
  %v217 = vunpack.c.l.b16 %v51
  %v218 = vunpack.c.l.b16 %v52
  %v219 = vunpack.c.h.b16 %v52
  %v220 = vunpack.c.l.b16 %v53
  %v221 = vunpack.c.l.b16 %v54
  %v222 = vunpack.c.h.b16 %v54
  %v223 = vunpack.c.l.b16 %v55
  %v224 = vunpack.c.l.b16 %v56
  %v225 = vunpack.c.h.b16 %v56
  %v226 = vunpack.c.l.b16 %v57
  %v227 = vunpack.c.l.b16 %v58
  %v228 = vunpack.c.h.b16 %v58
  %v229 = vunpack.c.l.b16 %v59
  %v230 = vunpack.c.l.b16 %v60
  %v231 = vunpack.c.h.b16 %v60
  %v232 = vunpack.c.l.b16 %v61
  %v233 = vunpack.c.l.b16 %v62
  %v234 = vunpack.c.h.b16 %v62
  %v235 = vunpack.c.l.b16 %v63
  %v236 = vunpack.c.l.b16 %v64
  %v237 = vunpack.c.h.b16 %v64
  %v238 = vunpack.c.l.b16 %v65
  %v239 = vunpack.c.l.b16 %v66
  %v240 = vunpack.c.h.b16 %v66
  %v241 = vunpack.c.l.b16 %v67
  %v242 = vunpack.c.l.b16 %v68
  %v243 = vunpack.c.h.b16 %v68
  %v244 = vunpack.c.l.b16 %v69
  %v245 = vunpack.c.l.b16 %v70
  %v246 = vunpack.c.h.b16 %v70
  %v247 = vunpack.c.l.b16 %v71
  %v248 = vunpack.c.l.b16 %v72
  %v249 = vunpack.c.h.b16 %v72
  %v250 = vunpack.c.l.b16 %v73
  %v251 = vunpack.c.l.b16 %v74
  %v252 = vunpack.c.h.b16 %v74
  %v253 = vunpack.c.l.b16 %v75
  %v254 = vunpack.c.l.b16 %v76
  %v255 = vunpack.c.h.b16 %v76
  %v256 = vunpack.c.l.b16 %v77
  %v257 = vunpack.c.l.b16 %v78
  %v258 = vunpack.c.h.b16 %v78
  %v259 = vunpack.c.l.b16 %v79
  %v260 = vunpack.c.l.b16 %v80
  %v261 = vunpack.c.h.b16 %v80
  %v262 = vunpack.c.l.b16 %v81
  %v263 = vunpack.c.l.b16 %v82
  %v264 = vunpack.c.h.b16 %v82
  %v265 = vunpack.c.l.b16 %v83
  %v266 = vunpack.c.l.b16 %v84
  %v267 = vunpack.c.h.b16 %v84
  %v268 = vunpack.c.l.b16 %v85
  %v269 = vunpack.c.l.b16 %v86
  %v270 = vunpack.c.h.b16 %v86
  %v271 = vunpack.c.l.b16 %v87
  %v272 = vunpack.c.l.b16 %v88
  %v273 = vunpack.c.h.b16 %v88
  %v274 = vunpack.c.l.b16 %v89
  %v275 = vpack.c.b16 %v179, %v176
  %v276 = vpack.c.b16 %v180, %v177
  %v277 = vpack.c.b16 %v181, %v178
  %v278 = vpack.c.b16 %v185, %v182
  %v279 = vpack.c.b16 %v186, %v183
  %v280 = vpack.c.b16 %v187, %v184
  %v281 = vpack.c.b16 %v191, %v188
  %v282 = vpack.c.b16 %v192, %v189
  %v283 = vpack.c.b16 %v193, %v190
  %v284 = vpack.c.b16 %v197, %v194
  %v285 = vpack.c.b16 %v198, %v195
  %v286 = vpack.c.b16 %v199, %v196
  %v287 = vpack.c.b16 %v203, %v200
  %v288 = vpack.c.b16 %v204, %v201
  %v289 = vpack.c.b16 %v205, %v202
  %v290 = vpack.c.b16 %v209, %v206
  %v291 = vpack.c.b16 %v210, %v207
  %v292 = vpack.c.b16 %v211, %v208
  %v293 = vpack.c.b16 %v215, %v212
  %v294 = vpack.c.b16 %v216, %v213
  %v295 = vpack.c.b16 %v217, %v214
  %v296 = vpack.c.b16 %v221, %v218
  %v297 = vpack.c.b16 %v222, %v219
  %v298 = vpack.c.b16 %v223, %v220
  %v299 = vpack.c.b16 %v227, %v224
  %v300 = vpack.c.b16 %v228, %v225
  %v301 = vpack.c.b16 %v229, %v226
  %v302 = vpack.c.b16 %v233, %v230
  %v303 = vpack.c.b16 %v234, %v231
  %v304 = vpack.c.b16 %v235, %v232
  %v305 = vpack.c.b16 %v239, %v236
  %v306 = vpack.c.b16 %v240, %v237
  %v307 = vpack.c.b16 %v241, %v238
  %v308 = vpack.c.b16 %v245, %v242
  %v309 = vpack.c.b16 %v246, %v243
  %v310 = vpack.c.b16 %v247, %v244
  %v311 = vpack.c.b16 %v251, %v248
  %v312 = vpack.c.b16 %v252, %v249
  %v313 = vpack.c.b16 %v253, %v250
  %v314 = vpack.c.b16 %v257, %v254
  %v315 = vpack.c.b16 %v258, %v255
  %v316 = vpack.c.b16 %v259, %v256
  %v317 = vpack.c.b16 %v263, %v260
  %v318 = vpack.c.b16 %v264, %v261
  %v319 = vpack.c.b16 %v265, %v262
  %v320 = vpack.c.b16 %v269, %v266
  %v321 = vpack.c.b16 %v270, %v267
  %v322 = vpack.c.b16 %v271, %v268
  %v323 = vpack.c.b16 %v272, %v272
  %v324 = vpack.c.b16 %v273, %v273
  %v325 = vpack.c.b16 %v274, %v274
  %vm374 = vcmask 23552
  %v376 = vsel %vm374, %v92, 0
  %vm378 = vcmask 1040384
  %vm379 = vcmask 1041408
  %v380 = vsel %vm378, 4294967295, 65535
  %v381 = vsel %vm379, %v380, 0
  %v383 = vand.u32 %v323, %v381
  %v386 = vand.u32 %v324, %v381
  %v389 = vand.u32 %v325, %v381
  %391 = vmatprep.subr.bf16.mxu0 %v276
  %392 = vmatpush1.bf16.msra.mxu0 %v275
  %393 = vmatprep.subr.bf16.mxu0 %v279
  %394 = vmatpush1.bf16.msra.mxu0 %v278
  %395 = vmatprep.subr.bf16.mxu0 %v282
  %396 = vmatpush1.bf16.msra.mxu0 %v281
  %397 = vmatprep.subr.bf16.mxu0 %v285
  %398 = vmatpush1.bf16.msra.mxu0 %v284
  %399 = vmatprep.subr.bf16.mxu0 %v288
  %400 = vmatpush1.bf16.msra.mxu0 %v287
  %401 = vmatprep.subr.bf16.mxu0 %v291
  %402 = vmatpush1.bf16.msra.mxu0 %v290
  %403 = vmatprep.subr.bf16.mxu0 %v294
  %404 = vmatpush1.bf16.msra.mxu0 %v293
  %405 = vmatprep.subr.bf16.mxu0 %v297
  %406 = vmatpush1.bf16.msra.mxu0 %v296
  %407 = vmatprep.subr.bf16.mxu0 %v300
  %408 = vmatpush1.bf16.msra.mxu0 %v299
  %409 = vmatprep.subr.bf16.mxu0 %v303
  %410 = vmatpush1.bf16.msra.mxu0 %v302
  %411 = vmatprep.subr.bf16.mxu0 %v306
  %412 = vmatpush1.bf16.msra.mxu0 %v305
  %413 = vmatprep.subr.bf16.mxu0 %v309
  %414 = vmatpush1.bf16.msra.mxu0 %v308
  %415 = vmatprep.subr.bf16.mxu0 %v312
  %416 = vmatpush1.bf16.msra.mxu0 %v311
  %417 = vmatprep.subr.bf16.mxu0 %v315
  %418 = vmatpush1.bf16.msra.mxu0 %v314
  %419 = vmatprep.subr.bf16.mxu0 %v318
  %420 = vmatpush1.bf16.msra.mxu0 %v317
  %421 = vmatprep.subr.bf16.mxu0 %v321
  %422 = vmatpush1.bf16.msra.mxu0 %v320
  %423 = vmatprep.mubr.bf16.mxu0 %v91
  %424 = vmatmul.mubr.bf16.gmra.mrb[0].mxu0 %v90
  %v425 = vpop.f32.mrb[0].mxu0
  %v426 = vadd.f32 %v98, %v425
  %v427 = vpop.f32.mrb[0].mxu0
  %v428 = vadd.f32 %v102, %v427
  %v429 = vpop.f32.mrb[0].mxu0
  %v430 = vpop.f32.mrb[0].mxu0
  %431 = vdwg.mxu0
  %432 = vmatprep.subr.bf16.mxu0 %v386
  %433 = vmatpush1.bf16.msra.mxu0 %v383
  %434 = vmatprep.subr.bf16.mxu0 0
  %435 = vmatpush1.bf16.msra.mxu0 0
  %436 = vmatprep.subr.bf16.mxu0 0
  %437 = vmatpush1.bf16.msra.mxu0 0
  %438 = vmatprep.subr.bf16.mxu0 0
  %439 = vmatpush1.bf16.msra.mxu0 0
  %440 = vmatprep.subr.bf16.mxu0 0
  %441 = vmatpush1.bf16.msra.mxu0 0
  %442 = vmatprep.subr.bf16.mxu0 0
  %443 = vmatpush1.bf16.msra.mxu0 0
  %444 = vmatprep.subr.bf16.mxu0 0
  %445 = vmatpush1.bf16.msra.mxu0 0
  %446 = vmatprep.subr.bf16.mxu0 0
  %447 = vmatpush1.bf16.msra.mxu0 0
  %448 = vmatprep.subr.bf16.mxu0 0
  %449 = vmatpush1.bf16.msra.mxu0 0
  %450 = vmatprep.subr.bf16.mxu0 0
  %451 = vmatpush1.bf16.msra.mxu0 0
  %452 = vmatprep.subr.bf16.mxu0 0
  %453 = vmatpush1.bf16.msra.mxu0 0
  %454 = vmatprep.subr.bf16.mxu0 0
  %455 = vmatpush1.bf16.msra.mxu0 0
  %456 = vmatprep.subr.bf16.mxu0 0
  %457 = vmatpush1.bf16.msra.mxu0 0
  %458 = vmatprep.subr.bf16.mxu0 0
  %459 = vmatpush1.bf16.msra.mxu0 0
  %460 = vmatprep.subr.bf16.mxu0 0
  %461 = vmatpush1.bf16.msra.mxu0 0
  %462 = vmatprep.subr.bf16.mxu0 0
  %463 = vmatpush1.bf16.msra.mxu0 0
  %464 = vmatprep.mubr.bf16.mxu0 0
  %465 = vmatmul.mubr.bf16.gmra.mrb[0].mxu0 %v376
  %v466 = vpop.f32.mrb[0].mxu0
  %v467 = vadd.f32 %v426, %v466
  %v468 = vpop.f32.mrb[0].mxu0
  %v469 = vadd.f32 %v428, %v468
  %v470 = vpop.f32.mrb[0].mxu0
  %v471 = vpop.f32.mrb[0].mxu0
  %472 = vdwg.mxu0
  %473 = vmatprep.subr.bf16.mxu0 0
  %474 = vmatpush1.bf16.msra.mxu0 %v277
  %475 = vmatprep.subr.bf16.mxu0 0
  %476 = vmatpush1.bf16.msra.mxu0 %v280
  %477 = vmatprep.subr.bf16.mxu0 0
  %478 = vmatpush1.bf16.msra.mxu0 %v283
  %479 = vmatprep.subr.bf16.mxu0 0
  %480 = vmatpush1.bf16.msra.mxu0 %v286
  %481 = vmatprep.subr.bf16.mxu0 0
  %482 = vmatpush1.bf16.msra.mxu0 %v289
  %483 = vmatprep.subr.bf16.mxu0 0
  %484 = vmatpush1.bf16.msra.mxu0 %v292
  %485 = vmatprep.subr.bf16.mxu0 0
  %486 = vmatpush1.bf16.msra.mxu0 %v295
  %487 = vmatprep.subr.bf16.mxu0 0
  %488 = vmatpush1.bf16.msra.mxu0 %v298
  %489 = vmatprep.subr.bf16.mxu0 0
  %490 = vmatpush1.bf16.msra.mxu0 %v301
  %491 = vmatprep.subr.bf16.mxu0 0
  %492 = vmatpush1.bf16.msra.mxu0 %v304
  %493 = vmatprep.subr.bf16.mxu0 0
  %494 = vmatpush1.bf16.msra.mxu0 %v307
  %495 = vmatprep.subr.bf16.mxu0 0
  %496 = vmatpush1.bf16.msra.mxu0 %v310
  %497 = vmatprep.subr.bf16.mxu0 0
  %498 = vmatpush1.bf16.msra.mxu0 %v313
  %499 = vmatprep.subr.bf16.mxu0 0
  %500 = vmatpush1.bf16.msra.mxu0 %v316
  %501 = vmatprep.subr.bf16.mxu0 0
  %502 = vmatpush1.bf16.msra.mxu0 %v319
  %503 = vmatprep.subr.bf16.mxu0 0
  %504 = vmatpush1.bf16.msra.mxu0 %v322
  %505 = vmatprep.mubr.bf16.mxu0 %v91
  %506 = vmatmul.mubr.bf16.gmra.mrb[0].mxu0 %v90
  %v507 = vpop.f32.mrb[0].mxu0
  %v508 = vadd.f32 %v106, %v507
  %v509 = vpop.f32.mrb[0].mxu0
  %v510 = vpop.f32.mrb[0].mxu0
  %v511 = vpop.f32.mrb[0].mxu0
  %512 = vdwg.mxu0
  %513 = vmatprep.subr.bf16.mxu0 0
  %514 = vmatpush1.bf16.msra.mxu0 %v389
  %515 = vmatprep.subr.bf16.mxu0 0
  %516 = vmatpush1.bf16.msra.mxu0 0
  %517 = vmatprep.subr.bf16.mxu0 0
  %518 = vmatpush1.bf16.msra.mxu0 0
  %519 = vmatprep.subr.bf16.mxu0 0
  %520 = vmatpush1.bf16.msra.mxu0 0
  %521 = vmatprep.subr.bf16.mxu0 0
  %522 = vmatpush1.bf16.msra.mxu0 0
  %523 = vmatprep.subr.bf16.mxu0 0
  %524 = vmatpush1.bf16.msra.mxu0 0
  %525 = vmatprep.subr.bf16.mxu0 0
  %526 = vmatpush1.bf16.msra.mxu0 0
  %527 = vmatprep.subr.bf16.mxu0 0
  %528 = vmatpush1.bf16.msra.mxu0 0
  %529 = vmatprep.subr.bf16.mxu0 0
  %530 = vmatpush1.bf16.msra.mxu0 0
  %531 = vmatprep.subr.bf16.mxu0 0
  %532 = vmatpush1.bf16.msra.mxu0 0
  %533 = vmatprep.subr.bf16.mxu0 0
  %534 = vmatpush1.bf16.msra.mxu0 0
  %535 = vmatprep.subr.bf16.mxu0 0
  %536 = vmatpush1.bf16.msra.mxu0 0
  %537 = vmatprep.subr.bf16.mxu0 0
  %538 = vmatpush1.bf16.msra.mxu0 0
  %539 = vmatprep.subr.bf16.mxu0 0
  %540 = vmatpush1.bf16.msra.mxu0 0
  %541 = vmatprep.subr.bf16.mxu0 0
  %542 = vmatpush1.bf16.msra.mxu0 0
  %543 = vmatprep.subr.bf16.mxu0 0
  %544 = vmatpush1.bf16.msra.mxu0 0
  %545 = vmatprep.mubr.bf16.mxu0 0
  %546 = vmatmul.mubr.bf16.gmra.mrb[0].mxu0 %v376
  %v547 = vpop.f32.mrb[0].mxu0
  %v548 = vadd.f32 %v508, %v547
  %v549 = vpop.f32.mrb[0].mxu0
  %v550 = vpop.f32.mrb[0].mxu0
  %v551 = vpop.f32.mrb[0].mxu0
  %552 = vdwg.mxu0
  %v553 = vmax.f32 %v467, 0.0
  %v554 = vmax.f32 %v469, 0.0
  %v555 = vmax.f32 %v548, 0.0
  %v556 = vld [vmem:[%s3] sm:$0xf]
  %v557 = vld [vmem:[%s3 + $0x4] sm:$0xf]
  %v558 = vld [vmem:[%s3 + $0x8] sm:$0xf]
  %v559 = vld [vmem:[%s3 + $0xc] sm:$0xf]
  %v560 = vld [vmem:[%s3 + $0x10] sm:$0xf]
  %v561 = vld [vmem:[%s3 + $0x14] sm:$0xf]
  %v562 = vld [vmem:[%s3 + $0x18] sm:$0xf]
  %v563 = vld [vmem:[%s3 + $0x1c] sm:$0xf]
  %v564 = vld [vmem:[%s3 + $0x20] sm:$0xf]
  %v565 = vld [vmem:[%s3 + $0x24] sm:$0xf]
  %v566 = vld [vmem:[%s3 + $0x28] sm:$0xf]
  %v567 = vld [vmem:[%s3 + $0x2c] sm:$0xf]
  %v568 = vld [vmem:[%s3 + $0x30] sm:$0xf]
  %v569 = vld [vmem:[%s3 + $0x34] sm:$0xf]
  %v570 = vld [vmem:[%s3 + $0x38] sm:$0xf]
  %v571 = vld [vmem:[%s3 + $0x3c] sm:$0xf]
  %v572 = vld [vmem:[%s3 + $0x40] sm:$0xf]
  %v573 = vld [vmem:[%s3 + $0x44] sm:$0xf]
  %v574 = vld [vmem:[%s3 + $0x48] sm:$0xf]
  %v575 = vld [vmem:[%s3 + $0x4c] sm:$0xf]
  %v576 = vld [vmem:[%s3 + $0x50] sm:$0xf]
  %v577 = vld [vmem:[%s3 + $0x54] sm:$0xf]
  %v578 = vld [vmem:[%s3 + $0x58] sm:$0xf]
  %v579 = vld [vmem:[%s3 + $0x5c] sm:$0xf]
  %v580 = vld [vmem:[%s3 + $0x60] sm:$0xf]
  %v581 = vld [vmem:[%s3 + $0x64] sm:$0xf]
  %v582 = vld [vmem:[%s3 + $0x68] sm:$0xf]
  %v583 = vld [vmem:[%s3 + $0x6c] sm:$0xf]
  %v584 = vld [vmem:[%s3 + $0x70] sm:$0xf]
  %v585 = vld [vmem:[%s3 + $0x74] sm:$0xf]
  %v586 = vld [vmem:[%s3 + $0x78] sm:$0xf]
  %v587 = vld [vmem:[%s3 + $0x7c] sm:$0xf]
  %v588 = vld [vmem:[%s3 + $0x80] sm:$0xf]
  %v589 = vld [vmem:[%s3 + $0x84] sm:$0xf]
  %v590 = vld [vmem:[%s3 + $0x88] sm:$0xf]
  %v591 = vld [vmem:[%s3 + $0x8c] sm:$0xf]
  %v592 = vld [vmem:[%s3 + $0x90] sm:$0xf]
  %v593 = vld [vmem:[%s3 + $0x94] sm:$0xf]
  %v594 = vld [vmem:[%s3 + $0x98] sm:$0xf]
  %v595 = vld [vmem:[%s3 + $0x9c] sm:$0xf]
  %v596 = vld [vmem:[%s3 + $0xa0] sm:$0xf]
  %v597 = vld [vmem:[%s3 + $0xa4] sm:$0xf]
  %v598 = vld [vmem:[%s3 + $0xa8] sm:$0xf]
  %v599 = vld [vmem:[%s3 + $0xac] sm:$0xf]
  %v600 = vld [vmem:[%s3 + $0xb0] sm:$0xf]
  %v601 = vld [vmem:[%s3 + $0xb4] sm:$0xf]
  %v602 = vld [vmem:[%s3 + $0xb8] sm:$0xf]
  %v603 = vld [vmem:[%s3 + $0xbc] sm:$0xf]
  %v604 = vpack.c.bf16 %v553, %v553
  %v605 = vpack.c.bf16 %v554, %v554
  %v606 = vpack.c.bf16 %v555, %v555
  %v607 = vld [vmem:[%s4] sm:$0x1]
  %v609 = vlaneseq
  %v610 = vshrl.u32 %v609, 7
  %v611 = vsub.s32 0, %v610
  %v612 = vrot.slane %v607, %v611
  %v662 = vunpack.c.l.b16 %v556
  %v663 = vunpack.c.l.b16 %v557
  %v664 = vunpack.c.l.b16 %v558
  %v665 = vunpack.c.l.b16 %v559
  %v666 = vunpack.c.l.b16 %v560
  %v667 = vunpack.c.l.b16 %v561
  %v668 = vunpack.c.l.b16 %v562
  %v669 = vunpack.c.l.b16 %v563
  %v670 = vunpack.c.l.b16 %v564
  %v671 = vunpack.c.l.b16 %v565
  %v672 = vunpack.c.l.b16 %v566
  %v673 = vunpack.c.l.b16 %v567
  %v674 = vunpack.c.l.b16 %v568
  %v675 = vunpack.c.l.b16 %v569
  %v676 = vunpack.c.l.b16 %v570
  %v677 = vunpack.c.l.b16 %v571
  %v678 = vunpack.c.l.b16 %v572
  %v679 = vunpack.c.l.b16 %v573
  %v680 = vunpack.c.l.b16 %v574
  %v681 = vunpack.c.l.b16 %v575
  %v682 = vunpack.c.l.b16 %v576
  %v683 = vunpack.c.l.b16 %v577
  %v684 = vunpack.c.l.b16 %v578
  %v685 = vunpack.c.l.b16 %v579
  %v686 = vunpack.c.l.b16 %v580
  %v687 = vunpack.c.l.b16 %v581
  %v688 = vunpack.c.l.b16 %v582
  %v689 = vunpack.c.l.b16 %v583
  %v690 = vunpack.c.l.b16 %v584
  %v691 = vunpack.c.l.b16 %v585
  %v692 = vunpack.c.l.b16 %v586
  %v693 = vunpack.c.l.b16 %v587
  %v694 = vunpack.c.l.b16 %v588
  %v695 = vunpack.c.l.b16 %v589
  %v696 = vunpack.c.l.b16 %v590
  %v697 = vunpack.c.l.b16 %v591
  %v698 = vunpack.c.l.b16 %v592
  %v699 = vunpack.c.l.b16 %v593
  %v700 = vunpack.c.l.b16 %v594
  %v701 = vunpack.c.l.b16 %v595
  %v702 = vunpack.c.l.b16 %v596
  %v703 = vunpack.c.l.b16 %v597
  %v704 = vunpack.c.l.b16 %v598
  %v705 = vunpack.c.l.b16 %v599
  %v706 = vunpack.c.l.b16 %v600
  %v707 = vunpack.c.l.b16 %v601
  %v708 = vunpack.c.l.b16 %v602
  %v709 = vunpack.c.l.b16 %v603
  %v710 = vpack.c.b16 %v663, %v662
  %v711 = vpack.c.b16 %v665, %v664
  %v712 = vpack.c.b16 %v667, %v666
  %v713 = vpack.c.b16 %v669, %v668
  %v714 = vpack.c.b16 %v671, %v670
  %v715 = vpack.c.b16 %v673, %v672
  %v716 = vpack.c.b16 %v675, %v674
  %v717 = vpack.c.b16 %v677, %v676
  %v718 = vpack.c.b16 %v679, %v678
  %v719 = vpack.c.b16 %v681, %v680
  %v720 = vpack.c.b16 %v683, %v682
  %v721 = vpack.c.b16 %v685, %v684
  %v722 = vpack.c.b16 %v687, %v686
  %v723 = vpack.c.b16 %v689, %v688
  %v724 = vpack.c.b16 %v691, %v690
  %v725 = vpack.c.b16 %v693, %v692
  %v726 = vpack.c.b16 %v695, %v694
  %v727 = vpack.c.b16 %v697, %v696
  %v728 = vpack.c.b16 %v699, %v698
  %v729 = vpack.c.b16 %v701, %v700
  %v730 = vpack.c.b16 %v703, %v702
  %v731 = vpack.c.b16 %v705, %v704
  %v732 = vpack.c.b16 %v707, %v706
  %v733 = vpack.c.b16 %v709, %v708
  %758 = vmatprep.subr.bf16.mxu0 0
  %759 = vmatpush1.bf16.msra.mxu0 %v710
  %760 = vmatprep.subr.bf16.mxu0 0
  %761 = vmatpush1.bf16.msra.mxu0 %v711
  %762 = vmatprep.subr.bf16.mxu0 0
  %763 = vmatpush1.bf16.msra.mxu0 %v712
  %764 = vmatprep.subr.bf16.mxu0 0
  %765 = vmatpush1.bf16.msra.mxu0 %v713
  %766 = vmatprep.subr.bf16.mxu0 0
  %767 = vmatpush1.bf16.msra.mxu0 %v714
  %768 = vmatprep.subr.bf16.mxu0 0
  %769 = vmatpush1.bf16.msra.mxu0 %v715
  %770 = vmatprep.subr.bf16.mxu0 0
  %771 = vmatpush1.bf16.msra.mxu0 %v716
  %772 = vmatprep.subr.bf16.mxu0 0
  %773 = vmatpush1.bf16.msra.mxu0 %v717
  %774 = vmatprep.subr.bf16.mxu0 0
  %775 = vmatpush1.bf16.msra.mxu0 %v718
  %776 = vmatprep.subr.bf16.mxu0 0
  %777 = vmatpush1.bf16.msra.mxu0 %v719
  %778 = vmatprep.subr.bf16.mxu0 0
  %779 = vmatpush1.bf16.msra.mxu0 %v720
  %780 = vmatprep.subr.bf16.mxu0 0
  %781 = vmatpush1.bf16.msra.mxu0 %v721
  %782 = vmatprep.subr.bf16.mxu0 0
  %783 = vmatpush1.bf16.msra.mxu0 %v722
  %784 = vmatprep.subr.bf16.mxu0 0
  %785 = vmatpush1.bf16.msra.mxu0 %v723
  %786 = vmatprep.subr.bf16.mxu0 0
  %787 = vmatpush1.bf16.msra.mxu0 %v724
  %788 = vmatprep.subr.bf16.mxu0 0
  %789 = vmatpush1.bf16.msra.mxu0 %v725
  %790 = vmatprep.mubr.bf16.mxu0 %v605
  %791 = vmatmul.mubr.bf16.gmra.mrb[0].mxu0 %v604
  %v792 = vpop.f32.mrb[0].mxu0
  %v793 = vadd.f32 %v612, %v792
  %v794 = vpop.f32.mrb[0].mxu0
  %v795 = vpop.f32.mrb[0].mxu0
  %v796 = vpop.f32.mrb[0].mxu0
  %797 = vdwg.mxu0
  %798 = vmatprep.subr.bf16.mxu0 0
  %799 = vmatpush1.bf16.msra.mxu0 %v726
  %800 = vmatprep.subr.bf16.mxu0 0
  %801 = vmatpush1.bf16.msra.mxu0 %v727
  %802 = vmatprep.subr.bf16.mxu0 0
  %803 = vmatpush1.bf16.msra.mxu0 %v728
  %804 = vmatprep.subr.bf16.mxu0 0
  %805 = vmatpush1.bf16.msra.mxu0 %v729
  %806 = vmatprep.subr.bf16.mxu0 0
  %807 = vmatpush1.bf16.msra.mxu0 %v730
  %808 = vmatprep.subr.bf16.mxu0 0
  %809 = vmatpush1.bf16.msra.mxu0 %v731
  %810 = vmatprep.subr.bf16.mxu0 0
  %811 = vmatpush1.bf16.msra.mxu0 %v732
  %812 = vmatprep.subr.bf16.mxu0 0
  %813 = vmatpush1.bf16.msra.mxu0 %v733
  %814 = vmatprep.subr.bf16.mxu0 0
  %815 = vmatpush1.bf16.msra.mxu0 0
  %816 = vmatprep.subr.bf16.mxu0 0
  %817 = vmatpush1.bf16.msra.mxu0 0
  %818 = vmatprep.subr.bf16.mxu0 0
  %819 = vmatpush1.bf16.msra.mxu0 0
  %820 = vmatprep.subr.bf16.mxu0 0
  %821 = vmatpush1.bf16.msra.mxu0 0
  %822 = vmatprep.subr.bf16.mxu0 0
  %823 = vmatpush1.bf16.msra.mxu0 0
  %824 = vmatprep.subr.bf16.mxu0 0
  %825 = vmatpush1.bf16.msra.mxu0 0
  %826 = vmatprep.subr.bf16.mxu0 0
  %827 = vmatpush1.bf16.msra.mxu0 0
  %828 = vmatprep.subr.bf16.mxu0 0
  %829 = vmatpush1.bf16.msra.mxu0 0
  %830 = vmatprep.mubr.bf16.mxu0 0
  %831 = vmatmul.mubr.bf16.gmra.mrb[0].mxu0 %v606
  %v832 = vpop.f32.mrb[0].mxu0
  %v833 = vadd.f32 %v793, %v832
  %v834 = vpop.f32.mrb[0].mxu0
  %v835 = vpop.f32.mrb[0].mxu0
  %v836 = vpop.f32.mrb[0].mxu0
  %837 = vdwg.mxu0
  %838 = vst [vmem:[%s5] sm:$0xff] %v833
  // Predicated region
  $region22: #{unet_forward.8} parent=0 // pred_check
    _
  $region23: #{unet_forward.8} parent=0 // pred_check_branch
    %840 = sbr.rel (0) target = $region25
  $region24: #{unet_forward.8} parent=0 // pred_region
    _
  $region25: #{unet_forward.8} parent=0 // pred_fallthru
    _
  // Predicated region
  $region26: #{unet_forward.8} parent=0 // pred_check
    _
  $region27: #{unet_forward.8} parent=0 // pred_check_branch
    %842 = sbr.rel (0) target = $region29
  $region28: #{unet_forward.8} parent=0 // pred_region
    _
  $region29: #{unet_forward.8} parent=0 // pred_fallthru
    _

// kernel: unet_forward.9
$region0: #{unet_forward.9}
  #allocation0 [shape = 'u32[]', space=smem, size = 0x4, offset = 0x4, fixed_abs, tag = 'smem constant byte address 0x4 - core index']
  #allocation1 [shape = 'u32[144,128]{1,0:T(1,128)}', space=vmem, size = 0x12000, scoped, tag = 'internal scratch']
  %s0 = inlined_call_operand.vmem [shape: f32[2,2,256], index: 0, kind: input, shape index: {}]
  %s1 = inlined_call_operand.vmem [shape: f32[2,1,256], index: 1, kind: input, shape index: {}]
  %s2 = inlined_call_operand.vmem [shape: f32[2,1,256], index: 2, kind: input, shape index: {}]
  %s3 = inlined_call_operand.vmem [shape: bf16[256,256], index: 3, kind: input, shape index: {}]
  %s4 = inlined_call_operand.vmem [shape: bf16[256,256], index: 4, kind: input, shape index: {}]
  %s5 = inlined_call_operand.vmem [shape: f32[1,256], index: 5, kind: input, shape index: {}]
  %s6 = inlined_call_operand.vmem [shape: bf16[256,256], index: 6, kind: input, shape index: {}]
  %s7 = inlined_call_operand.vmem [shape: f32[2,2,256], index: 7, kind: output, shape index: {}]
  %s8 = sld [smem:[#allocation0]]
  $region61: #{unet_forward.9} parent=0
    _
  %s10 = ssub.s32 1, %s8
  %s11 = scalar_select 0, %s10, %s8
  loop: start=0, step=1, limit=4
  $region2: #{unet_forward.9} parent=0 // loop_pre_header
    _
  $region3: #{unet_forward.9} parent=0 // loop_header
    %s13 = sphi 0, %s17
    %p14 = scmp.ge.s32.totalorder %s13, 4
    %s23 = sphi 0, %s25
    %s26 = sphi 0, %s23
    %s27 = sphi 0, %s26
    %s43 = sphi 0, %s27
    %s49 = sphi 0, %s51
    %s52 = sphi 0, %s49
    %s53 = sphi 0, %s52
    %s69 = sphi 0, %s53
    %s75 = sphi 0, %s77
    %s78 = sphi 0, %s75
    %s79 = sphi 0, %s78
    %s95 = sphi 0, %s79
    %s99 = sphi 0, %s99
    %s101 = sphi 0, %s99
    %s102 = sphi 0, %s101
    %s116 = sphi 0, %s102
    %s120 = sphi 0, %s120
    %s122 = sphi 0, %s120
    %s123 = sphi 0, %s122
    %s137 = sphi 0, %s123
    %s141 = sphi 0, %s141
    %s143 = sphi 0, %s141
    %s144 = sphi 0, %s143
    %s158 = sphi 0, %s144
    %s162 = sphi 0, %s162
    %s164 = sphi 0, %s162
    %s165 = sphi 0, %s164
    %s179 = sphi 0, %s165
    %s185 = sphi 0, %s187
    %s188 = sphi 0, %s185
    %s189 = sphi 0, %s188
    %s205 = sphi 0, %s189
  $region4: #{unet_forward.9} parent=0 // loop_header_branch
    %16 = sbr.rel (%p14) target = $region8
  $region5: #{unet_forward.9} parent=0 // loop_body
    %s18 = ssub.s32 %s13, 1
    %s19 = ssub.s32 %s13, 2
    %s20 = sadd.s32 %s13, 1
    %s21 = ssub.s32 %s13, %s20
    %p22 = scmp.eq.s32.totalorder %s21, 0
    %s24 = sadd.s32 %s23, 1
    %s25 = scalar_select %p22, %s23, %s24
    %p28 = pneg %p22
    %p29 = scmp.eq.s32.totalorder %s13, 1
    %p30 = por %p28, %p29
    %p31 = scmp.ne.s32.totalorder %s23, %s26
    %p32 = scmp.eq.s32.totalorder %s13, 0
    %p33 = por %p31, %p32
    %p34 = scmp.ne.s32.totalorder %s23, %s26
    %p35 = scmp.eq.s32.totalorder %s18, 1
    %p36 = por %p34, %p35
    %p37 = scmp.ne.s32.totalorder %s26, %s27
    %p38 = scmp.eq.s32.totalorder %s18, 0
    %p39 = por %p37, %p38
    %p40 = scmp.ne.s32.totalorder %s26, %s27
    %p41 = scmp.eq.s32.totalorder %s19, 1
    %p42 = por %p40, %p41
    %p44 = scmp.ne.s32.totalorder %s27, %s43
    %p45 = scmp.eq.s32.totalorder %s19, 0
    %p46 = por %p44, %p45
    %s47 = ssub.s32 %s13, %s20
    %p48 = scmp.eq.s32.totalorder %s47, 0
    %s50 = sadd.s32 %s49, 1
    %s51 = scalar_select %p48, %s49, %s50
    %p54 = pneg %p48
    %p55 = scmp.eq.s32.totalorder %s13, 1
    %p56 = por %p54, %p55
    %p57 = scmp.ne.s32.totalorder %s49, %s52
    %p58 = scmp.eq.s32.totalorder %s13, 0
    %p59 = por %p57, %p58
    %p60 = scmp.ne.s32.totalorder %s49, %s52
    %p61 = scmp.eq.s32.totalorder %s18, 1
    %p62 = por %p60, %p61
    %p63 = scmp.ne.s32.totalorder %s52, %s53
    %p64 = scmp.eq.s32.totalorder %s18, 0
    %p65 = por %p63, %p64
    %p66 = scmp.ne.s32.totalorder %s52, %s53
    %p67 = scmp.eq.s32.totalorder %s19, 1
    %p68 = por %p66, %p67
    %p70 = scmp.ne.s32.totalorder %s53, %s69
    %p71 = scmp.eq.s32.totalorder %s19, 0
    %p72 = por %p70, %p71
    %s73 = ssub.s32 %s13, %s20
    %p74 = scmp.eq.s32.totalorder %s73, 0
    %s76 = sadd.s32 %s75, 1
    %s77 = scalar_select %p74, %s75, %s76
    %p80 = pneg %p74
    %p81 = scmp.eq.s32.totalorder %s13, 1
    %p82 = por %p80, %p81
    %p83 = scmp.ne.s32.totalorder %s75, %s78
    %p84 = scmp.eq.s32.totalorder %s13, 0
    %p85 = por %p83, %p84
    %p86 = scmp.ne.s32.totalorder %s75, %s78
    %p87 = scmp.eq.s32.totalorder %s18, 1
    %p88 = por %p86, %p87
    %p89 = scmp.ne.s32.totalorder %s78, %s79
    %p90 = scmp.eq.s32.totalorder %s18, 0
    %p91 = por %p89, %p90
    %p92 = scmp.ne.s32.totalorder %s78, %s79
    %p93 = scmp.eq.s32.totalorder %s19, 1
    %p94 = por %p92, %p93
    %p96 = scmp.ne.s32.totalorder %s79, %s95
    %p97 = scmp.eq.s32.totalorder %s19, 0
    %p98 = por %p96, %p97
    %s100 = sadd.s32 %s99, 1
    %p103 = scmp.eq.s32.totalorder %s13, 1
    %p104 = scmp.ne.s32.totalorder %s99, %s101
    %p105 = scmp.eq.s32.totalorder %s13, 0
    %p106 = por %p104, %p105
    %p107 = scmp.ne.s32.totalorder %s99, %s101
    %p108 = scmp.eq.s32.totalorder %s18, 1
    %p109 = por %p107, %p108
    %p110 = scmp.ne.s32.totalorder %s101, %s102
    %p111 = scmp.eq.s32.totalorder %s18, 0
    %p112 = por %p110, %p111
    %p113 = scmp.ne.s32.totalorder %s101, %s102
    %p114 = scmp.eq.s32.totalorder %s19, 1
    %p115 = por %p113, %p114
    %p117 = scmp.ne.s32.totalorder %s102, %s116
    %p118 = scmp.eq.s32.totalorder %s19, 0
    %p119 = por %p117, %p118
    %s121 = sadd.s32 %s120, 1
    %p124 = scmp.eq.s32.totalorder %s13, 1
    %p125 = scmp.ne.s32.totalorder %s120, %s122
    %p126 = scmp.eq.s32.totalorder %s13, 0
    %p127 = por %p125, %p126
    %p128 = scmp.ne.s32.totalorder %s120, %s122
    %p129 = scmp.eq.s32.totalorder %s18, 1
    %p130 = por %p128, %p129
    %p131 = scmp.ne.s32.totalorder %s122, %s123
    %p132 = scmp.eq.s32.totalorder %s18, 0
    %p133 = por %p131, %p132
    %p134 = scmp.ne.s32.totalorder %s122, %s123
    %p135 = scmp.eq.s32.totalorder %s19, 1
    %p136 = por %p134, %p135
    %p138 = scmp.ne.s32.totalorder %s123, %s137
    %p139 = scmp.eq.s32.totalorder %s19, 0
    %p140 = por %p138, %p139
    %s142 = sadd.s32 %s141, 1
    %p145 = scmp.eq.s32.totalorder %s13, 1
    %p146 = scmp.ne.s32.totalorder %s141, %s143
    %p147 = scmp.eq.s32.totalorder %s13, 0
    %p148 = por %p146, %p147
    %p149 = scmp.ne.s32.totalorder %s141, %s143
    %p150 = scmp.eq.s32.totalorder %s18, 1
    %p151 = por %p149, %p150
    %p152 = scmp.ne.s32.totalorder %s143, %s144
    %p153 = scmp.eq.s32.totalorder %s18, 0
    %p154 = por %p152, %p153
    %p155 = scmp.ne.s32.totalorder %s143, %s144
    %p156 = scmp.eq.s32.totalorder %s19, 1
    %p157 = por %p155, %p156
    %p159 = scmp.ne.s32.totalorder %s144, %s158
    %p160 = scmp.eq.s32.totalorder %s19, 0
    %p161 = por %p159, %p160
    %s163 = sadd.s32 %s162, 1
    %p166 = scmp.eq.s32.totalorder %s13, 1
    %p167 = scmp.ne.s32.totalorder %s162, %s164
    %p168 = scmp.eq.s32.totalorder %s13, 0
    %p169 = por %p167, %p168
    %p170 = scmp.ne.s32.totalorder %s162, %s164
    %p171 = scmp.eq.s32.totalorder %s18, 1
    %p172 = por %p170, %p171
    %p173 = scmp.ne.s32.totalorder %s164, %s165
    %p174 = scmp.eq.s32.totalorder %s18, 0
    %p175 = por %p173, %p174
    %p176 = scmp.ne.s32.totalorder %s164, %s165
    %p177 = scmp.eq.s32.totalorder %s19, 1
    %p178 = por %p176, %p177
    %p180 = scmp.ne.s32.totalorder %s165, %s179
    %p181 = scmp.eq.s32.totalorder %s19, 0
    %p182 = por %p180, %p181
    %s183 = ssub.s32 %s13, %s20
    %p184 = scmp.eq.s32.totalorder %s183, 0
    %s186 = sadd.s32 %s185, 1
    %s187 = scalar_select %p184, %s185, %s186
    %p190 = pneg %p184
    %p191 = scmp.eq.s32.totalorder %s13, 1
    %p192 = por %p190, %p191
    %p193 = scmp.ne.s32.totalorder %s185, %s188
    %p194 = scmp.eq.s32.totalorder %s13, 0
    %p195 = por %p193, %p194
    %p196 = scmp.ne.s32.totalorder %s185, %s188
    %p197 = scmp.eq.s32.totalorder %s18, 1
    %p198 = por %p196, %p197
    %p199 = scmp.ne.s32.totalorder %s188, %s189
    %p200 = scmp.eq.s32.totalorder %s18, 0
    %p201 = por %p199, %p200
    %p202 = scmp.ne.s32.totalorder %s188, %s189
    %p203 = scmp.eq.s32.totalorder %s19, 1
    %p204 = por %p202, %p203
    %p206 = scmp.ne.s32.totalorder %s189, %s205
    %p207 = scmp.eq.s32.totalorder %s19, 0
    %p208 = por %p206, %p207
    %p209 = scmp.le.s32.totalorder 1, %s13
    %p210 = scmp.lt.s32.totalorder %s13, 3
    %p211 = pnand %p209, %p210
    %p212 = pneg %p211
    // Predicated region
    $region9: #{unet_forward.9} parent=5 // pred_check
      _
    $region10: #{unet_forward.9} parent=5 // pred_check_branch
      %214 = sbr.rel (%p211) target = $region12
    $region11: #{unet_forward.9} parent=5 // pred_region
      %s215 = ssub.s32 %s13, 1
      // Predicated region
      $region13: #{unet_forward.9} parent=11 // pred_check
        %p216 = pneg %p112
      $region14: #{unet_forward.9} parent=11 // pred_check_branch
        %218 = sbr.rel (%p216) target = $region16
      $region15: #{unet_forward.9} parent=11 // pred_region
        _
      $region16: #{unet_forward.9} parent=11 // pred_fallthru
        _
      // Predicated region
      $region17: #{unet_forward.9} parent=11 // pred_check
        %p219 = pneg %p133
      $region18: #{unet_forward.9} parent=11 // pred_check_branch
        %221 = sbr.rel (%p219) target = $region20
      $region19: #{unet_forward.9} parent=11 // pred_region
        _
      $region20: #{unet_forward.9} parent=11 // pred_fallthru
        _
      // Predicated region
      $region21: #{unet_forward.9} parent=11 // pred_check
        %p222 = pneg %p154
      $region22: #{unet_forward.9} parent=11 // pred_check_branch
        %224 = sbr.rel (%p222) target = $region24
      $region23: #{unet_forward.9} parent=11 // pred_region
        _
      $region24: #{unet_forward.9} parent=11 // pred_fallthru
        _
      // Predicated region
      $region25: #{unet_forward.9} parent=11 // pred_check
        %p225 = pneg %p175
      $region26: #{unet_forward.9} parent=11 // pred_check_branch
        %227 = sbr.rel (%p225) target = $region28
      $region27: #{unet_forward.9} parent=11 // pred_region
        _
      $region28: #{unet_forward.9} parent=11 // pred_fallthru
        _
    $region12: #{unet_forward.9} parent=5 // pred_fallthru
      _
    %p228 = scmp.lt.s32.totalorder %s13, 2
    // Predicated region
    $region29: #{unet_forward.9} parent=5 // pred_check
      %p229 = pneg %p228
    $region30: #{unet_forward.9} parent=5 // pred_check_branch
      %231 = sbr.rel (%p229) target = $region32
    $region31: #{unet_forward.9} parent=5 // pred_region
      // Predicated region
      $region33: #{unet_forward.9} parent=31 // pred_check
        %p232 = pneg %p33
      $region34: #{unet_forward.9} parent=31 // pred_check_branch
        %234 = sbr.rel (%p232) target = $region36
      $region35: #{unet_forward.9} parent=31 // pred_region
        %p235 = scmp.lt.s32.totalorder %s13, 1
        %s236 = scalar_select %p235, %s13, 1
        %s237 = smul.addr %s236, 2
        %s238 = smul.addr %s237, 2
        %s239 = scalar_lea.vmem %s0, %s238
      $region36: #{unet_forward.9} parent=31 // pred_fallthru
        _
      // Predicated region
      $region37: #{unet_forward.9} parent=31 // pred_check
        %p240 = pneg %p59
      $region38: #{unet_forward.9} parent=31 // pred_check_branch
        %242 = sbr.rel (%p240) target = $region40
      $region39: #{unet_forward.9} parent=31 // pred_region
        %p243 = scmp.lt.s32.totalorder %s13, 1
        %s244 = scalar_select %p243, %s13, 1
        %s245 = smul.addr %s244, 2
        %s246 = scalar_lea.vmem %s1, %s245
      $region40: #{unet_forward.9} parent=31 // pred_fallthru
        _
      // Predicated region
      $region41: #{unet_forward.9} parent=31 // pred_check
        %p247 = pneg %p85
      $region42: #{unet_forward.9} parent=31 // pred_check_branch
        %249 = sbr.rel (%p247) target = $region44
      $region43: #{unet_forward.9} parent=31 // pred_region
        %p250 = scmp.lt.s32.totalorder %s13, 1
        %s251 = scalar_select %p250, %s13, 1
        %s252 = smul.addr %s251, 2
        %s253 = scalar_lea.vmem %s2, %s252
      $region44: #{unet_forward.9} parent=31 // pred_fallthru
        _
    $region32: #{unet_forward.9} parent=5 // pred_fallthru
      _
    %p254 = scmp.le.s32.totalorder 1, %s13
    %p255 = scmp.lt.s32.totalorder %s13, 3
    %p256 = pnand %p254, %p255
    %p257 = pneg %p256
    // Predicated region
    $region45: #{unet_forward.9} parent=5 // pred_check
      _
    $region46: #{unet_forward.9} parent=5 // pred_check_branch
      %259 = sbr.rel (%p256) target = $region48
    $region47: #{unet_forward.9} parent=5 // pred_region
      %s260 = ssub.s32 %s13, 1
      %p261 = scmp.lt.s32.totalorder %s18, 1
      %s262 = scalar_select %p261, %s18, 1
      %s263 = smul.addr %s262, 2
      %s264 = smul.addr %s263, 2
      %s265 = scalar_lea.vmem %s0, %s264
      %p266 = pneg %p39
      %p267 = pneg %p36
      %p268 = scmp.lt.s32.totalorder %s18, 1
      %s269 = scalar_select %p268, %s18, 1
      %s270 = smul.addr %s269, 2
      %s271 = scalar_lea.vmem %s1, %s270
      %p272 = pneg %p65
      %p273 = pneg %p62
      %p274 = scmp.lt.s32.totalorder %s18, 1
      %s275 = scalar_select %p274, %s18, 1
      %s276 = smul.addr %s275, 2
      %s277 = scalar_lea.vmem %s2, %s276
      %p278 = pneg %p91
      %p279 = pneg %p88
      %p280 = pneg %p112
      %p281 = pneg %p109
      %p282 = pneg %p133
      %p283 = pneg %p130
      %p284 = pneg %p154
      %p285 = pneg %p151
      %p286 = pneg %p175
      %p287 = pneg %p172
      %p288 = pneg %p201
      %p289 = pneg %p198
      %p290 = scmp.lt.s32.totalorder %s18, 1
      %s291 = scalar_select %p290, %s18, 1
      %s292 = smul.addr %s291, 2
      %s293 = smul.addr %s292, 2
      %s294 = scalar_lea.vmem %s7, %s293
      %p295 = scmp.lt.s32.totalorder %s18, 1
      %s296 = scalar_select %p295, %s18, 1
      %s297 = smul.addr %s296, 2
      %s298 = smul.addr %s297, 2
      %s299 = scalar_lea.vmem %s0, %s298
      %p300 = scmp.lt.s32.totalorder %s18, 1
      %s301 = scalar_select %p300, %s18, 1
      %s302 = smul.addr %s301, 2
      %s303 = scalar_lea.vmem %s1, %s302
      %p304 = scmp.lt.s32.totalorder %s18, 1
      %s305 = scalar_select %p304, %s18, 1
      %s306 = smul.addr %s305, 2
      %s307 = scalar_lea.vmem %s2, %s306
      %p308 = scmp.lt.s32.totalorder %s18, 1
      %s309 = scalar_select %p308, %s18, 1
      %s310 = smul.addr %s309, 2
      %s311 = smul.addr %s310, 2
      %s312 = scalar_lea.vmem %s7, %s311
      %v313 = vld [vmem:[%s299] sm:$0xf]
      %v314 = vld [vmem:[%s3] sm:$0xff]
      %v315 = vld [vmem:[%s3 + $0x8] sm:$0xff]
      %v316 = vld [vmem:[%s3 + $0x10] sm:$0xff]
      %v317 = vld [vmem:[%s3 + $0x18] sm:$0xff]
      %v318 = vld [vmem:[%s3 + $0x20] sm:$0xff]
      %v319 = vld [vmem:[%s3 + $0x28] sm:$0xff]
      %v320 = vld [vmem:[%s3 + $0x30] sm:$0xff]
      %v321 = vld [vmem:[%s3 + $0x38] sm:$0xff]
      %v322 = vld [vmem:[%s3 + $0x40] sm:$0xff]
      %v323 = vld [vmem:[%s3 + $0x48] sm:$0xff]
      %v324 = vld [vmem:[%s3 + $0x50] sm:$0xff]
      %v325 = vld [vmem:[%s3 + $0x58] sm:$0xff]
      %v326 = vld [vmem:[%s3 + $0x60] sm:$0xff]
      %v327 = vld [vmem:[%s3 + $0x68] sm:$0xff]
      %v328 = vld [vmem:[%s3 + $0x70] sm:$0xff]
      %v329 = vld [vmem:[%s3 + $0x78] sm:$0xff]
      %v330 = vld [vmem:[%s3 + $0x80] sm:$0xff]
      %v331 = vld [vmem:[%s3 + $0x88] sm:$0xff]
      %v332 = vld [vmem:[%s3 + $0x90] sm:$0xff]
      %v333 = vld [vmem:[%s3 + $0x98] sm:$0xff]
      %v334 = vld [vmem:[%s3 + $0xa0] sm:$0xff]
      %v335 = vld [vmem:[%s3 + $0xa8] sm:$0xff]
      %v336 = vld [vmem:[%s3 + $0xb0] sm:$0xff]
      %v337 = vld [vmem:[%s3 + $0xb8] sm:$0xff]
      %v338 = vld [vmem:[%s3 + $0xc0] sm:$0xff]
      %v339 = vld [vmem:[%s3 + $0xc8] sm:$0xff]
      %v340 = vld [vmem:[%s3 + $0xd0] sm:$0xff]
      %v341 = vld [vmem:[%s3 + $0xd8] sm:$0xff]
      %v342 = vld [vmem:[%s3 + $0xe0] sm:$0xff]
      %v343 = vld [vmem:[%s3 + $0xe8] sm:$0xff]
      %v344 = vld [vmem:[%s3 + $0xf0] sm:$0xff]
      %v345 = vld [vmem:[%s3 + $0xf8] sm:$0xff]
      %v348 = vunpack.c.l.s4 1983009808
      %v349 = vunpack.c.0.s8 %v348
      %v350 = vlaneseq
      %v351 = vshrl.u32 %v350, 7
      %v352 = vsub.s32 %v349, %v351
      %v353 = vrot.slane %v313, %v352
      %v354 = vcombine.high %v353, %v353
      %v357 = vpack.c.bf16 %v353, %v353
      %v358 = vpack.c.bf16 %v354, %v354
      %v359 = vld [vmem:[%s303] sm:$0x3]
      %v361 = vlaneseq
      %v362 = vshrl.u32 %v361, 7
      %v363 = vsub.s32 0, %v362
      %v364 = vrot.slane %v359, %v363
      %v365 = vlaneseq
      %v366 = vshrl.u32 %v365, 7
      %v367 = vsub.s32 1, %v366
      %v368 = vrot.slane %v359, %v367
      %v403 = vunpack.c.l.b16 %v314
      %v404 = vunpack.c.h.b16 %v314
      %v405 = vunpack.c.l.b16 %v315
      %v406 = vunpack.c.h.b16 %v315
      %v407 = vunpack.c.l.b16 %v316
      %v408 = vunpack.c.h.b16 %v316
      %v409 = vunpack.c.l.b16 %v317
      %v410 = vunpack.c.h.b16 %v317
      %v411 = vunpack.c.l.b16 %v318
      %v412 = vunpack.c.h.b16 %v318
      %v413 = vunpack.c.l.b16 %v319
      %v414 = vunpack.c.h.b16 %v319
      %v415 = vunpack.c.l.b16 %v320
      %v416 = vunpack.c.h.b16 %v320
      %v417 = vunpack.c.l.b16 %v321
      %v418 = vunpack.c.h.b16 %v321
      %v419 = vunpack.c.l.b16 %v322
      %v420 = vunpack.c.h.b16 %v322
      %v421 = vunpack.c.l.b16 %v323
      %v422 = vunpack.c.h.b16 %v323
      %v423 = vunpack.c.l.b16 %v324
      %v424 = vunpack.c.h.b16 %v324
      %v425 = vunpack.c.l.b16 %v325
      %v426 = vunpack.c.h.b16 %v325
      %v427 = vunpack.c.l.b16 %v326
      %v428 = vunpack.c.h.b16 %v326
      %v429 = vunpack.c.l.b16 %v327
      %v430 = vunpack.c.h.b16 %v327
      %v431 = vunpack.c.l.b16 %v328
      %v432 = vunpack.c.h.b16 %v328
      %v433 = vunpack.c.l.b16 %v329
      %v434 = vunpack.c.h.b16 %v329
      %v435 = vunpack.c.l.b16 %v330
      %v436 = vunpack.c.h.b16 %v330
      %v437 = vunpack.c.l.b16 %v331
      %v438 = vunpack.c.h.b16 %v331
      %v439 = vunpack.c.l.b16 %v332
      %v440 = vunpack.c.h.b16 %v332
      %v441 = vunpack.c.l.b16 %v333
      %v442 = vunpack.c.h.b16 %v333
      %v443 = vunpack.c.l.b16 %v334
      %v444 = vunpack.c.h.b16 %v334
      %v445 = vunpack.c.l.b16 %v335
      %v446 = vunpack.c.h.b16 %v335
      %v447 = vunpack.c.l.b16 %v336
      %v448 = vunpack.c.h.b16 %v336
      %v449 = vunpack.c.l.b16 %v337
      %v450 = vunpack.c.h.b16 %v337
      %v451 = vunpack.c.l.b16 %v338
      %v452 = vunpack.c.h.b16 %v338
      %v453 = vunpack.c.l.b16 %v339
      %v454 = vunpack.c.h.b16 %v339
      %v455 = vunpack.c.l.b16 %v340
      %v456 = vunpack.c.h.b16 %v340
      %v457 = vunpack.c.l.b16 %v341
      %v458 = vunpack.c.h.b16 %v341
      %v459 = vunpack.c.l.b16 %v342
      %v460 = vunpack.c.h.b16 %v342
      %v461 = vunpack.c.l.b16 %v343
      %v462 = vunpack.c.h.b16 %v343
      %v463 = vunpack.c.l.b16 %v344
      %v464 = vunpack.c.h.b16 %v344
      %v465 = vunpack.c.l.b16 %v345
      %v466 = vunpack.c.h.b16 %v345
      %v467 = vpack.c.b16 %v405, %v403
      %v468 = vpack.c.b16 %v406, %v404
      %v469 = vpack.c.b16 %v409, %v407
      %v470 = vpack.c.b16 %v410, %v408
      %v471 = vpack.c.b16 %v413, %v411
      %v472 = vpack.c.b16 %v414, %v412
      %v473 = vpack.c.b16 %v417, %v415
      %v474 = vpack.c.b16 %v418, %v416
      %v475 = vpack.c.b16 %v421, %v419
      %v476 = vpack.c.b16 %v422, %v420
      %v477 = vpack.c.b16 %v425, %v423
      %v478 = vpack.c.b16 %v426, %v424
      %v479 = vpack.c.b16 %v429, %v427
      %v480 = vpack.c.b16 %v430, %v428
      %v481 = vpack.c.b16 %v433, %v431
      %v482 = vpack.c.b16 %v434, %v432
      %v483 = vpack.c.b16 %v437, %v435
      %v484 = vpack.c.b16 %v438, %v436
      %v485 = vpack.c.b16 %v441, %v439
      %v486 = vpack.c.b16 %v442, %v440
      %v487 = vpack.c.b16 %v445, %v443
      %v488 = vpack.c.b16 %v446, %v444
      %v489 = vpack.c.b16 %v449, %v447
      %v490 = vpack.c.b16 %v450, %v448
      %v491 = vpack.c.b16 %v453, %v451
      %v492 = vpack.c.b16 %v454, %v452
      %v493 = vpack.c.b16 %v457, %v455
      %v494 = vpack.c.b16 %v458, %v456
      %v495 = vpack.c.b16 %v461, %v459
      %v496 = vpack.c.b16 %v462, %v460
      %v497 = vpack.c.b16 %v465, %v463
      %v498 = vpack.c.b16 %v466, %v464
      %531 = vmatprep.subr.bf16.mxu0 %v468
      %532 = vmatpush1.bf16.msra.mxu0 %v467
      %533 = vmatprep.subr.bf16.mxu0 %v470
      %534 = vmatpush1.bf16.msra.mxu0 %v469
      %535 = vmatprep.subr.bf16.mxu0 %v472
      %536 = vmatpush1.bf16.msra.mxu0 %v471
      %537 = vmatprep.subr.bf16.mxu0 %v474
      %538 = vmatpush1.bf16.msra.mxu0 %v473
      %539 = vmatprep.subr.bf16.mxu0 %v476
      %540 = vmatpush1.bf16.msra.mxu0 %v475
      %541 = vmatprep.subr.bf16.mxu0 %v478
      %542 = vmatpush1.bf16.msra.mxu0 %v477
      %543 = vmatprep.subr.bf16.mxu0 %v480
      %544 = vmatpush1.bf16.msra.mxu0 %v479
      %545 = vmatprep.subr.bf16.mxu0 %v482
      %546 = vmatpush1.bf16.msra.mxu0 %v481
      %547 = vmatprep.subr.bf16.mxu0 %v484
      %548 = vmatpush1.bf16.msra.mxu0 %v483
      %549 = vmatprep.subr.bf16.mxu0 %v486
      %550 = vmatpush1.bf16.msra.mxu0 %v485
      %551 = vmatprep.subr.bf16.mxu0 %v488
      %552 = vmatpush1.bf16.msra.mxu0 %v487
      %553 = vmatprep.subr.bf16.mxu0 %v490
      %554 = vmatpush1.bf16.msra.mxu0 %v489
      %555 = vmatprep.subr.bf16.mxu0 %v492
      %556 = vmatpush1.bf16.msra.mxu0 %v491
      %557 = vmatprep.subr.bf16.mxu0 %v494
      %558 = vmatpush1.bf16.msra.mxu0 %v493
      %559 = vmatprep.subr.bf16.mxu0 %v496
      %560 = vmatpush1.bf16.msra.mxu0 %v495
      %561 = vmatprep.subr.bf16.mxu0 %v498
      %562 = vmatpush1.bf16.msra.mxu0 %v497
      %563 = vmatprep.mubr.bf16.mxu0 %v358
      %564 = vmatmul.mubr.bf16.gmra.mrb[0].mxu0 %v357
      %v565 = vpop.f32.mrb[0].mxu0
      %v566 = vadd.f32 %v364, %v565
      %v567 = vpop.f32.mrb[0].mxu0
      %v568 = vadd.f32 %v368, %v567
      %v569 = vpop.f32.mrb[0].mxu0
      %v570 = vpop.f32.mrb[0].mxu0
      %571 = vdwg.mxu0
      %v572 = vmax.f32 %v566, 0.0
      %v573 = vmax.f32 %v568, 0.0
      %v574 = vld [vmem:[%s4] sm:$0xff]
      %v575 = vld [vmem:[%s4 + $0x8] sm:$0xff]
      %v576 = vld [vmem:[%s4 + $0x10] sm:$0xff]
      %v577 = vld [vmem:[%s4 + $0x18] sm:$0xff]
      %v578 = vld [vmem:[%s4 + $0x20] sm:$0xff]
      %v579 = vld [vmem:[%s4 + $0x28] sm:$0xff]
      %v580 = vld [vmem:[%s4 + $0x30] sm:$0xff]
      %v581 = vld [vmem:[%s4 + $0x38] sm:$0xff]
      %v582 = vld [vmem:[%s4 + $0x40] sm:$0xff]
      %v583 = vld [vmem:[%s4 + $0x48] sm:$0xff]
      %v584 = vld [vmem:[%s4 + $0x50] sm:$0xff]
      %v585 = vld [vmem:[%s4 + $0x58] sm:$0xff]
      %v586 = vld [vmem:[%s4 + $0x60] sm:$0xff]
      %v587 = vld [vmem:[%s4 + $0x68] sm:$0xff]
      %v588 = vld [vmem:[%s4 + $0x70] sm:$0xff]
      %v589 = vld [vmem:[%s4 + $0x78] sm:$0xff]
      %v590 = vld [vmem:[%s4 + $0x80] sm:$0xff]
      %v591 = vld [vmem:[%s4 + $0x88] sm:$0xff]
      %v592 = vld [vmem:[%s4 + $0x90] sm:$0xff]
      %v593 = vld [vmem:[%s4 + $0x98] sm:$0xff]
      %v594 = vld [vmem:[%s4 + $0xa0] sm:$0xff]
      %v595 = vld [vmem:[%s4 + $0xa8] sm:$0xff]
      %v596 = vld [vmem:[%s4 + $0xb0] sm:$0xff]
      %v597 = vld [vmem:[%s4 + $0xb8] sm:$0xff]
      %v598 = vld [vmem:[%s4 + $0xc0] sm:$0xff]
      %v599 = vld [vmem:[%s4 + $0xc8] sm:$0xff]
      %v600 = vld [vmem:[%s4 + $0xd0] sm:$0xff]
      %v601 = vld [vmem:[%s4 + $0xd8] sm:$0xff]
      %v602 = vld [vmem:[%s4 + $0xe0] sm:$0xff]
      %v603 = vld [vmem:[%s4 + $0xe8] sm:$0xff]
      %v604 = vld [vmem:[%s4 + $0xf0] sm:$0xff]
      %v605 = vld [vmem:[%s4 + $0xf8] sm:$0xff]
      %v606 = vpack.c.bf16 %v572, %v572
      %v607 = vpack.c.bf16 %v573, %v573
      %v608 = vld [vmem:[%s5] sm:$0x3]
      %v610 = vlaneseq
      %v611 = vshrl.u32 %v610, 7
      %v612 = vsub.s32 0, %v611
      %v613 = vrot.slane %v608, %v612
      %v614 = vlaneseq
      %v615 = vshrl.u32 %v614, 7
      %v616 = vsub.s32 1, %v615
      %v617 = vrot.slane %v608, %v616
      %v652 = vunpack.c.l.b16 %v574
      %v653 = vunpack.c.h.b16 %v574
      %v654 = vunpack.c.l.b16 %v575
      %v655 = vunpack.c.h.b16 %v575
      %v656 = vunpack.c.l.b16 %v576
      %v657 = vunpack.c.h.b16 %v576
      %v658 = vunpack.c.l.b16 %v577
      %v659 = vunpack.c.h.b16 %v577
      %v660 = vunpack.c.l.b16 %v578
      %v661 = vunpack.c.h.b16 %v578
      %v662 = vunpack.c.l.b16 %v579
      %v663 = vunpack.c.h.b16 %v579
      %v664 = vunpack.c.l.b16 %v580
      %v665 = vunpack.c.h.b16 %v580
      %v666 = vunpack.c.l.b16 %v581
      %v667 = vunpack.c.h.b16 %v581
      %v668 = vunpack.c.l.b16 %v582
      %v669 = vunpack.c.h.b16 %v582
      %v670 = vunpack.c.l.b16 %v583
      %v671 = vunpack.c.h.b16 %v583
      %v672 = vunpack.c.l.b16 %v584
      %v673 = vunpack.c.h.b16 %v584
      %v674 = vunpack.c.l.b16 %v585
      %v675 = vunpack.c.h.b16 %v585
      %v676 = vunpack.c.l.b16 %v586
      %v677 = vunpack.c.h.b16 %v586
      %v678 = vunpack.c.l.b16 %v587
      %v679 = vunpack.c.h.b16 %v587
      %v680 = vunpack.c.l.b16 %v588
      %v681 = vunpack.c.h.b16 %v588
      %v682 = vunpack.c.l.b16 %v589
      %v683 = vunpack.c.h.b16 %v589
      %v684 = vunpack.c.l.b16 %v590
      %v685 = vunpack.c.h.b16 %v590
      %v686 = vunpack.c.l.b16 %v591
      %v687 = vunpack.c.h.b16 %v591
      %v688 = vunpack.c.l.b16 %v592
      %v689 = vunpack.c.h.b16 %v592
      %v690 = vunpack.c.l.b16 %v593
      %v691 = vunpack.c.h.b16 %v593
      %v692 = vunpack.c.l.b16 %v594
      %v693 = vunpack.c.h.b16 %v594
      %v694 = vunpack.c.l.b16 %v595
      %v695 = vunpack.c.h.b16 %v595
      %v696 = vunpack.c.l.b16 %v596
      %v697 = vunpack.c.h.b16 %v596
      %v698 = vunpack.c.l.b16 %v597
      %v699 = vunpack.c.h.b16 %v597
      %v700 = vunpack.c.l.b16 %v598
      %v701 = vunpack.c.h.b16 %v598
      %v702 = vunpack.c.l.b16 %v599
      %v703 = vunpack.c.h.b16 %v599
      %v704 = vunpack.c.l.b16 %v600
      %v705 = vunpack.c.h.b16 %v600
      %v706 = vunpack.c.l.b16 %v601
      %v707 = vunpack.c.h.b16 %v601
      %v708 = vunpack.c.l.b16 %v602
      %v709 = vunpack.c.h.b16 %v602
      %v710 = vunpack.c.l.b16 %v603
      %v711 = vunpack.c.h.b16 %v603
      %v712 = vunpack.c.l.b16 %v604
      %v713 = vunpack.c.h.b16 %v604
      %v714 = vunpack.c.l.b16 %v605
      %v715 = vunpack.c.h.b16 %v605
      %v716 = vpack.c.b16 %v654, %v652
      %v717 = vpack.c.b16 %v655, %v653
      %v718 = vpack.c.b16 %v658, %v656
      %v719 = vpack.c.b16 %v659, %v657
      %v720 = vpack.c.b16 %v662, %v660
      %v721 = vpack.c.b16 %v663, %v661
      %v722 = vpack.c.b16 %v666, %v664
      %v723 = vpack.c.b16 %v667, %v665
      %v724 = vpack.c.b16 %v670, %v668
      %v725 = vpack.c.b16 %v671, %v669
      %v726 = vpack.c.b16 %v674, %v672
      %v727 = vpack.c.b16 %v675, %v673
      %v728 = vpack.c.b16 %v678, %v676
      %v729 = vpack.c.b16 %v679, %v677
      %v730 = vpack.c.b16 %v682, %v680
      %v731 = vpack.c.b16 %v683, %v681
      %v732 = vpack.c.b16 %v686, %v684
      %v733 = vpack.c.b16 %v687, %v685
      %v734 = vpack.c.b16 %v690, %v688
      %v735 = vpack.c.b16 %v691, %v689
      %v736 = vpack.c.b16 %v694, %v692
      %v737 = vpack.c.b16 %v695, %v693
      %v738 = vpack.c.b16 %v698, %v696
      %v739 = vpack.c.b16 %v699, %v697
      %v740 = vpack.c.b16 %v702, %v700
      %v741 = vpack.c.b16 %v703, %v701
      %v742 = vpack.c.b16 %v706, %v704
      %v743 = vpack.c.b16 %v707, %v705
      %v744 = vpack.c.b16 %v710, %v708
      %v745 = vpack.c.b16 %v711, %v709
      %v746 = vpack.c.b16 %v714, %v712
      %v747 = vpack.c.b16 %v715, %v713
      %780 = vmatprep.subr.bf16.mxu0 %v717
      %781 = vmatpush1.bf16.msra.mxu0 %v716
      %782 = vmatprep.subr.bf16.mxu0 %v719
      %783 = vmatpush1.bf16.msra.mxu0 %v718
      %784 = vmatprep.subr.bf16.mxu0 %v721
      %785 = vmatpush1.bf16.msra.mxu0 %v720
      %786 = vmatprep.subr.bf16.mxu0 %v723
      %787 = vmatpush1.bf16.msra.mxu0 %v722
      %788 = vmatprep.subr.bf16.mxu0 %v725
      %789 = vmatpush1.bf16.msra.mxu0 %v724
      %790 = vmatprep.subr.bf16.mxu0 %v727
      %791 = vmatpush1.bf16.msra.mxu0 %v726
      %792 = vmatprep.subr.bf16.mxu0 %v729
      %793 = vmatpush1.bf16.msra.mxu0 %v728
      %794 = vmatprep.subr.bf16.mxu0 %v731
      %795 = vmatpush1.bf16.msra.mxu0 %v730
      %796 = vmatprep.subr.bf16.mxu0 %v733
      %797 = vmatpush1.bf16.msra.mxu0 %v732
      %798 = vmatprep.subr.bf16.mxu0 %v735
      %799 = vmatpush1.bf16.msra.mxu0 %v734
      %800 = vmatprep.subr.bf16.mxu0 %v737
      %801 = vmatpush1.bf16.msra.mxu0 %v736
      %802 = vmatprep.subr.bf16.mxu0 %v739
      %803 = vmatpush1.bf16.msra.mxu0 %v738
      %804 = vmatprep.subr.bf16.mxu0 %v741
      %805 = vmatpush1.bf16.msra.mxu0 %v740
      %806 = vmatprep.subr.bf16.mxu0 %v743
      %807 = vmatpush1.bf16.msra.mxu0 %v742
      %808 = vmatprep.subr.bf16.mxu0 %v745
      %809 = vmatpush1.bf16.msra.mxu0 %v744
      %810 = vmatprep.subr.bf16.mxu0 %v747
      %811 = vmatpush1.bf16.msra.mxu0 %v746
      %812 = vmatprep.mubr.bf16.mxu0 %v607
      %813 = vmatmul.mubr.bf16.gmra.mrb[0].mxu0 %v606
      %v814 = vpop.f32.mrb[0].mxu0
      %v815 = vadd.f32 %v613, %v814
      %v816 = vpop.f32.mrb[0].mxu0
      %v817 = vadd.f32 %v617, %v816
      %v818 = vpop.f32.mrb[0].mxu0
      %v819 = vpop.f32.mrb[0].mxu0
      %820 = vdwg.mxu0
      %v821 = vld [vmem:[%s6] sm:$0xff]
      %v822 = vld [vmem:[%s6 + $0x8] sm:$0xff]
      %v823 = vld [vmem:[%s6 + $0x10] sm:$0xff]
      %v824 = vld [vmem:[%s6 + $0x18] sm:$0xff]
      %v825 = vld [vmem:[%s6 + $0x20] sm:$0xff]
      %v826 = vld [vmem:[%s6 + $0x28] sm:$0xff]
      %v827 = vld [vmem:[%s6 + $0x30] sm:$0xff]
      %v828 = vld [vmem:[%s6 + $0x38] sm:$0xff]
      %v829 = vld [vmem:[%s6 + $0x40] sm:$0xff]
      %v830 = vld [vmem:[%s6 + $0x48] sm:$0xff]
      %v831 = vld [vmem:[%s6 + $0x50] sm:$0xff]
      %v832 = vld [vmem:[%s6 + $0x58] sm:$0xff]
      %v833 = vld [vmem:[%s6 + $0x60] sm:$0xff]
      %v834 = vld [vmem:[%s6 + $0x68] sm:$0xff]
      %v835 = vld [vmem:[%s6 + $0x70] sm:$0xff]
      %v836 = vld [vmem:[%s6 + $0x78] sm:$0xff]
      %v837 = vld [vmem:[%s6 + $0x80] sm:$0xff]
      %v838 = vld [vmem:[%s6 + $0x88] sm:$0xff]
      %v839 = vld [vmem:[%s6 + $0x90] sm:$0xff]
      %v840 = vld [vmem:[%s6 + $0x98] sm:$0xff]
      %v841 = vld [vmem:[%s6 + $0xa0] sm:$0xff]
      %v842 = vld [vmem:[%s6 + $0xa8] sm:$0xff]
      %v843 = vld [vmem:[%s6 + $0xb0] sm:$0xff]
      %v844 = vld [vmem:[%s6 + $0xb8] sm:$0xff]
      %v845 = vld [vmem:[%s6 + $0xc0] sm:$0xff]
      %v846 = vld [vmem:[%s6 + $0xc8] sm:$0xff]
      %v847 = vld [vmem:[%s6 + $0xd0] sm:$0xff]
      %v848 = vld [vmem:[%s6 + $0xd8] sm:$0xff]
      %v849 = vld [vmem:[%s6 + $0xe0] sm:$0xff]
      %v850 = vld [vmem:[%s6 + $0xe8] sm:$0xff]
      %v851 = vld [vmem:[%s6 + $0xf0] sm:$0xff]
      %v852 = vld [vmem:[%s6 + $0xf8] sm:$0xff]
      %v853 = vld [vmem:[%s307] sm:$0x3]
      %v855 = vlaneseq
      %v856 = vshrl.u32 %v855, 7
      %v857 = vsub.s32 0, %v856
      %v858 = vrot.slane %v853, %v857
      %v859 = vlaneseq
      %v860 = vshrl.u32 %v859, 7
      %v861 = vsub.s32 1, %v860
      %v862 = vrot.slane %v853, %v861
      %v897 = vunpack.c.l.b16 %v821
      %v898 = vunpack.c.h.b16 %v821
      %v899 = vunpack.c.l.b16 %v822
      %v900 = vunpack.c.h.b16 %v822
      %v901 = vunpack.c.l.b16 %v823
      %v902 = vunpack.c.h.b16 %v823
      %v903 = vunpack.c.l.b16 %v824
      %v904 = vunpack.c.h.b16 %v824
      %v905 = vunpack.c.l.b16 %v825
      %v906 = vunpack.c.h.b16 %v825
      %v907 = vunpack.c.l.b16 %v826
      %v908 = vunpack.c.h.b16 %v826
      %v909 = vunpack.c.l.b16 %v827
      %v910 = vunpack.c.h.b16 %v827
      %v911 = vunpack.c.l.b16 %v828
      %v912 = vunpack.c.h.b16 %v828
      %v913 = vunpack.c.l.b16 %v829
      %v914 = vunpack.c.h.b16 %v829
      %v915 = vunpack.c.l.b16 %v830
      %v916 = vunpack.c.h.b16 %v830
      %v917 = vunpack.c.l.b16 %v831
      %v918 = vunpack.c.h.b16 %v831
      %v919 = vunpack.c.l.b16 %v832
      %v920 = vunpack.c.h.b16 %v832
      %v921 = vunpack.c.l.b16 %v833
      %v922 = vunpack.c.h.b16 %v833
      %v923 = vunpack.c.l.b16 %v834
      %v924 = vunpack.c.h.b16 %v834
      %v925 = vunpack.c.l.b16 %v835
      %v926 = vunpack.c.h.b16 %v835
      %v927 = vunpack.c.l.b16 %v836
      %v928 = vunpack.c.h.b16 %v836
      %v929 = vunpack.c.l.b16 %v837
      %v930 = vunpack.c.h.b16 %v837
      %v931 = vunpack.c.l.b16 %v838
      %v932 = vunpack.c.h.b16 %v838
      %v933 = vunpack.c.l.b16 %v839
      %v934 = vunpack.c.h.b16 %v839
      %v935 = vunpack.c.l.b16 %v840
      %v936 = vunpack.c.h.b16 %v840
      %v937 = vunpack.c.l.b16 %v841
      %v938 = vunpack.c.h.b16 %v841
      %v939 = vunpack.c.l.b16 %v842
      %v940 = vunpack.c.h.b16 %v842
      %v941 = vunpack.c.l.b16 %v843
      %v942 = vunpack.c.h.b16 %v843
      %v943 = vunpack.c.l.b16 %v844
      %v944 = vunpack.c.h.b16 %v844
      %v945 = vunpack.c.l.b16 %v845
      %v946 = vunpack.c.h.b16 %v845
      %v947 = vunpack.c.l.b16 %v846
      %v948 = vunpack.c.h.b16 %v846
      %v949 = vunpack.c.l.b16 %v847
      %v950 = vunpack.c.h.b16 %v847
      %v951 = vunpack.c.l.b16 %v848
      %v952 = vunpack.c.h.b16 %v848
      %v953 = vunpack.c.l.b16 %v849
      %v954 = vunpack.c.h.b16 %v849
      %v955 = vunpack.c.l.b16 %v850
      %v956 = vunpack.c.h.b16 %v850
      %v957 = vunpack.c.l.b16 %v851
      %v958 = vunpack.c.h.b16 %v851
      %v959 = vunpack.c.l.b16 %v852
      %v960 = vunpack.c.h.b16 %v852
      %v961 = vpack.c.b16 %v899, %v897
      %v962 = vpack.c.b16 %v900, %v898
      %v963 = vpack.c.b16 %v903, %v901
      %v964 = vpack.c.b16 %v904, %v902
      %v965 = vpack.c.b16 %v907, %v905
      %v966 = vpack.c.b16 %v908, %v906
      %v967 = vpack.c.b16 %v911, %v909
      %v968 = vpack.c.b16 %v912, %v910
      %v969 = vpack.c.b16 %v915, %v913
      %v970 = vpack.c.b16 %v916, %v914
      %v971 = vpack.c.b16 %v919, %v917
      %v972 = vpack.c.b16 %v920, %v918
      %v973 = vpack.c.b16 %v923, %v921
      %v974 = vpack.c.b16 %v924, %v922
      %v975 = vpack.c.b16 %v927, %v925
      %v976 = vpack.c.b16 %v928, %v926
      %v977 = vpack.c.b16 %v931, %v929
      %v978 = vpack.c.b16 %v932, %v930
      %v979 = vpack.c.b16 %v935, %v933
      %v980 = vpack.c.b16 %v936, %v934
      %v981 = vpack.c.b16 %v939, %v937
      %v982 = vpack.c.b16 %v940, %v938
      %v983 = vpack.c.b16 %v943, %v941
      %v984 = vpack.c.b16 %v944, %v942
      %v985 = vpack.c.b16 %v947, %v945
      %v986 = vpack.c.b16 %v948, %v946
      %v987 = vpack.c.b16 %v951, %v949
      %v988 = vpack.c.b16 %v952, %v950
      %v989 = vpack.c.b16 %v955, %v953
      %v990 = vpack.c.b16 %v956, %v954
      %v991 = vpack.c.b16 %v959, %v957
      %v992 = vpack.c.b16 %v960, %v958
      %1025 = vmatprep.subr.bf16.mxu0 %v962
      %1026 = vmatpush1.bf16.msra.mxu0 %v961
      %1027 = vmatprep.subr.bf16.mxu0 %v964
      %1028 = vmatpush1.bf16.msra.mxu0 %v963
      %1029 = vmatprep.subr.bf16.mxu0 %v966
      %1030 = vmatpush1.bf16.msra.mxu0 %v965
      %1031 = vmatprep.subr.bf16.mxu0 %v968
      %1032 = vmatpush1.bf16.msra.mxu0 %v967
      %1033 = vmatprep.subr.bf16.mxu0 %v970
      %1034 = vmatpush1.bf16.msra.mxu0 %v969
      %1035 = vmatprep.subr.bf16.mxu0 %v972
      %1036 = vmatpush1.bf16.msra.mxu0 %v971
      %1037 = vmatprep.subr.bf16.mxu0 %v974
      %1038 = vmatpush1.bf16.msra.mxu0 %v973
      %1039 = vmatprep.subr.bf16.mxu0 %v976
      %1040 = vmatpush1.bf16.msra.mxu0 %v975
      %1041 = vmatprep.subr.bf16.mxu0 %v978
      %1042 = vmatpush1.bf16.msra.mxu0 %v977
      %1043 = vmatprep.subr.bf16.mxu0 %v980
      %1044 = vmatpush1.bf16.msra.mxu0 %v979
      %1045 = vmatprep.subr.bf16.mxu0 %v982
      %1046 = vmatpush1.bf16.msra.mxu0 %v981
      %1047 = vmatprep.subr.bf16.mxu0 %v984
      %1048 = vmatpush1.bf16.msra.mxu0 %v983
      %1049 = vmatprep.subr.bf16.mxu0 %v986
      %1050 = vmatpush1.bf16.msra.mxu0 %v985
      %1051 = vmatprep.subr.bf16.mxu0 %v988
      %1052 = vmatpush1.bf16.msra.mxu0 %v987
      %1053 = vmatprep.subr.bf16.mxu0 %v990
      %1054 = vmatpush1.bf16.msra.mxu0 %v989
      %1055 = vmatprep.subr.bf16.mxu0 %v992
      %1056 = vmatpush1.bf16.msra.mxu0 %v991
      %1057 = vmatprep.mubr.bf16.mxu0 %v358
      %1058 = vmatmul.mubr.bf16.gmra.mrb[0].mxu0 %v357
      %v1059 = vpop.f32.mrb[0].mxu0
      %v1060 = vadd.f32 %v858, %v1059
      %v1061 = vpop.f32.mrb[0].mxu0
      %v1062 = vadd.f32 %v862, %v1061
      %v1063 = vpop.f32.mrb[0].mxu0
      %v1064 = vpop.f32.mrb[0].mxu0
      %1065 = vdwg.mxu0
      %v1066 = vadd.f32 %v815, %v1060
      %v1067 = vadd.f32 %v817, %v1062
      %v1070 = vcombine.low %v1066, %v1067
      %v1072 = vunpack.c.l.s4 1983009808
      %v1073 = vunpack.c.0.s8 %v1072
      %v1074 = vlaneseq
      %v1075 = vshrl.u32 %v1074, 7
      %v1076 = vsub.s32 %v1073, %v1075
      %v1077 = vrot.slane %v1070, %v1076
      %1079 = vst [vmem:[%s312] sm:$0xf] %v1077
      %p1080 = scmp.lt.s32.totalorder %s18, 1
      %s1081 = scalar_select %p1080, %s18, 1
      %s1082 = smul.addr %s1081, 2
      %s1083 = smul.addr %s1082, 2
      %s1084 = scalar_lea.vmem %s7, %s1083
      // Predicated region
      $region49: #{unet_forward.9} parent=47 // pred_check
        %p1085 = pneg %p198
      $region50: #{unet_forward.9} parent=47 // pred_check_branch
        %1087 = sbr.rel (%p1085) target = $region52
      $region51: #{unet_forward.9} parent=47 // pred_region
        _
      $region52: #{unet_forward.9} parent=47 // pred_fallthru
        _
    $region48: #{unet_forward.9} parent=5 // pred_fallthru
      _
    %p1088 = scmp.le.s32.totalorder 2, %s13
    // Predicated region
    $region53: #{unet_forward.9} parent=5 // pred_check
      %p1089 = pneg %p1088
    $region54: #{unet_forward.9} parent=5 // pred_check_branch
      %1091 = sbr.rel (%p1089) target = $region56
    $region55: #{unet_forward.9} parent=5 // pred_region
      %s1092 = ssub.s32 %s13, 2
      // Predicated region
      $region57: #{unet_forward.9} parent=55 // pred_check
        %p1093 = pneg %p204
      $region58: #{unet_forward.9} parent=55 // pred_check_branch
        %1095 = sbr.rel (%p1093) target = $region60
      $region59: #{unet_forward.9} parent=55 // pred_region
        %p1096 = scmp.lt.s32.totalorder %s19, 1
        %s1097 = scalar_select %p1096, %s19, 1
        %s1098 = smul.addr %s1097, 2
        %s1099 = smul.addr %s1098, 2
        %s1100 = scalar_lea.vmem %s7, %s1099
      $region60: #{unet_forward.9} parent=55 // pred_fallthru
        _
    $region56: #{unet_forward.9} parent=5 // pred_fallthru
      _
  $region6: #{unet_forward.9} parent=0 // loop_footer
    %s17 = sadd.s32 1, %s13
  $region7: #{unet_forward.9} parent=0 // loop_footer_branch
    %12 = sbr.rel target = $region3
  $region8: #{unet_forward.9} parent=0 // loop_exit
    _

// kernel: unet_forward.11
$region0: #{unet_forward.11}
  #allocation0 [shape = 'u32[]', space=smem, size = 0x4, offset = 0x4, fixed_abs, tag = 'smem constant byte address 0x4 - core index']
  #allocation1 [shape = 'u32[144,128]{1,0:T(1,128)}', space=vmem, size = 0x12000, scoped, tag = 'internal scratch']
  %s0 = inlined_call_operand.vmem [shape: f32[16,256], index: 0, kind: input, shape index: {}]
  %s1 = inlined_call_operand.vmem [shape: bf16[256,256], index: 1, kind: input, shape index: {}]
  %s2 = inlined_call_operand.vmem [shape: f32[1,256], index: 2, kind: input, shape index: {}]
  %s3 = inlined_call_operand.vmem [shape: bf16[128,128], index: 3, kind: input, shape index: {}]
  %s4 = inlined_call_operand.vmem [shape: f32[1,128], index: 4, kind: input, shape index: {}]
  %s5 = inlined_call_operand.vmem [shape: bf16[128,16], index: 5, kind: input, shape index: {}]
  %s6 = inlined_call_operand.vmem [shape: bf16[16,128], index: 6, kind: input, shape index: {}]
  %s7 = inlined_call_operand.vmem [shape: f32[16,256], index: 7, kind: output, shape index: {}]
  %s8 = sld [smem:[#allocation0]]
  $region38: #{unet_forward.11} parent=0
    _
  %s10 = ssub.s32 1, %s8
  %s11 = scalar_select 0, %s10, %s8
  // Predicated region
  $region2: #{unet_forward.11} parent=0 // pred_check
    _
  $region3: #{unet_forward.11} parent=0 // pred_check_branch
    %13 = sbr.rel (0) target = $region5
  $region4: #{unet_forward.11} parent=0 // pred_region
    _
  $region5: #{unet_forward.11} parent=0 // pred_fallthru
    _
  // Predicated region
  $region6: #{unet_forward.11} parent=0 // pred_check
    _
  $region7: #{unet_forward.11} parent=0 // pred_check_branch
    %15 = sbr.rel (0) target = $region9
  $region8: #{unet_forward.11} parent=0 // pred_region
    _
  $region9: #{unet_forward.11} parent=0 // pred_fallthru
    _
  // Predicated region
  $region10: #{unet_forward.11} parent=0 // pred_check
    _
  $region11: #{unet_forward.11} parent=0 // pred_check_branch
    %17 = sbr.rel (0) target = $region13
  $region12: #{unet_forward.11} parent=0 // pred_region
    _
  $region13: #{unet_forward.11} parent=0 // pred_fallthru
    _
  // Predicated region
  $region14: #{unet_forward.11} parent=0 // pred_check
    _
  $region15: #{unet_forward.11} parent=0 // pred_check_branch
    %19 = sbr.rel (0) target = $region17
  $region16: #{unet_forward.11} parent=0 // pred_region
    _
  $region17: #{unet_forward.11} parent=0 // pred_fallthru
    _
  // Predicated region
  $region18: #{unet_forward.11} parent=0 // pred_check
    _
  $region19: #{unet_forward.11} parent=0 // pred_check_branch
    %21 = sbr.rel (0) target = $region21
  $region20: #{unet_forward.11} parent=0 // pred_region
    _
  $region21: #{unet_forward.11} parent=0 // pred_fallthru
    _
  // Predicated region
  $region22: #{unet_forward.11} parent=0 // pred_check
    _
  $region23: #{unet_forward.11} parent=0 // pred_check_branch
    %23 = sbr.rel (0) target = $region25
  $region24: #{unet_forward.11} parent=0 // pred_region
    _
  $region25: #{unet_forward.11} parent=0 // pred_fallthru
    _
  // Predicated region
  $region26: #{unet_forward.11} parent=0 // pred_check
    _
  $region27: #{unet_forward.11} parent=0 // pred_check_branch
    %25 = sbr.rel (0) target = $region29
  $region28: #{unet_forward.11} parent=0 // pred_region
    _
  $region29: #{unet_forward.11} parent=0 // pred_fallthru
    _
  %v27 = vld [vmem:[%s0] sm:$0xff]
  %v28 = vld [vmem:[%s0 + $0x8] sm:$0xff]
  %v29 = vld [vmem:[%s0 + $0x10] sm:$0xff]
  %v30 = vld [vmem:[%s0 + $0x18] sm:$0xff]
  %v31 = vld [vmem:[%s1] sm:$0xff]
  %v32 = vld [vmem:[%s1 + $0x8] sm:$0xff]
  %v33 = vld [vmem:[%s1 + $0x10] sm:$0xff]
  %v34 = vld [vmem:[%s1 + $0x18] sm:$0xff]
  %v35 = vld [vmem:[%s1 + $0x20] sm:$0xff]
  %v36 = vld [vmem:[%s1 + $0x28] sm:$0xff]
  %v37 = vld [vmem:[%s1 + $0x30] sm:$0xff]
  %v38 = vld [vmem:[%s1 + $0x38] sm:$0xff]
  %v39 = vld [vmem:[%s1 + $0x40] sm:$0xff]
  %v40 = vld [vmem:[%s1 + $0x48] sm:$0xff]
  %v41 = vld [vmem:[%s1 + $0x50] sm:$0xff]
  %v42 = vld [vmem:[%s1 + $0x58] sm:$0xff]
  %v43 = vld [vmem:[%s1 + $0x60] sm:$0xff]
  %v44 = vld [vmem:[%s1 + $0x68] sm:$0xff]
  %v45 = vld [vmem:[%s1 + $0x70] sm:$0xff]
  %v46 = vld [vmem:[%s1 + $0x78] sm:$0xff]
  %v47 = vld [vmem:[%s1 + $0x80] sm:$0xff]
  %v48 = vld [vmem:[%s1 + $0x88] sm:$0xff]
  %v49 = vld [vmem:[%s1 + $0x90] sm:$0xff]
  %v50 = vld [vmem:[%s1 + $0x98] sm:$0xff]
  %v51 = vld [vmem:[%s1 + $0xa0] sm:$0xff]
  %v52 = vld [vmem:[%s1 + $0xa8] sm:$0xff]
  %v53 = vld [vmem:[%s1 + $0xb0] sm:$0xff]
  %v54 = vld [vmem:[%s1 + $0xb8] sm:$0xff]
  %v55 = vld [vmem:[%s1 + $0xc0] sm:$0xff]
  %v56 = vld [vmem:[%s1 + $0xc8] sm:$0xff]
  %v57 = vld [vmem:[%s1 + $0xd0] sm:$0xff]
  %v58 = vld [vmem:[%s1 + $0xd8] sm:$0xff]
  %v59 = vld [vmem:[%s1 + $0xe0] sm:$0xff]
  %v60 = vld [vmem:[%s1 + $0xe8] sm:$0xff]
  %v61 = vld [vmem:[%s1 + $0xf0] sm:$0xff]
  %v62 = vld [vmem:[%s1 + $0xf8] sm:$0xff]
  %v63 = vpack.c.bf16 %v29, %v27
  %v64 = vpack.c.bf16 %v30, %v28
  %v65 = vld [vmem:[%s2] sm:$0x3]
  %v67 = vlaneseq
  %v68 = vshrl.u32 %v67, 7
  %v69 = vsub.s32 0, %v68
  %v70 = vrot.slane %v65, %v69
  %v71 = vlaneseq
  %v72 = vshrl.u32 %v71, 7
  %v73 = vsub.s32 1, %v72
  %v74 = vrot.slane %v65, %v73
  %v109 = vunpack.c.l.b16 %v31
  %v110 = vunpack.c.h.b16 %v31
  %v111 = vunpack.c.l.b16 %v32
  %v112 = vunpack.c.h.b16 %v32
  %v113 = vunpack.c.l.b16 %v33
  %v114 = vunpack.c.h.b16 %v33
  %v115 = vunpack.c.l.b16 %v34
  %v116 = vunpack.c.h.b16 %v34
  %v117 = vunpack.c.l.b16 %v35
  %v118 = vunpack.c.h.b16 %v35
  %v119 = vunpack.c.l.b16 %v36
  %v120 = vunpack.c.h.b16 %v36
  %v121 = vunpack.c.l.b16 %v37
  %v122 = vunpack.c.h.b16 %v37
  %v123 = vunpack.c.l.b16 %v38
  %v124 = vunpack.c.h.b16 %v38
  %v125 = vunpack.c.l.b16 %v39
  %v126 = vunpack.c.h.b16 %v39
  %v127 = vunpack.c.l.b16 %v40
  %v128 = vunpack.c.h.b16 %v40
  %v129 = vunpack.c.l.b16 %v41
  %v130 = vunpack.c.h.b16 %v41
  %v131 = vunpack.c.l.b16 %v42
  %v132 = vunpack.c.h.b16 %v42
  %v133 = vunpack.c.l.b16 %v43
  %v134 = vunpack.c.h.b16 %v43
  %v135 = vunpack.c.l.b16 %v44
  %v136 = vunpack.c.h.b16 %v44
  %v137 = vunpack.c.l.b16 %v45
  %v138 = vunpack.c.h.b16 %v45
  %v139 = vunpack.c.l.b16 %v46
  %v140 = vunpack.c.h.b16 %v46
  %v141 = vunpack.c.l.b16 %v47
  %v142 = vunpack.c.h.b16 %v47
  %v143 = vunpack.c.l.b16 %v48
  %v144 = vunpack.c.h.b16 %v48
  %v145 = vunpack.c.l.b16 %v49
  %v146 = vunpack.c.h.b16 %v49
  %v147 = vunpack.c.l.b16 %v50
  %v148 = vunpack.c.h.b16 %v50
  %v149 = vunpack.c.l.b16 %v51
  %v150 = vunpack.c.h.b16 %v51
  %v151 = vunpack.c.l.b16 %v52
  %v152 = vunpack.c.h.b16 %v52
  %v153 = vunpack.c.l.b16 %v53
  %v154 = vunpack.c.h.b16 %v53
  %v155 = vunpack.c.l.b16 %v54
  %v156 = vunpack.c.h.b16 %v54
  %v157 = vunpack.c.l.b16 %v55
  %v158 = vunpack.c.h.b16 %v55
  %v159 = vunpack.c.l.b16 %v56
  %v160 = vunpack.c.h.b16 %v56
  %v161 = vunpack.c.l.b16 %v57
  %v162 = vunpack.c.h.b16 %v57
  %v163 = vunpack.c.l.b16 %v58
  %v164 = vunpack.c.h.b16 %v58
  %v165 = vunpack.c.l.b16 %v59
  %v166 = vunpack.c.h.b16 %v59
  %v167 = vunpack.c.l.b16 %v60
  %v168 = vunpack.c.h.b16 %v60
  %v169 = vunpack.c.l.b16 %v61
  %v170 = vunpack.c.h.b16 %v61
  %v171 = vunpack.c.l.b16 %v62
  %v172 = vunpack.c.h.b16 %v62
  %v173 = vpack.c.b16 %v111, %v109
  %v174 = vpack.c.b16 %v112, %v110
  %v175 = vpack.c.b16 %v115, %v113
  %v176 = vpack.c.b16 %v116, %v114
  %v177 = vpack.c.b16 %v119, %v117
  %v178 = vpack.c.b16 %v120, %v118
  %v179 = vpack.c.b16 %v123, %v121
  %v180 = vpack.c.b16 %v124, %v122
  %v181 = vpack.c.b16 %v127, %v125
  %v182 = vpack.c.b16 %v128, %v126
  %v183 = vpack.c.b16 %v131, %v129
  %v184 = vpack.c.b16 %v132, %v130
  %v185 = vpack.c.b16 %v135, %v133
  %v186 = vpack.c.b16 %v136, %v134
  %v187 = vpack.c.b16 %v139, %v137
  %v188 = vpack.c.b16 %v140, %v138
  %v189 = vpack.c.b16 %v143, %v141
  %v190 = vpack.c.b16 %v144, %v142
  %v191 = vpack.c.b16 %v147, %v145
  %v192 = vpack.c.b16 %v148, %v146
  %v193 = vpack.c.b16 %v151, %v149
  %v194 = vpack.c.b16 %v152, %v150
  %v195 = vpack.c.b16 %v155, %v153
  %v196 = vpack.c.b16 %v156, %v154
  %v197 = vpack.c.b16 %v159, %v157
  %v198 = vpack.c.b16 %v160, %v158
  %v199 = vpack.c.b16 %v163, %v161
  %v200 = vpack.c.b16 %v164, %v162
  %v201 = vpack.c.b16 %v167, %v165
  %v202 = vpack.c.b16 %v168, %v166
  %v203 = vpack.c.b16 %v171, %v169
  %v204 = vpack.c.b16 %v172, %v170
  %237 = vmatprep.subr.bf16.mxu0 %v174
  %238 = vmatpush1.bf16.msra.mxu0 %v173
  %239 = vmatprep.subr.bf16.mxu0 %v176
  %240 = vmatpush1.bf16.msra.mxu0 %v175
  %241 = vmatprep.subr.bf16.mxu0 %v178
  %242 = vmatpush1.bf16.msra.mxu0 %v177
  %243 = vmatprep.subr.bf16.mxu0 %v180
  %244 = vmatpush1.bf16.msra.mxu0 %v179
  %245 = vmatprep.subr.bf16.mxu0 %v182
  %246 = vmatpush1.bf16.msra.mxu0 %v181
  %247 = vmatprep.subr.bf16.mxu0 %v184
  %248 = vmatpush1.bf16.msra.mxu0 %v183
  %249 = vmatprep.subr.bf16.mxu0 %v186
  %250 = vmatpush1.bf16.msra.mxu0 %v185
  %251 = vmatprep.subr.bf16.mxu0 %v188
  %252 = vmatpush1.bf16.msra.mxu0 %v187
  %253 = vmatprep.subr.bf16.mxu0 %v190
  %254 = vmatpush1.bf16.msra.mxu0 %v189
  %255 = vmatprep.subr.bf16.mxu0 %v192
  %256 = vmatpush1.bf16.msra.mxu0 %v191
  %257 = vmatprep.subr.bf16.mxu0 %v194
  %258 = vmatpush1.bf16.msra.mxu0 %v193
  %259 = vmatprep.subr.bf16.mxu0 %v196
  %260 = vmatpush1.bf16.msra.mxu0 %v195
  %261 = vmatprep.subr.bf16.mxu0 %v198
  %262 = vmatpush1.bf16.msra.mxu0 %v197
  %263 = vmatprep.subr.bf16.mxu0 %v200
  %264 = vmatpush1.bf16.msra.mxu0 %v199
  %265 = vmatprep.subr.bf16.mxu0 %v202
  %266 = vmatpush1.bf16.msra.mxu0 %v201
  %267 = vmatprep.subr.bf16.mxu0 %v204
  %268 = vmatpush1.bf16.msra.mxu0 %v203
  %269 = vmatprep.mubr.bf16.mxu0 %v64
  %270 = vmatmul.mubr.bf16.gmra.mrb[0].mxu0 %v63
  %v271 = vpop.f32.mrb[0].mxu0
  %v272 = vadd.f32 %v70, %v271
  %v273 = vpop.f32.mrb[0].mxu0
  %v274 = vadd.f32 %v74, %v273
  %v275 = vpop.f32.mrb[0].mxu0
  %v276 = vadd.f32 %v70, %v275
  %v277 = vpop.f32.mrb[0].mxu0
  %v278 = vadd.f32 %v74, %v277
  %279 = vdwg.mxu0
  %v280 = vld [vmem:[%s3] sm:$0xf]
  %v281 = vld [vmem:[%s3 + $0x4] sm:$0xf]
  %v282 = vld [vmem:[%s3 + $0x8] sm:$0xf]
  %v283 = vld [vmem:[%s3 + $0xc] sm:$0xf]
  %v284 = vld [vmem:[%s3 + $0x10] sm:$0xf]
  %v285 = vld [vmem:[%s3 + $0x14] sm:$0xf]
  %v286 = vld [vmem:[%s3 + $0x18] sm:$0xf]
  %v287 = vld [vmem:[%s3 + $0x1c] sm:$0xf]
  %v288 = vld [vmem:[%s3 + $0x20] sm:$0xf]
  %v289 = vld [vmem:[%s3 + $0x24] sm:$0xf]
  %v290 = vld [vmem:[%s3 + $0x28] sm:$0xf]
  %v291 = vld [vmem:[%s3 + $0x2c] sm:$0xf]
  %v292 = vld [vmem:[%s3 + $0x30] sm:$0xf]
  %v293 = vld [vmem:[%s3 + $0x34] sm:$0xf]
  %v294 = vld [vmem:[%s3 + $0x38] sm:$0xf]
  %v295 = vld [vmem:[%s3 + $0x3c] sm:$0xf]
  %v296 = vld [vmem:[%s4] sm:$0x1]
  %v297 = vld [vmem:[%s5] sm:$0xf]
  %v298 = vld [vmem:[%s5 + $0x4] sm:$0xf]
  %v299 = vld [vmem:[%s5 + $0x8] sm:$0xf]
  %v300 = vld [vmem:[%s5 + $0xc] sm:$0xf]
  %v301 = vld [vmem:[%s5 + $0x10] sm:$0xf]
  %v302 = vld [vmem:[%s5 + $0x14] sm:$0xf]
  %v303 = vld [vmem:[%s5 + $0x18] sm:$0xf]
  %v304 = vld [vmem:[%s5 + $0x1c] sm:$0xf]
  %v305 = vld [vmem:[%s5 + $0x20] sm:$0xf]
  %v306 = vld [vmem:[%s5 + $0x24] sm:$0xf]
  %v307 = vld [vmem:[%s5 + $0x28] sm:$0xf]
  %v308 = vld [vmem:[%s5 + $0x2c] sm:$0xf]
  %v309 = vld [vmem:[%s5 + $0x30] sm:$0xf]
  %v310 = vld [vmem:[%s5 + $0x34] sm:$0xf]
  %v311 = vld [vmem:[%s5 + $0x38] sm:$0xf]
  %v312 = vld [vmem:[%s5 + $0x3c] sm:$0xf]
  %v313 = vld [vmem:[%s6] sm:$0xf]
  %v314 = vld [vmem:[%s6 + $0x4] sm:$0xf]
  %v315 = vpack.c.bf16 %v276, %v272
  %v317 = vlaneseq
  %v318 = vshrl.u32 %v317, 7
  %v319 = vsub.s32 0, %v318
  %v320 = vrot.slane %v296, %v319
  %v338 = vunpack.c.l.b16 %v280
  %v339 = vunpack.c.l.b16 %v281
  %v340 = vunpack.c.l.b16 %v282
  %v341 = vunpack.c.l.b16 %v283
  %v342 = vunpack.c.l.b16 %v284
  %v343 = vunpack.c.l.b16 %v285
  %v344 = vunpack.c.l.b16 %v286
  %v345 = vunpack.c.l.b16 %v287
  %v346 = vunpack.c.l.b16 %v288
  %v347 = vunpack.c.l.b16 %v289
  %v348 = vunpack.c.l.b16 %v290
  %v349 = vunpack.c.l.b16 %v291
  %v350 = vunpack.c.l.b16 %v292
  %v351 = vunpack.c.l.b16 %v293
  %v352 = vunpack.c.l.b16 %v294
  %v353 = vunpack.c.l.b16 %v295
  %v354 = vpack.c.b16 %v339, %v338
  %v355 = vpack.c.b16 %v341, %v340
  %v356 = vpack.c.b16 %v343, %v342
  %v357 = vpack.c.b16 %v345, %v344
  %v358 = vpack.c.b16 %v347, %v346
  %v359 = vpack.c.b16 %v349, %v348
  %v360 = vpack.c.b16 %v351, %v350
  %v361 = vpack.c.b16 %v353, %v352
  %370 = vmatprep.subr.bf16.mxu0 0
  %371 = vmatpush1.bf16.msra.mxu0 %v354
  %372 = vmatprep.subr.bf16.mxu0 0
  %373 = vmatpush1.bf16.msra.mxu0 %v355
  %374 = vmatprep.subr.bf16.mxu0 0
  %375 = vmatpush1.bf16.msra.mxu0 %v356
  %376 = vmatprep.subr.bf16.mxu0 0
  %377 = vmatpush1.bf16.msra.mxu0 %v357
  %378 = vmatprep.subr.bf16.mxu0 0
  %379 = vmatpush1.bf16.msra.mxu0 %v358
  %380 = vmatprep.subr.bf16.mxu0 0
  %381 = vmatpush1.bf16.msra.mxu0 %v359
  %382 = vmatprep.subr.bf16.mxu0 0
  %383 = vmatpush1.bf16.msra.mxu0 %v360
  %384 = vmatprep.subr.bf16.mxu0 0
  %385 = vmatpush1.bf16.msra.mxu0 %v361
  %386 = vmatprep.subr.bf16.mxu0 0
  %387 = vmatpush1.bf16.msra.mxu0 0
  %388 = vmatprep.subr.bf16.mxu0 0
  %389 = vmatpush1.bf16.msra.mxu0 0
  %390 = vmatprep.subr.bf16.mxu0 0
  %391 = vmatpush1.bf16.msra.mxu0 0
  %392 = vmatprep.subr.bf16.mxu0 0
  %393 = vmatpush1.bf16.msra.mxu0 0
  %394 = vmatprep.subr.bf16.mxu0 0
  %395 = vmatpush1.bf16.msra.mxu0 0
  %396 = vmatprep.subr.bf16.mxu0 0
  %397 = vmatpush1.bf16.msra.mxu0 0
  %398 = vmatprep.subr.bf16.mxu0 0
  %399 = vmatpush1.bf16.msra.mxu0 0
  %400 = vmatprep.subr.bf16.mxu0 0
  %401 = vmatpush1.bf16.msra.mxu0 0
  %402 = vmatprep.mubr.bf16.mxu0 0
  %403 = vmatmul.mubr.bf16.gmra.mrb[0].mxu0 %v315
  %v404 = vpop.f32.mrb[0].mxu0
  %v405 = vadd.f32 %v320, %v404
  %v406 = vpop.f32.mrb[0].mxu0
  %v407 = vpop.f32.mrb[0].mxu0
  %v408 = vadd.f32 %v320, %v407
  %v409 = vpop.f32.mrb[0].mxu0
  %410 = vdwg.mxu0
  %v411 = vpack.c.bf16 %v408, %v405
  %v428 = vunpack.c.l.b16 %v297
  %v429 = vunpack.c.l.b16 %v298
  %v430 = vunpack.c.l.b16 %v299
  %v431 = vunpack.c.l.b16 %v300
  %v432 = vunpack.c.l.b16 %v301
  %v433 = vunpack.c.l.b16 %v302
  %v434 = vunpack.c.l.b16 %v303
  %v435 = vunpack.c.l.b16 %v304
  %v436 = vunpack.c.l.b16 %v305
  %v437 = vunpack.c.l.b16 %v306
  %v438 = vunpack.c.l.b16 %v307
  %v439 = vunpack.c.l.b16 %v308
  %v440 = vunpack.c.l.b16 %v309
  %v441 = vunpack.c.l.b16 %v310
  %v442 = vunpack.c.l.b16 %v311
  %v443 = vunpack.c.l.b16 %v312
  %v444 = vpack.c.b16 %v429, %v428
  %v445 = vpack.c.b16 %v431, %v430
  %v446 = vpack.c.b16 %v433, %v432
  %v447 = vpack.c.b16 %v435, %v434
  %v448 = vpack.c.b16 %v437, %v436
  %v449 = vpack.c.b16 %v439, %v438
  %v450 = vpack.c.b16 %v441, %v440
  %v451 = vpack.c.b16 %v443, %v442
  %460 = vmatprep.subr.bf16.mxu0 0
  %461 = vmatpush1.bf16.msra.mxu0 %v444
  %462 = vmatprep.subr.bf16.mxu0 0
  %463 = vmatpush1.bf16.msra.mxu0 %v445
  %464 = vmatprep.subr.bf16.mxu0 0
  %465 = vmatpush1.bf16.msra.mxu0 %v446
  %466 = vmatprep.subr.bf16.mxu0 0
  %467 = vmatpush1.bf16.msra.mxu0 %v447
  %468 = vmatprep.subr.bf16.mxu0 0
  %469 = vmatpush1.bf16.msra.mxu0 %v448
  %470 = vmatprep.subr.bf16.mxu0 0
  %471 = vmatpush1.bf16.msra.mxu0 %v449
  %472 = vmatprep.subr.bf16.mxu0 0
  %473 = vmatpush1.bf16.msra.mxu0 %v450
  %474 = vmatprep.subr.bf16.mxu0 0
  %475 = vmatpush1.bf16.msra.mxu0 %v451
  %476 = vmatprep.subr.bf16.mxu0 0
  %477 = vmatpush1.bf16.msra.mxu0 0
  %478 = vmatprep.subr.bf16.mxu0 0
  %479 = vmatpush1.bf16.msra.mxu0 0
  %480 = vmatprep.subr.bf16.mxu0 0
  %481 = vmatpush1.bf16.msra.mxu0 0
  %482 = vmatprep.subr.bf16.mxu0 0
  %483 = vmatpush1.bf16.msra.mxu0 0
  %484 = vmatprep.subr.bf16.mxu0 0
  %485 = vmatpush1.bf16.msra.mxu0 0
  %486 = vmatprep.subr.bf16.mxu0 0
  %487 = vmatpush1.bf16.msra.mxu0 0
  %488 = vmatprep.subr.bf16.mxu0 0
  %489 = vmatpush1.bf16.msra.mxu0 0
  %490 = vmatprep.subr.bf16.mxu0 0
  %491 = vmatpush1.bf16.msra.mxu0 0
  %492 = vmatprep.mubr.bf16.mxu0 0
  %493 = vmatmul.mubr.bf16.gmra.mrb[0].mxu0 %v411
  %v494 = vpop.f32.mrb[0].mxu0
  %v495 = vadd.f32 0.0, %v494
  %v496 = vpop.f32.mrb[0].mxu0
  %v497 = vpop.f32.mrb[0].mxu0
  %v498 = vadd.f32 0.0, %v497
  %v499 = vpop.f32.mrb[0].mxu0
  %500 = vdwg.mxu0
  %v501 = vmul.f32 %v495, 0.125
  %v502 = vmul.f32 %v498, 0.125
  %vm503 = vcmask 130048
  %v504 = vsel %vm503, %v501, -inf
  %505 = vmax.xlane.f32.xlu0 %v504
  %v506 = vpop.xlane.xlu0 %505
  %v507 = vsel %vm503, %v502, -inf
  %508 = vmax.xlane.f32.xlu0 %v507
  %v509 = vpop.xlane.xlu0 %508
  %v510 = vsub.f32 %v501, %v506
  %v511 = vsub.f32 %v502, %v509
  %v512 = vmul.f32 %v510, 1.442695
  %v513 = vpow.pop %v512
  %v514 = vmul.f32 %v511, 1.442695
  %v515 = vpow.pop %v514
  %v516 = vsel %vm503, %v513, 0.0
  %517 = vadd.xlane.f32.xlu0 %v516
  %v518 = vpop.xlane.xlu0 %517
  %v519 = vsel %vm503, %v515, 0.0
  %520 = vadd.xlane.f32.xlu0 %v519
  %v521 = vpop.xlane.xlu0 %520
  %v522 = vrcp.pop %v518
  %v523 = vrcp.pop %v521
  %v524 = vmul.f32 %v513, %v522
  %v525 = vmul.f32 %v515, %v523
  %v526 = vpack.c.bf16 %v525, %v524
  %v529 = vunpack.c.l.b16 %v313
  %v530 = vunpack.c.l.b16 %v314
  %v531 = vpack.c.b16 %v530, %v529
  %v534 = vsel %vm503, %v526, 0
  %536 = vmatprep.subr.bf16.mxu0 0
  %537 = vmatpush1.bf16.msra.mxu0 %v531
  %538 = vmatprep.subr.bf16.mxu0 0
  %539 = vmatpush1.bf16.msra.mxu0 0
  %540 = vmatprep.subr.bf16.mxu0 0
  %541 = vmatpush1.bf16.msra.mxu0 0
  %542 = vmatprep.subr.bf16.mxu0 0
  %543 = vmatpush1.bf16.msra.mxu0 0
  %544 = vmatprep.subr.bf16.mxu0 0
  %545 = vmatpush1.bf16.msra.mxu0 0
  %546 = vmatprep.subr.bf16.mxu0 0
  %547 = vmatpush1.bf16.msra.mxu0 0
  %548 = vmatprep.subr.bf16.mxu0 0
  %549 = vmatpush1.bf16.msra.mxu0 0
  %550 = vmatprep.subr.bf16.mxu0 0
  %551 = vmatpush1.bf16.msra.mxu0 0
  %552 = vmatprep.subr.bf16.mxu0 0
  %553 = vmatpush1.bf16.msra.mxu0 0
  %554 = vmatprep.subr.bf16.mxu0 0
  %555 = vmatpush1.bf16.msra.mxu0 0
  %556 = vmatprep.subr.bf16.mxu0 0
  %557 = vmatpush1.bf16.msra.mxu0 0
  %558 = vmatprep.subr.bf16.mxu0 0
  %559 = vmatpush1.bf16.msra.mxu0 0
  %560 = vmatprep.subr.bf16.mxu0 0
  %561 = vmatpush1.bf16.msra.mxu0 0
  %562 = vmatprep.subr.bf16.mxu0 0
  %563 = vmatpush1.bf16.msra.mxu0 0
  %564 = vmatprep.subr.bf16.mxu0 0
  %565 = vmatpush1.bf16.msra.mxu0 0
  %566 = vmatprep.subr.bf16.mxu0 0
  %567 = vmatpush1.bf16.msra.mxu0 0
  %568 = vmatprep.mubr.bf16.mxu0 0
  %569 = vmatmul.mubr.bf16.gmra.mrb[0].mxu0 %v534
  %v570 = vpop.f32.mrb[0].mxu0
  %v571 = vadd.f32 %v272, %v570
  %v572 = vpop.f32.mrb[0].mxu0
  %v573 = vpop.f32.mrb[0].mxu0
  %v574 = vadd.f32 %v276, %v573
  %v575 = vpop.f32.mrb[0].mxu0
  %576 = vdwg.mxu0
  %v577 = vmul.f32 %v571, 0.5
  %v578 = vmul.f32 %v574, 0.5
  %579 = vst [vmem:[%s7] sm:$0xff] %v577
  %580 = vst [vmem:[%s7 + $0x10] sm:$0xff] %v578
  %v581 = vpack.c.bf16 %v278, %v274
  %582 = vmatprep.subr.bf16.mxu0 0
  %583 = vmatpush1.bf16.msra.mxu0 %v354
  %584 = vmatprep.subr.bf16.mxu0 0
  %585 = vmatpush1.bf16.msra.mxu0 %v355
  %586 = vmatprep.subr.bf16.mxu0 0
  %587 = vmatpush1.bf16.msra.mxu0 %v356
  %588 = vmatprep.subr.bf16.mxu0 0
  %589 = vmatpush1.bf16.msra.mxu0 %v357
  %590 = vmatprep.subr.bf16.mxu0 0
  %591 = vmatpush1.bf16.msra.mxu0 %v358
  %592 = vmatprep.subr.bf16.mxu0 0
  %593 = vmatpush1.bf16.msra.mxu0 %v359
  %594 = vmatprep.subr.bf16.mxu0 0
  %595 = vmatpush1.bf16.msra.mxu0 %v360
  %596 = vmatprep.subr.bf16.mxu0 0
  %597 = vmatpush1.bf16.msra.mxu0 %v361
  %598 = vmatprep.subr.bf16.mxu0 0
  %599 = vmatpush1.bf16.msra.mxu0 0
  %600 = vmatprep.subr.bf16.mxu0 0
  %601 = vmatpush1.bf16.msra.mxu0 0
  %602 = vmatprep.subr.bf16.mxu0 0
  %603 = vmatpush1.bf16.msra.mxu0 0
  %604 = vmatprep.subr.bf16.mxu0 0
  %605 = vmatpush1.bf16.msra.mxu0 0
  %606 = vmatprep.subr.bf16.mxu0 0
  %607 = vmatpush1.bf16.msra.mxu0 0
  %608 = vmatprep.subr.bf16.mxu0 0
  %609 = vmatpush1.bf16.msra.mxu0 0
  %610 = vmatprep.subr.bf16.mxu0 0
  %611 = vmatpush1.bf16.msra.mxu0 0
  %612 = vmatprep.subr.bf16.mxu0 0
  %613 = vmatpush1.bf16.msra.mxu0 0
  %614 = vmatprep.mubr.bf16.mxu0 0
  %615 = vmatmul.mubr.bf16.gmra.mrb[0].mxu0 %v581
  %v616 = vpop.f32.mrb[0].mxu0
  %v617 = vadd.f32 %v320, %v616
  %v618 = vpop.f32.mrb[0].mxu0
  %v619 = vpop.f32.mrb[0].mxu0
  %v620 = vadd.f32 %v320, %v619
  %v621 = vpop.f32.mrb[0].mxu0
  %622 = vdwg.mxu0
  %v623 = vpack.c.bf16 %v620, %v617
  %624 = vmatprep.subr.bf16.mxu0 0
  %625 = vmatpush1.bf16.msra.mxu0 %v444
  %626 = vmatprep.subr.bf16.mxu0 0
  %627 = vmatpush1.bf16.msra.mxu0 %v445
  %628 = vmatprep.subr.bf16.mxu0 0
  %629 = vmatpush1.bf16.msra.mxu0 %v446
  %630 = vmatprep.subr.bf16.mxu0 0
  %631 = vmatpush1.bf16.msra.mxu0 %v447
  %632 = vmatprep.subr.bf16.mxu0 0
  %633 = vmatpush1.bf16.msra.mxu0 %v448
  %634 = vmatprep.subr.bf16.mxu0 0
  %635 = vmatpush1.bf16.msra.mxu0 %v449
  %636 = vmatprep.subr.bf16.mxu0 0
  %637 = vmatpush1.bf16.msra.mxu0 %v450
  %638 = vmatprep.subr.bf16.mxu0 0
  %639 = vmatpush1.bf16.msra.mxu0 %v451
  %640 = vmatprep.subr.bf16.mxu0 0
  %641 = vmatpush1.bf16.msra.mxu0 0
  %642 = vmatprep.subr.bf16.mxu0 0
  %643 = vmatpush1.bf16.msra.mxu0 0
  %644 = vmatprep.subr.bf16.mxu0 0
  %645 = vmatpush1.bf16.msra.mxu0 0
  %646 = vmatprep.subr.bf16.mxu0 0
  %647 = vmatpush1.bf16.msra.mxu0 0
  %648 = vmatprep.subr.bf16.mxu0 0
  %649 = vmatpush1.bf16.msra.mxu0 0
  %650 = vmatprep.subr.bf16.mxu0 0
  %651 = vmatpush1.bf16.msra.mxu0 0
  %652 = vmatprep.subr.bf16.mxu0 0
  %653 = vmatpush1.bf16.msra.mxu0 0
  %654 = vmatprep.subr.bf16.mxu0 0
  %655 = vmatpush1.bf16.msra.mxu0 0
  %656 = vmatprep.mubr.bf16.mxu0 0
  %657 = vmatmul.mubr.bf16.gmra.mrb[0].mxu0 %v623
  %v658 = vpop.f32.mrb[0].mxu0
  %v659 = vadd.f32 0.0, %v658
  %v660 = vpop.f32.mrb[0].mxu0
  %v661 = vpop.f32.mrb[0].mxu0
  %v662 = vadd.f32 0.0, %v661
  %v663 = vpop.f32.mrb[0].mxu0
  %664 = vdwg.mxu0
  %v665 = vmul.f32 %v659, 0.125
  %v666 = vmul.f32 %v662, 0.125
  %v667 = vsel %vm503, %v665, -inf
  %668 = vmax.xlane.f32.xlu0 %v667
  %v669 = vpop.xlane.xlu0 %668
  %v670 = vsel %vm503, %v666, -inf
  %671 = vmax.xlane.f32.xlu0 %v670
  %v672 = vpop.xlane.xlu0 %671
  %v673 = vsub.f32 %v665, %v669
  %v674 = vsub.f32 %v666, %v672
  %v675 = vmul.f32 %v673, 1.442695
  %v676 = vpow.pop %v675
  %v677 = vmul.f32 %v674, 1.442695
  %v678 = vpow.pop %v677
  %v679 = vsel %vm503, %v676, 0.0
  %680 = vadd.xlane.f32.xlu0 %v679
  %v681 = vpop.xlane.xlu0 %680
  %v682 = vsel %vm503, %v678, 0.0
  %683 = vadd.xlane.f32.xlu0 %v682
  %v684 = vpop.xlane.xlu0 %683
  %v685 = vrcp.pop %v681
  %v686 = vrcp.pop %v684
  %v687 = vmul.f32 %v676, %v685
  %v688 = vmul.f32 %v678, %v686
  %v689 = vpack.c.bf16 %v688, %v687
  %v691 = vsel %vm503, %v689, 0
  %693 = vmatprep.subr.bf16.mxu0 0
  %694 = vmatpush1.bf16.msra.mxu0 %v531
  %695 = vmatprep.subr.bf16.mxu0 0
  %696 = vmatpush1.bf16.msra.mxu0 0
  %697 = vmatprep.subr.bf16.mxu0 0
  %698 = vmatpush1.bf16.msra.mxu0 0
  %699 = vmatprep.subr.bf16.mxu0 0
  %700 = vmatpush1.bf16.msra.mxu0 0
  %701 = vmatprep.subr.bf16.mxu0 0
  %702 = vmatpush1.bf16.msra.mxu0 0
  %703 = vmatprep.subr.bf16.mxu0 0
  %704 = vmatpush1.bf16.msra.mxu0 0
  %705 = vmatprep.subr.bf16.mxu0 0
  %706 = vmatpush1.bf16.msra.mxu0 0
  %707 = vmatprep.subr.bf16.mxu0 0
  %708 = vmatpush1.bf16.msra.mxu0 0
  %709 = vmatprep.subr.bf16.mxu0 0
  %710 = vmatpush1.bf16.msra.mxu0 0
  %711 = vmatprep.subr.bf16.mxu0 0
  %712 = vmatpush1.bf16.msra.mxu0 0
  %713 = vmatprep.subr.bf16.mxu0 0
  %714 = vmatpush1.bf16.msra.mxu0 0
  %715 = vmatprep.subr.bf16.mxu0 0
  %716 = vmatpush1.bf16.msra.mxu0 0
  %717 = vmatprep.subr.bf16.mxu0 0
  %718 = vmatpush1.bf16.msra.mxu0 0
  %719 = vmatprep.subr.bf16.mxu0 0
  %720 = vmatpush1.bf16.msra.mxu0 0
  %721 = vmatprep.subr.bf16.mxu0 0
  %722 = vmatpush1.bf16.msra.mxu0 0
  %723 = vmatprep.subr.bf16.mxu0 0
  %724 = vmatpush1.bf16.msra.mxu0 0
  %725 = vmatprep.mubr.bf16.mxu0 0
  %726 = vmatmul.mubr.bf16.gmra.mrb[0].mxu0 %v691
  %v727 = vpop.f32.mrb[0].mxu0
  %v728 = vadd.f32 %v274, %v727
  %v729 = vpop.f32.mrb[0].mxu0
  %v730 = vpop.f32.mrb[0].mxu0
  %v731 = vadd.f32 %v278, %v730
  %v732 = vpop.f32.mrb[0].mxu0
  %733 = vdwg.mxu0
  %v734 = vmul.f32 %v728, 0.5
  %v735 = vmul.f32 %v731, 0.5
  %736 = vst [vmem:[%s7 + $0x8] sm:$0xff] %v734
  %737 = vst [vmem:[%s7 + $0x18] sm:$0xff] %v735
  // Predicated region
  $region30: #{unet_forward.11} parent=0 // pred_check
    _
  $region31: #{unet_forward.11} parent=0 // pred_check_branch
    %739 = sbr.rel (0) target = $region33
  $region32: #{unet_forward.11} parent=0 // pred_region
    _
  $region33: #{unet_forward.11} parent=0 // pred_fallthru
    _
  // Predicated region
  $region34: #{unet_forward.11} parent=0 // pred_check
    _
  $region35: #{unet_forward.11} parent=0 // pred_check_branch
    %741 = sbr.rel (0) target = $region37
  $region36: #{unet_forward.11} parent=0 // pred_region
    _
  $region37: #{unet_forward.11} parent=0 // pred_fallthru
    _

// kernel: unet_forward.10
$region0: #{unet_forward.10}
  #allocation0 [shape = 'u32[]', space=smem, size = 0x4, offset = 0x4, fixed_abs, tag = 'smem constant byte address 0x4 - core index']
  #allocation1 [shape = 'u32[144,128]{1,0:T(1,128)}', space=vmem, size = 0x12000, scoped, tag = 'internal scratch']
  %s0 = inlined_call_operand.vmem [shape: f32[4,256], index: 0, kind: input, shape index: {}]
  %s1 = inlined_call_operand.vmem [shape: bf16[256,512], index: 1, kind: input, shape index: {}]
  %s2 = inlined_call_operand.vmem [shape: f32[1,512], index: 2, kind: input, shape index: {}]
  %s3 = inlined_call_operand.vmem [shape: bf16[256,128], index: 3, kind: input, shape index: {}]
  %s4 = inlined_call_operand.vmem [shape: f32[1,128], index: 4, kind: input, shape index: {}]
  %s5 = inlined_call_operand.vmem [shape: bf16[128,32], index: 5, kind: input, shape index: {}]
  %s6 = inlined_call_operand.vmem [shape: bf16[32,256], index: 6, kind: input, shape index: {}]
  %s7 = inlined_call_operand.vmem [shape: f32[4,512], index: 7, kind: output, shape index: {}]
  %s8 = sld [smem:[#allocation0]]
  $region38: #{unet_forward.10} parent=0
    _
  %s10 = ssub.s32 1, %s8
  %s11 = scalar_select 0, %s10, %s8
  // Predicated region
  $region2: #{unet_forward.10} parent=0 // pred_check
    _
  $region3: #{unet_forward.10} parent=0 // pred_check_branch
    %13 = sbr.rel (0) target = $region5
  $region4: #{unet_forward.10} parent=0 // pred_region
    _
  $region5: #{unet_forward.10} parent=0 // pred_fallthru
    _
  // Predicated region
  $region6: #{unet_forward.10} parent=0 // pred_check
    _
  $region7: #{unet_forward.10} parent=0 // pred_check_branch
    %15 = sbr.rel (0) target = $region9
  $region8: #{unet_forward.10} parent=0 // pred_region
    _
  $region9: #{unet_forward.10} parent=0 // pred_fallthru
    _
  // Predicated region
  $region10: #{unet_forward.10} parent=0 // pred_check
    _
  $region11: #{unet_forward.10} parent=0 // pred_check_branch
    %17 = sbr.rel (0) target = $region13
  $region12: #{unet_forward.10} parent=0 // pred_region
    _
  $region13: #{unet_forward.10} parent=0 // pred_fallthru
    _
  // Predicated region
  $region14: #{unet_forward.10} parent=0 // pred_check
    _
  $region15: #{unet_forward.10} parent=0 // pred_check_branch
    %19 = sbr.rel (0) target = $region17
  $region16: #{unet_forward.10} parent=0 // pred_region
    _
  $region17: #{unet_forward.10} parent=0 // pred_fallthru
    _
  // Predicated region
  $region18: #{unet_forward.10} parent=0 // pred_check
    _
  $region19: #{unet_forward.10} parent=0 // pred_check_branch
    %21 = sbr.rel (0) target = $region21
  $region20: #{unet_forward.10} parent=0 // pred_region
    _
  $region21: #{unet_forward.10} parent=0 // pred_fallthru
    _
  // Predicated region
  $region22: #{unet_forward.10} parent=0 // pred_check
    _
  $region23: #{unet_forward.10} parent=0 // pred_check_branch
    %23 = sbr.rel (0) target = $region25
  $region24: #{unet_forward.10} parent=0 // pred_region
    _
  $region25: #{unet_forward.10} parent=0 // pred_fallthru
    _
  // Predicated region
  $region26: #{unet_forward.10} parent=0 // pred_check
    _
  $region27: #{unet_forward.10} parent=0 // pred_check_branch
    %25 = sbr.rel (0) target = $region29
  $region28: #{unet_forward.10} parent=0 // pred_region
    _
  $region29: #{unet_forward.10} parent=0 // pred_fallthru
    _
  %v27 = vld [vmem:[%s0] sm:$0xff]
  %v28 = vld [vmem:[%s1] sm:$0xff]
  %v29 = vld [vmem:[%s1 + $0x8] sm:$0xff]
  %v30 = vld [vmem:[%s1 + $0x10] sm:$0xff]
  %v31 = vld [vmem:[%s1 + $0x18] sm:$0xff]
  %v32 = vld [vmem:[%s1 + $0x20] sm:$0xff]
  %v33 = vld [vmem:[%s1 + $0x28] sm:$0xff]
  %v34 = vld [vmem:[%s1 + $0x30] sm:$0xff]
  %v35 = vld [vmem:[%s1 + $0x38] sm:$0xff]
  %v36 = vld [vmem:[%s1 + $0x40] sm:$0xff]
  %v37 = vld [vmem:[%s1 + $0x48] sm:$0xff]
  %v38 = vld [vmem:[%s1 + $0x50] sm:$0xff]
  %v39 = vld [vmem:[%s1 + $0x58] sm:$0xff]
  %v40 = vld [vmem:[%s1 + $0x60] sm:$0xff]
  %v41 = vld [vmem:[%s1 + $0x68] sm:$0xff]
  %v42 = vld [vmem:[%s1 + $0x70] sm:$0xff]
  %v43 = vld [vmem:[%s1 + $0x78] sm:$0xff]
  %v44 = vld [vmem:[%s1 + $0x80] sm:$0xff]
  %v45 = vld [vmem:[%s1 + $0x88] sm:$0xff]
  %v46 = vld [vmem:[%s1 + $0x90] sm:$0xff]
  %v47 = vld [vmem:[%s1 + $0x98] sm:$0xff]
  %v48 = vld [vmem:[%s1 + $0xa0] sm:$0xff]
  %v49 = vld [vmem:[%s1 + $0xa8] sm:$0xff]
  %v50 = vld [vmem:[%s1 + $0xb0] sm:$0xff]
  %v51 = vld [vmem:[%s1 + $0xb8] sm:$0xff]
  %v52 = vld [vmem:[%s1 + $0xc0] sm:$0xff]
  %v53 = vld [vmem:[%s1 + $0xc8] sm:$0xff]
  %v54 = vld [vmem:[%s1 + $0xd0] sm:$0xff]
  %v55 = vld [vmem:[%s1 + $0xd8] sm:$0xff]
  %v56 = vld [vmem:[%s1 + $0xe0] sm:$0xff]
  %v57 = vld [vmem:[%s1 + $0xe8] sm:$0xff]
  %v58 = vld [vmem:[%s1 + $0xf0] sm:$0xff]
  %v59 = vld [vmem:[%s1 + $0xf8] sm:$0xff]
  %v60 = vld [vmem:[%s1 + $0x100] sm:$0xff]
  %v61 = vld [vmem:[%s1 + $0x108] sm:$0xff]
  %v62 = vld [vmem:[%s1 + $0x110] sm:$0xff]
  %v63 = vld [vmem:[%s1 + $0x118] sm:$0xff]
  %v64 = vld [vmem:[%s1 + $0x120] sm:$0xff]
  %v65 = vld [vmem:[%s1 + $0x128] sm:$0xff]
  %v66 = vld [vmem:[%s1 + $0x130] sm:$0xff]
  %v67 = vld [vmem:[%s1 + $0x138] sm:$0xff]
  %v68 = vld [vmem:[%s1 + $0x140] sm:$0xff]
  %v69 = vld [vmem:[%s1 + $0x148] sm:$0xff]
  %v70 = vld [vmem:[%s1 + $0x150] sm:$0xff]
  %v71 = vld [vmem:[%s1 + $0x158] sm:$0xff]
  %v72 = vld [vmem:[%s1 + $0x160] sm:$0xff]
  %v73 = vld [vmem:[%s1 + $0x168] sm:$0xff]
  %v74 = vld [vmem:[%s1 + $0x170] sm:$0xff]
  %v75 = vld [vmem:[%s1 + $0x178] sm:$0xff]
  %v76 = vld [vmem:[%s1 + $0x180] sm:$0xff]
  %v77 = vld [vmem:[%s1 + $0x188] sm:$0xff]
  %v78 = vld [vmem:[%s1 + $0x190] sm:$0xff]
  %v79 = vld [vmem:[%s1 + $0x198] sm:$0xff]
  %v80 = vld [vmem:[%s1 + $0x1a0] sm:$0xff]
  %v81 = vld [vmem:[%s1 + $0x1a8] sm:$0xff]
  %v82 = vld [vmem:[%s1 + $0x1b0] sm:$0xff]
  %v83 = vld [vmem:[%s1 + $0x1b8] sm:$0xff]
  %v84 = vld [vmem:[%s1 + $0x1c0] sm:$0xff]
  %v85 = vld [vmem:[%s1 + $0x1c8] sm:$0xff]
  %v86 = vld [vmem:[%s1 + $0x1d0] sm:$0xff]
  %v87 = vld [vmem:[%s1 + $0x1d8] sm:$0xff]
  %v88 = vld [vmem:[%s1 + $0x1e0] sm:$0xff]
  %v89 = vld [vmem:[%s1 + $0x1e8] sm:$0xff]
  %v90 = vld [vmem:[%s1 + $0x1f0] sm:$0xff]
  %v91 = vld [vmem:[%s1 + $0x1f8] sm:$0xff]
  %v93 = vcombine.high %v27, %v27
  %v95 = vpack.c.bf16 %v27, %v27
  %v96 = vpack.c.bf16 %v93, %v93
  %v97 = vld [vmem:[%s2] sm:$0xf]
  %v99 = vlaneseq
  %v100 = vshrl.u32 %v99, 7
  %v101 = vsub.s32 0, %v100
  %v102 = vrot.slane %v97, %v101
  %v103 = vlaneseq
  %v104 = vshrl.u32 %v103, 7
  %v105 = vsub.s32 1, %v104
  %v106 = vrot.slane %v97, %v105
  %v107 = vlaneseq
  %v108 = vshrl.u32 %v107, 7
  %v109 = vsub.s32 2, %v108
  %v110 = vrot.slane %v97, %v109
  %v111 = vlaneseq
  %v112 = vshrl.u32 %v111, 7
  %v113 = vsub.s32 3, %v112
  %v114 = vrot.slane %v97, %v113
  %v183 = vunpack.c.l.b16 %v28
  %v184 = vunpack.c.h.b16 %v28
  %v185 = vunpack.c.l.b16 %v29
  %v186 = vunpack.c.h.b16 %v29
  %v187 = vunpack.c.l.b16 %v30
  %v188 = vunpack.c.h.b16 %v30
  %v189 = vunpack.c.l.b16 %v31
  %v190 = vunpack.c.h.b16 %v31
  %v191 = vunpack.c.l.b16 %v32
  %v192 = vunpack.c.h.b16 %v32
  %v193 = vunpack.c.l.b16 %v33
  %v194 = vunpack.c.h.b16 %v33
  %v195 = vunpack.c.l.b16 %v34
  %v196 = vunpack.c.h.b16 %v34
  %v197 = vunpack.c.l.b16 %v35
  %v198 = vunpack.c.h.b16 %v35
  %v199 = vunpack.c.l.b16 %v36
  %v200 = vunpack.c.h.b16 %v36
  %v201 = vunpack.c.l.b16 %v37
  %v202 = vunpack.c.h.b16 %v37
  %v203 = vunpack.c.l.b16 %v38
  %v204 = vunpack.c.h.b16 %v38
  %v205 = vunpack.c.l.b16 %v39
  %v206 = vunpack.c.h.b16 %v39
  %v207 = vunpack.c.l.b16 %v40
  %v208 = vunpack.c.h.b16 %v40
  %v209 = vunpack.c.l.b16 %v41
  %v210 = vunpack.c.h.b16 %v41
  %v211 = vunpack.c.l.b16 %v42
  %v212 = vunpack.c.h.b16 %v42
  %v213 = vunpack.c.l.b16 %v43
  %v214 = vunpack.c.h.b16 %v43
  %v215 = vunpack.c.l.b16 %v44
  %v216 = vunpack.c.h.b16 %v44
  %v217 = vunpack.c.l.b16 %v45
  %v218 = vunpack.c.h.b16 %v45
  %v219 = vunpack.c.l.b16 %v46
  %v220 = vunpack.c.h.b16 %v46
  %v221 = vunpack.c.l.b16 %v47
  %v222 = vunpack.c.h.b16 %v47
  %v223 = vunpack.c.l.b16 %v48
  %v224 = vunpack.c.h.b16 %v48
  %v225 = vunpack.c.l.b16 %v49
  %v226 = vunpack.c.h.b16 %v49
  %v227 = vunpack.c.l.b16 %v50
  %v228 = vunpack.c.h.b16 %v50
  %v229 = vunpack.c.l.b16 %v51
  %v230 = vunpack.c.h.b16 %v51
  %v231 = vunpack.c.l.b16 %v52
  %v232 = vunpack.c.h.b16 %v52
  %v233 = vunpack.c.l.b16 %v53
  %v234 = vunpack.c.h.b16 %v53
  %v235 = vunpack.c.l.b16 %v54
  %v236 = vunpack.c.h.b16 %v54
  %v237 = vunpack.c.l.b16 %v55
  %v238 = vunpack.c.h.b16 %v55
  %v239 = vunpack.c.l.b16 %v56
  %v240 = vunpack.c.h.b16 %v56
  %v241 = vunpack.c.l.b16 %v57
  %v242 = vunpack.c.h.b16 %v57
  %v243 = vunpack.c.l.b16 %v58
  %v244 = vunpack.c.h.b16 %v58
  %v245 = vunpack.c.l.b16 %v59
  %v246 = vunpack.c.h.b16 %v59
  %v247 = vunpack.c.l.b16 %v60
  %v248 = vunpack.c.h.b16 %v60
  %v249 = vunpack.c.l.b16 %v61
  %v250 = vunpack.c.h.b16 %v61
  %v251 = vunpack.c.l.b16 %v62
  %v252 = vunpack.c.h.b16 %v62
  %v253 = vunpack.c.l.b16 %v63
  %v254 = vunpack.c.h.b16 %v63
  %v255 = vunpack.c.l.b16 %v64
  %v256 = vunpack.c.h.b16 %v64
  %v257 = vunpack.c.l.b16 %v65
  %v258 = vunpack.c.h.b16 %v65
  %v259 = vunpack.c.l.b16 %v66
  %v260 = vunpack.c.h.b16 %v66
  %v261 = vunpack.c.l.b16 %v67
  %v262 = vunpack.c.h.b16 %v67
  %v263 = vunpack.c.l.b16 %v68
  %v264 = vunpack.c.h.b16 %v68
  %v265 = vunpack.c.l.b16 %v69
  %v266 = vunpack.c.h.b16 %v69
  %v267 = vunpack.c.l.b16 %v70
  %v268 = vunpack.c.h.b16 %v70
  %v269 = vunpack.c.l.b16 %v71
  %v270 = vunpack.c.h.b16 %v71
  %v271 = vunpack.c.l.b16 %v72
  %v272 = vunpack.c.h.b16 %v72
  %v273 = vunpack.c.l.b16 %v73
  %v274 = vunpack.c.h.b16 %v73
  %v275 = vunpack.c.l.b16 %v74
  %v276 = vunpack.c.h.b16 %v74
  %v277 = vunpack.c.l.b16 %v75
  %v278 = vunpack.c.h.b16 %v75
  %v279 = vunpack.c.l.b16 %v76
  %v280 = vunpack.c.h.b16 %v76
  %v281 = vunpack.c.l.b16 %v77
  %v282 = vunpack.c.h.b16 %v77
  %v283 = vunpack.c.l.b16 %v78
  %v284 = vunpack.c.h.b16 %v78
  %v285 = vunpack.c.l.b16 %v79
  %v286 = vunpack.c.h.b16 %v79
  %v287 = vunpack.c.l.b16 %v80
  %v288 = vunpack.c.h.b16 %v80
  %v289 = vunpack.c.l.b16 %v81
  %v290 = vunpack.c.h.b16 %v81
  %v291 = vunpack.c.l.b16 %v82
  %v292 = vunpack.c.h.b16 %v82
  %v293 = vunpack.c.l.b16 %v83
  %v294 = vunpack.c.h.b16 %v83
  %v295 = vunpack.c.l.b16 %v84
  %v296 = vunpack.c.h.b16 %v84
  %v297 = vunpack.c.l.b16 %v85
  %v298 = vunpack.c.h.b16 %v85
  %v299 = vunpack.c.l.b16 %v86
  %v300 = vunpack.c.h.b16 %v86
  %v301 = vunpack.c.l.b16 %v87
  %v302 = vunpack.c.h.b16 %v87
  %v303 = vunpack.c.l.b16 %v88
  %v304 = vunpack.c.h.b16 %v88
  %v305 = vunpack.c.l.b16 %v89
  %v306 = vunpack.c.h.b16 %v89
  %v307 = vunpack.c.l.b16 %v90
  %v308 = vunpack.c.h.b16 %v90
  %v309 = vunpack.c.l.b16 %v91
  %v310 = vunpack.c.h.b16 %v91
  %v311 = vpack.c.b16 %v187, %v183
  %v312 = vpack.c.b16 %v188, %v184
  %v313 = vpack.c.b16 %v189, %v185
  %v314 = vpack.c.b16 %v190, %v186
  %v315 = vpack.c.b16 %v195, %v191
  %v316 = vpack.c.b16 %v196, %v192
  %v317 = vpack.c.b16 %v197, %v193
  %v318 = vpack.c.b16 %v198, %v194
  %v319 = vpack.c.b16 %v203, %v199
  %v320 = vpack.c.b16 %v204, %v200
  %v321 = vpack.c.b16 %v205, %v201
  %v322 = vpack.c.b16 %v206, %v202
  %v323 = vpack.c.b16 %v211, %v207
  %v324 = vpack.c.b16 %v212, %v208
  %v325 = vpack.c.b16 %v213, %v209
  %v326 = vpack.c.b16 %v214, %v210
  %v327 = vpack.c.b16 %v219, %v215
  %v328 = vpack.c.b16 %v220, %v216
  %v329 = vpack.c.b16 %v221, %v217
  %v330 = vpack.c.b16 %v222, %v218
  %v331 = vpack.c.b16 %v227, %v223
  %v332 = vpack.c.b16 %v228, %v224
  %v333 = vpack.c.b16 %v229, %v225
  %v334 = vpack.c.b16 %v230, %v226
  %v335 = vpack.c.b16 %v235, %v231
  %v336 = vpack.c.b16 %v236, %v232
  %v337 = vpack.c.b16 %v237, %v233
  %v338 = vpack.c.b16 %v238, %v234
  %v339 = vpack.c.b16 %v243, %v239
  %v340 = vpack.c.b16 %v244, %v240
  %v341 = vpack.c.b16 %v245, %v241
  %v342 = vpack.c.b16 %v246, %v242
  %v343 = vpack.c.b16 %v251, %v247
  %v344 = vpack.c.b16 %v252, %v248
  %v345 = vpack.c.b16 %v253, %v249
  %v346 = vpack.c.b16 %v254, %v250
  %v347 = vpack.c.b16 %v259, %v255
  %v348 = vpack.c.b16 %v260, %v256
  %v349 = vpack.c.b16 %v261, %v257
  %v350 = vpack.c.b16 %v262, %v258
  %v351 = vpack.c.b16 %v267, %v263
  %v352 = vpack.c.b16 %v268, %v264
  %v353 = vpack.c.b16 %v269, %v265
  %v354 = vpack.c.b16 %v270, %v266
  %v355 = vpack.c.b16 %v275, %v271
  %v356 = vpack.c.b16 %v276, %v272
  %v357 = vpack.c.b16 %v277, %v273
  %v358 = vpack.c.b16 %v278, %v274
  %v359 = vpack.c.b16 %v283, %v279
  %v360 = vpack.c.b16 %v284, %v280
  %v361 = vpack.c.b16 %v285, %v281
  %v362 = vpack.c.b16 %v286, %v282
  %v363 = vpack.c.b16 %v291, %v287
  %v364 = vpack.c.b16 %v292, %v288
  %v365 = vpack.c.b16 %v293, %v289
  %v366 = vpack.c.b16 %v294, %v290
  %v367 = vpack.c.b16 %v299, %v295
  %v368 = vpack.c.b16 %v300, %v296
  %v369 = vpack.c.b16 %v301, %v297
  %v370 = vpack.c.b16 %v302, %v298
  %v371 = vpack.c.b16 %v307, %v303
  %v372 = vpack.c.b16 %v308, %v304
  %v373 = vpack.c.b16 %v309, %v305
  %v374 = vpack.c.b16 %v310, %v306
  %439 = vmatprep.subr.bf16.mxu0 %v312
  %440 = vmatpush1.bf16.msra.mxu0 %v311
  %441 = vmatprep.subr.bf16.mxu0 %v316
  %442 = vmatpush1.bf16.msra.mxu0 %v315
  %443 = vmatprep.subr.bf16.mxu0 %v320
  %444 = vmatpush1.bf16.msra.mxu0 %v319
  %445 = vmatprep.subr.bf16.mxu0 %v324
  %446 = vmatpush1.bf16.msra.mxu0 %v323
  %447 = vmatprep.subr.bf16.mxu0 %v328
  %448 = vmatpush1.bf16.msra.mxu0 %v327
  %449 = vmatprep.subr.bf16.mxu0 %v332
  %450 = vmatpush1.bf16.msra.mxu0 %v331
  %451 = vmatprep.subr.bf16.mxu0 %v336
  %452 = vmatpush1.bf16.msra.mxu0 %v335
  %453 = vmatprep.subr.bf16.mxu0 %v340
  %454 = vmatpush1.bf16.msra.mxu0 %v339
  %455 = vmatprep.subr.bf16.mxu0 %v344
  %456 = vmatpush1.bf16.msra.mxu0 %v343
  %457 = vmatprep.subr.bf16.mxu0 %v348
  %458 = vmatpush1.bf16.msra.mxu0 %v347
  %459 = vmatprep.subr.bf16.mxu0 %v352
  %460 = vmatpush1.bf16.msra.mxu0 %v351
  %461 = vmatprep.subr.bf16.mxu0 %v356
  %462 = vmatpush1.bf16.msra.mxu0 %v355
  %463 = vmatprep.subr.bf16.mxu0 %v360
  %464 = vmatpush1.bf16.msra.mxu0 %v359
  %465 = vmatprep.subr.bf16.mxu0 %v364
  %466 = vmatpush1.bf16.msra.mxu0 %v363
  %467 = vmatprep.subr.bf16.mxu0 %v368
  %468 = vmatpush1.bf16.msra.mxu0 %v367
  %469 = vmatprep.subr.bf16.mxu0 %v372
  %470 = vmatpush1.bf16.msra.mxu0 %v371
  %471 = vmatprep.mubr.bf16.mxu0 %v96
  %472 = vmatmul.mubr.bf16.gmra.mrb[0].mxu0 %v95
  %v473 = vpop.f32.mrb[0].mxu0
  %v474 = vadd.f32 %v102, %v473
  %v475 = vpop.f32.mrb[0].mxu0
  %v476 = vadd.f32 %v106, %v475
  %v477 = vpop.f32.mrb[0].mxu0
  %v478 = vpop.f32.mrb[0].mxu0
  %479 = vdwg.mxu0
  %480 = vmatprep.subr.bf16.mxu0 %v314
  %481 = vmatpush1.bf16.msra.mxu0 %v313
  %482 = vmatprep.subr.bf16.mxu0 %v318
  %483 = vmatpush1.bf16.msra.mxu0 %v317
  %484 = vmatprep.subr.bf16.mxu0 %v322
  %485 = vmatpush1.bf16.msra.mxu0 %v321
  %486 = vmatprep.subr.bf16.mxu0 %v326
  %487 = vmatpush1.bf16.msra.mxu0 %v325
  %488 = vmatprep.subr.bf16.mxu0 %v330
  %489 = vmatpush1.bf16.msra.mxu0 %v329
  %490 = vmatprep.subr.bf16.mxu0 %v334
  %491 = vmatpush1.bf16.msra.mxu0 %v333
  %492 = vmatprep.subr.bf16.mxu0 %v338
  %493 = vmatpush1.bf16.msra.mxu0 %v337
  %494 = vmatprep.subr.bf16.mxu0 %v342
  %495 = vmatpush1.bf16.msra.mxu0 %v341
  %496 = vmatprep.subr.bf16.mxu0 %v346
  %497 = vmatpush1.bf16.msra.mxu0 %v345
  %498 = vmatprep.subr.bf16.mxu0 %v350
  %499 = vmatpush1.bf16.msra.mxu0 %v349
  %500 = vmatprep.subr.bf16.mxu0 %v354
  %501 = vmatpush1.bf16.msra.mxu0 %v353
  %502 = vmatprep.subr.bf16.mxu0 %v358
  %503 = vmatpush1.bf16.msra.mxu0 %v357
  %504 = vmatprep.subr.bf16.mxu0 %v362
  %505 = vmatpush1.bf16.msra.mxu0 %v361
  %506 = vmatprep.subr.bf16.mxu0 %v366
  %507 = vmatpush1.bf16.msra.mxu0 %v365
  %508 = vmatprep.subr.bf16.mxu0 %v370
  %509 = vmatpush1.bf16.msra.mxu0 %v369
  %510 = vmatprep.subr.bf16.mxu0 %v374
  %511 = vmatpush1.bf16.msra.mxu0 %v373
  %512 = vmatprep.mubr.bf16.mxu0 %v96
  %513 = vmatmul.mubr.bf16.gmra.mrb[0].mxu0 %v95
  %v514 = vpop.f32.mrb[0].mxu0
  %v515 = vadd.f32 %v110, %v514
  %v516 = vpop.f32.mrb[0].mxu0
  %v517 = vadd.f32 %v114, %v516
  %v518 = vpop.f32.mrb[0].mxu0
  %v519 = vpop.f32.mrb[0].mxu0
  %520 = vdwg.mxu0
  %v521 = vld [vmem:[%s3] sm:$0xf]
  %v522 = vld [vmem:[%s3 + $0x4] sm:$0xf]
  %v523 = vld [vmem:[%s3 + $0x8] sm:$0xf]
  %v524 = vld [vmem:[%s3 + $0xc] sm:$0xf]
  %v525 = vld [vmem:[%s3 + $0x10] sm:$0xf]
  %v526 = vld [vmem:[%s3 + $0x14] sm:$0xf]
  %v527 = vld [vmem:[%s3 + $0x18] sm:$0xf]
  %v528 = vld [vmem:[%s3 + $0x1c] sm:$0xf]
  %v529 = vld [vmem:[%s3 + $0x20] sm:$0xf]
  %v530 = vld [vmem:[%s3 + $0x24] sm:$0xf]
  %v531 = vld [vmem:[%s3 + $0x28] sm:$0xf]
  %v532 = vld [vmem:[%s3 + $0x2c] sm:$0xf]
  %v533 = vld [vmem:[%s3 + $0x30] sm:$0xf]
  %v534 = vld [vmem:[%s3 + $0x34] sm:$0xf]
  %v535 = vld [vmem:[%s3 + $0x38] sm:$0xf]
  %v536 = vld [vmem:[%s3 + $0x3c] sm:$0xf]
  %v537 = vld [vmem:[%s3 + $0x40] sm:$0xf]
  %v538 = vld [vmem:[%s3 + $0x44] sm:$0xf]
  %v539 = vld [vmem:[%s3 + $0x48] sm:$0xf]
  %v540 = vld [vmem:[%s3 + $0x4c] sm:$0xf]
  %v541 = vld [vmem:[%s3 + $0x50] sm:$0xf]
  %v542 = vld [vmem:[%s3 + $0x54] sm:$0xf]
  %v543 = vld [vmem:[%s3 + $0x58] sm:$0xf]
  %v544 = vld [vmem:[%s3 + $0x5c] sm:$0xf]
  %v545 = vld [vmem:[%s3 + $0x60] sm:$0xf]
  %v546 = vld [vmem:[%s3 + $0x64] sm:$0xf]
  %v547 = vld [vmem:[%s3 + $0x68] sm:$0xf]
  %v548 = vld [vmem:[%s3 + $0x6c] sm:$0xf]
  %v549 = vld [vmem:[%s3 + $0x70] sm:$0xf]
  %v550 = vld [vmem:[%s3 + $0x74] sm:$0xf]
  %v551 = vld [vmem:[%s3 + $0x78] sm:$0xf]
  %v552 = vld [vmem:[%s3 + $0x7c] sm:$0xf]
  %v553 = vld [vmem:[%s4] sm:$0x1]
  %v554 = vld [vmem:[%s5] sm:$0xf]
  %v555 = vld [vmem:[%s5 + $0x4] sm:$0xf]
  %v556 = vld [vmem:[%s5 + $0x8] sm:$0xf]
  %v557 = vld [vmem:[%s5 + $0xc] sm:$0xf]
  %v558 = vld [vmem:[%s5 + $0x10] sm:$0xf]
  %v559 = vld [vmem:[%s5 + $0x14] sm:$0xf]
  %v560 = vld [vmem:[%s5 + $0x18] sm:$0xf]
  %v561 = vld [vmem:[%s5 + $0x1c] sm:$0xf]
  %v562 = vld [vmem:[%s5 + $0x20] sm:$0xf]
  %v563 = vld [vmem:[%s5 + $0x24] sm:$0xf]
  %v564 = vld [vmem:[%s5 + $0x28] sm:$0xf]
  %v565 = vld [vmem:[%s5 + $0x2c] sm:$0xf]
  %v566 = vld [vmem:[%s5 + $0x30] sm:$0xf]
  %v567 = vld [vmem:[%s5 + $0x34] sm:$0xf]
  %v568 = vld [vmem:[%s5 + $0x38] sm:$0xf]
  %v569 = vld [vmem:[%s5 + $0x3c] sm:$0xf]
  %v570 = vld [vmem:[%s6] sm:$0xff]
  %v571 = vld [vmem:[%s6 + $0x8] sm:$0xff]
  %v572 = vld [vmem:[%s6 + $0x10] sm:$0xff]
  %v573 = vld [vmem:[%s6 + $0x18] sm:$0xff]
  %v574 = vpack.c.bf16 %v474, %v474
  %v575 = vpack.c.bf16 %v476, %v476
  %v577 = vlaneseq
  %v578 = vshrl.u32 %v577, 7
  %v579 = vsub.s32 0, %v578
  %v580 = vrot.slane %v553, %v579
  %v614 = vunpack.c.l.b16 %v521
  %v615 = vunpack.c.l.b16 %v522
  %v616 = vunpack.c.l.b16 %v523
  %v617 = vunpack.c.l.b16 %v524
  %v618 = vunpack.c.l.b16 %v525
  %v619 = vunpack.c.l.b16 %v526
  %v620 = vunpack.c.l.b16 %v527
  %v621 = vunpack.c.l.b16 %v528
  %v622 = vunpack.c.l.b16 %v529
  %v623 = vunpack.c.l.b16 %v530
  %v624 = vunpack.c.l.b16 %v531
  %v625 = vunpack.c.l.b16 %v532
  %v626 = vunpack.c.l.b16 %v533
  %v627 = vunpack.c.l.b16 %v534
  %v628 = vunpack.c.l.b16 %v535
  %v629 = vunpack.c.l.b16 %v536
  %v630 = vunpack.c.l.b16 %v537
  %v631 = vunpack.c.l.b16 %v538
  %v632 = vunpack.c.l.b16 %v539
  %v633 = vunpack.c.l.b16 %v540
  %v634 = vunpack.c.l.b16 %v541
  %v635 = vunpack.c.l.b16 %v542
  %v636 = vunpack.c.l.b16 %v543
  %v637 = vunpack.c.l.b16 %v544
  %v638 = vunpack.c.l.b16 %v545
  %v639 = vunpack.c.l.b16 %v546
  %v640 = vunpack.c.l.b16 %v547
  %v641 = vunpack.c.l.b16 %v548
  %v642 = vunpack.c.l.b16 %v549
  %v643 = vunpack.c.l.b16 %v550
  %v644 = vunpack.c.l.b16 %v551
  %v645 = vunpack.c.l.b16 %v552
  %v646 = vpack.c.b16 %v615, %v614
  %v647 = vpack.c.b16 %v617, %v616
  %v648 = vpack.c.b16 %v619, %v618
  %v649 = vpack.c.b16 %v621, %v620
  %v650 = vpack.c.b16 %v623, %v622
  %v651 = vpack.c.b16 %v625, %v624
  %v652 = vpack.c.b16 %v627, %v626
  %v653 = vpack.c.b16 %v629, %v628
  %v654 = vpack.c.b16 %v631, %v630
  %v655 = vpack.c.b16 %v633, %v632
  %v656 = vpack.c.b16 %v635, %v634
  %v657 = vpack.c.b16 %v637, %v636
  %v658 = vpack.c.b16 %v639, %v638
  %v659 = vpack.c.b16 %v641, %v640
  %v660 = vpack.c.b16 %v643, %v642
  %v661 = vpack.c.b16 %v645, %v644
  %678 = vmatprep.subr.bf16.mxu0 0
  %679 = vmatpush1.bf16.msra.mxu0 %v646
  %680 = vmatprep.subr.bf16.mxu0 0
  %681 = vmatpush1.bf16.msra.mxu0 %v647
  %682 = vmatprep.subr.bf16.mxu0 0
  %683 = vmatpush1.bf16.msra.mxu0 %v648
  %684 = vmatprep.subr.bf16.mxu0 0
  %685 = vmatpush1.bf16.msra.mxu0 %v649
  %686 = vmatprep.subr.bf16.mxu0 0
  %687 = vmatpush1.bf16.msra.mxu0 %v650
  %688 = vmatprep.subr.bf16.mxu0 0
  %689 = vmatpush1.bf16.msra.mxu0 %v651
  %690 = vmatprep.subr.bf16.mxu0 0
  %691 = vmatpush1.bf16.msra.mxu0 %v652
  %692 = vmatprep.subr.bf16.mxu0 0
  %693 = vmatpush1.bf16.msra.mxu0 %v653
  %694 = vmatprep.subr.bf16.mxu0 0
  %695 = vmatpush1.bf16.msra.mxu0 %v654
  %696 = vmatprep.subr.bf16.mxu0 0
  %697 = vmatpush1.bf16.msra.mxu0 %v655
  %698 = vmatprep.subr.bf16.mxu0 0
  %699 = vmatpush1.bf16.msra.mxu0 %v656
  %700 = vmatprep.subr.bf16.mxu0 0
  %701 = vmatpush1.bf16.msra.mxu0 %v657
  %702 = vmatprep.subr.bf16.mxu0 0
  %703 = vmatpush1.bf16.msra.mxu0 %v658
  %704 = vmatprep.subr.bf16.mxu0 0
  %705 = vmatpush1.bf16.msra.mxu0 %v659
  %706 = vmatprep.subr.bf16.mxu0 0
  %707 = vmatpush1.bf16.msra.mxu0 %v660
  %708 = vmatprep.subr.bf16.mxu0 0
  %709 = vmatpush1.bf16.msra.mxu0 %v661
  %710 = vmatprep.mubr.bf16.mxu0 %v575
  %711 = vmatmul.mubr.bf16.gmra.mrb[0].mxu0 %v574
  %v712 = vpop.f32.mrb[0].mxu0
  %v713 = vadd.f32 %v580, %v712
  %v714 = vpop.f32.mrb[0].mxu0
  %v715 = vpop.f32.mrb[0].mxu0
  %v716 = vpop.f32.mrb[0].mxu0
  %717 = vdwg.mxu0
  %v718 = vpack.c.bf16 %v713, %v713
  %v735 = vunpack.c.l.b16 %v554
  %v736 = vunpack.c.l.b16 %v555
  %v737 = vunpack.c.l.b16 %v556
  %v738 = vunpack.c.l.b16 %v557
  %v739 = vunpack.c.l.b16 %v558
  %v740 = vunpack.c.l.b16 %v559
  %v741 = vunpack.c.l.b16 %v560
  %v742 = vunpack.c.l.b16 %v561
  %v743 = vunpack.c.l.b16 %v562
  %v744 = vunpack.c.l.b16 %v563
  %v745 = vunpack.c.l.b16 %v564
  %v746 = vunpack.c.l.b16 %v565
  %v747 = vunpack.c.l.b16 %v566
  %v748 = vunpack.c.l.b16 %v567
  %v749 = vunpack.c.l.b16 %v568
  %v750 = vunpack.c.l.b16 %v569
  %v751 = vpack.c.b16 %v736, %v735
  %v752 = vpack.c.b16 %v738, %v737
  %v753 = vpack.c.b16 %v740, %v739
  %v754 = vpack.c.b16 %v742, %v741
  %v755 = vpack.c.b16 %v744, %v743
  %v756 = vpack.c.b16 %v746, %v745
  %v757 = vpack.c.b16 %v748, %v747
  %v758 = vpack.c.b16 %v750, %v749
  %767 = vmatprep.subr.bf16.mxu0 0
  %768 = vmatpush1.bf16.msra.mxu0 %v751
  %769 = vmatprep.subr.bf16.mxu0 0
  %770 = vmatpush1.bf16.msra.mxu0 %v752
  %771 = vmatprep.subr.bf16.mxu0 0
  %772 = vmatpush1.bf16.msra.mxu0 %v753
  %773 = vmatprep.subr.bf16.mxu0 0
  %774 = vmatpush1.bf16.msra.mxu0 %v754
  %775 = vmatprep.subr.bf16.mxu0 0
  %776 = vmatpush1.bf16.msra.mxu0 %v755
  %777 = vmatprep.subr.bf16.mxu0 0
  %778 = vmatpush1.bf16.msra.mxu0 %v756
  %779 = vmatprep.subr.bf16.mxu0 0
  %780 = vmatpush1.bf16.msra.mxu0 %v757
  %781 = vmatprep.subr.bf16.mxu0 0
  %782 = vmatpush1.bf16.msra.mxu0 %v758
  %783 = vmatprep.subr.bf16.mxu0 0
  %784 = vmatpush1.bf16.msra.mxu0 0
  %785 = vmatprep.subr.bf16.mxu0 0
  %786 = vmatpush1.bf16.msra.mxu0 0
  %787 = vmatprep.subr.bf16.mxu0 0
  %788 = vmatpush1.bf16.msra.mxu0 0
  %789 = vmatprep.subr.bf16.mxu0 0
  %790 = vmatpush1.bf16.msra.mxu0 0
  %791 = vmatprep.subr.bf16.mxu0 0
  %792 = vmatpush1.bf16.msra.mxu0 0
  %793 = vmatprep.subr.bf16.mxu0 0
  %794 = vmatpush1.bf16.msra.mxu0 0
  %795 = vmatprep.subr.bf16.mxu0 0
  %796 = vmatpush1.bf16.msra.mxu0 0
  %797 = vmatprep.subr.bf16.mxu0 0
  %798 = vmatpush1.bf16.msra.mxu0 0
  %799 = vmatprep.mubr.bf16.mxu0 0
  %800 = vmatmul.mubr.bf16.gmra.mrb[0].mxu0 %v718
  %v801 = vpop.f32.mrb[0].mxu0
  %v802 = vadd.f32 0.0, %v801
  %v803 = vpop.f32.mrb[0].mxu0
  %v804 = vpop.f32.mrb[0].mxu0
  %v805 = vpop.f32.mrb[0].mxu0
  %806 = vdwg.mxu0
  %v807 = vmul.f32 %v802, 0.125
  %vm808 = vcmask 257024
  %v809 = vsel %vm808, %v807, -inf
  %810 = vmax.xlane.f32.xlu0 %v809
  %v811 = vpop.xlane.xlu0 %810
  %v812 = vsub.f32 %v807, %v811
  %v813 = vmul.f32 %v812, 1.442695
  %v814 = vpow.pop %v813
  %v815 = vsel %vm808, %v814, 0.0
  %816 = vadd.xlane.f32.xlu0 %v815
  %v817 = vpop.xlane.xlu0 %816
  %v818 = vrcp.pop %v817
  %v819 = vmul.f32 %v814, %v818
  %v820 = vpack.c.bf16 %v819, %v819
  %v825 = vunpack.c.l.b16 %v570
  %v826 = vunpack.c.h.b16 %v570
  %v827 = vunpack.c.l.b16 %v571
  %v828 = vunpack.c.h.b16 %v571
  %v829 = vunpack.c.l.b16 %v572
  %v830 = vunpack.c.h.b16 %v572
  %v831 = vunpack.c.l.b16 %v573
  %v832 = vunpack.c.h.b16 %v573
  %v833 = vpack.c.b16 %v827, %v825
  %v834 = vpack.c.b16 %v828, %v826
  %v835 = vpack.c.b16 %v831, %v829
  %v836 = vpack.c.b16 %v832, %v830
  %vm841 = vcmask 261120
  %v843 = vsel %vm841, %v820, 0
  %845 = vmatprep.subr.bf16.mxu0 %v834
  %846 = vmatpush1.bf16.msra.mxu0 %v833
  %847 = vmatprep.subr.bf16.mxu0 %v836
  %848 = vmatpush1.bf16.msra.mxu0 %v835
  %849 = vmatprep.subr.bf16.mxu0 0
  %850 = vmatpush1.bf16.msra.mxu0 0
  %851 = vmatprep.subr.bf16.mxu0 0
  %852 = vmatpush1.bf16.msra.mxu0 0
  %853 = vmatprep.subr.bf16.mxu0 0
  %854 = vmatpush1.bf16.msra.mxu0 0
  %855 = vmatprep.subr.bf16.mxu0 0
  %856 = vmatpush1.bf16.msra.mxu0 0
  %857 = vmatprep.subr.bf16.mxu0 0
  %858 = vmatpush1.bf16.msra.mxu0 0
  %859 = vmatprep.subr.bf16.mxu0 0
  %860 = vmatpush1.bf16.msra.mxu0 0
  %861 = vmatprep.subr.bf16.mxu0 0
  %862 = vmatpush1.bf16.msra.mxu0 0
  %863 = vmatprep.subr.bf16.mxu0 0
  %864 = vmatpush1.bf16.msra.mxu0 0
  %865 = vmatprep.subr.bf16.mxu0 0
  %866 = vmatpush1.bf16.msra.mxu0 0
  %867 = vmatprep.subr.bf16.mxu0 0
  %868 = vmatpush1.bf16.msra.mxu0 0
  %869 = vmatprep.subr.bf16.mxu0 0
  %870 = vmatpush1.bf16.msra.mxu0 0
  %871 = vmatprep.subr.bf16.mxu0 0
  %872 = vmatpush1.bf16.msra.mxu0 0
  %873 = vmatprep.subr.bf16.mxu0 0
  %874 = vmatpush1.bf16.msra.mxu0 0
  %875 = vmatprep.subr.bf16.mxu0 0
  %876 = vmatpush1.bf16.msra.mxu0 0
  %877 = vmatprep.mubr.bf16.mxu0 0
  %878 = vmatmul.mubr.bf16.gmra.mrb[0].mxu0 %v843
  %v879 = vpop.f32.mrb[0].mxu0
  %v880 = vadd.f32 %v474, %v879
  %v881 = vpop.f32.mrb[0].mxu0
  %v882 = vadd.f32 %v476, %v881
  %v883 = vpop.f32.mrb[0].mxu0
  %v884 = vpop.f32.mrb[0].mxu0
  %885 = vdwg.mxu0
  %v886 = vmul.f32 %v880, 0.5
  %v887 = vmul.f32 %v882, 0.5
  %v890 = vcombine.low %v886, %v887
  %892 = vst [vmem:[%s7] sm:$0xff] %v890
  %v893 = vpack.c.bf16 %v515, %v515
  %v894 = vpack.c.bf16 %v517, %v517
  %895 = vmatprep.subr.bf16.mxu0 0
  %896 = vmatpush1.bf16.msra.mxu0 %v646
  %897 = vmatprep.subr.bf16.mxu0 0
  %898 = vmatpush1.bf16.msra.mxu0 %v647
  %899 = vmatprep.subr.bf16.mxu0 0
  %900 = vmatpush1.bf16.msra.mxu0 %v648
  %901 = vmatprep.subr.bf16.mxu0 0
  %902 = vmatpush1.bf16.msra.mxu0 %v649
  %903 = vmatprep.subr.bf16.mxu0 0
  %904 = vmatpush1.bf16.msra.mxu0 %v650
  %905 = vmatprep.subr.bf16.mxu0 0
  %906 = vmatpush1.bf16.msra.mxu0 %v651
  %907 = vmatprep.subr.bf16.mxu0 0
  %908 = vmatpush1.bf16.msra.mxu0 %v652
  %909 = vmatprep.subr.bf16.mxu0 0
  %910 = vmatpush1.bf16.msra.mxu0 %v653
  %911 = vmatprep.subr.bf16.mxu0 0
  %912 = vmatpush1.bf16.msra.mxu0 %v654
  %913 = vmatprep.subr.bf16.mxu0 0
  %914 = vmatpush1.bf16.msra.mxu0 %v655
  %915 = vmatprep.subr.bf16.mxu0 0
  %916 = vmatpush1.bf16.msra.mxu0 %v656
  %917 = vmatprep.subr.bf16.mxu0 0
  %918 = vmatpush1.bf16.msra.mxu0 %v657
  %919 = vmatprep.subr.bf16.mxu0 0
  %920 = vmatpush1.bf16.msra.mxu0 %v658
  %921 = vmatprep.subr.bf16.mxu0 0
  %922 = vmatpush1.bf16.msra.mxu0 %v659
  %923 = vmatprep.subr.bf16.mxu0 0
  %924 = vmatpush1.bf16.msra.mxu0 %v660
  %925 = vmatprep.subr.bf16.mxu0 0
  %926 = vmatpush1.bf16.msra.mxu0 %v661
  %927 = vmatprep.mubr.bf16.mxu0 %v894
  %928 = vmatmul.mubr.bf16.gmra.mrb[0].mxu0 %v893
  %v929 = vpop.f32.mrb[0].mxu0
  %v930 = vadd.f32 %v580, %v929
  %v931 = vpop.f32.mrb[0].mxu0
  %v932 = vpop.f32.mrb[0].mxu0
  %v933 = vpop.f32.mrb[0].mxu0
  %934 = vdwg.mxu0
  %v935 = vpack.c.bf16 %v930, %v930
  %936 = vmatprep.subr.bf16.mxu0 0
  %937 = vmatpush1.bf16.msra.mxu0 %v751
  %938 = vmatprep.subr.bf16.mxu0 0
  %939 = vmatpush1.bf16.msra.mxu0 %v752
  %940 = vmatprep.subr.bf16.mxu0 0
  %941 = vmatpush1.bf16.msra.mxu0 %v753
  %942 = vmatprep.subr.bf16.mxu0 0
  %943 = vmatpush1.bf16.msra.mxu0 %v754
  %944 = vmatprep.subr.bf16.mxu0 0
  %945 = vmatpush1.bf16.msra.mxu0 %v755
  %946 = vmatprep.subr.bf16.mxu0 0
  %947 = vmatpush1.bf16.msra.mxu0 %v756
  %948 = vmatprep.subr.bf16.mxu0 0
  %949 = vmatpush1.bf16.msra.mxu0 %v757
  %950 = vmatprep.subr.bf16.mxu0 0
  %951 = vmatpush1.bf16.msra.mxu0 %v758
  %952 = vmatprep.subr.bf16.mxu0 0
  %953 = vmatpush1.bf16.msra.mxu0 0
  %954 = vmatprep.subr.bf16.mxu0 0
  %955 = vmatpush1.bf16.msra.mxu0 0
  %956 = vmatprep.subr.bf16.mxu0 0
  %957 = vmatpush1.bf16.msra.mxu0 0
  %958 = vmatprep.subr.bf16.mxu0 0
  %959 = vmatpush1.bf16.msra.mxu0 0
  %960 = vmatprep.subr.bf16.mxu0 0
  %961 = vmatpush1.bf16.msra.mxu0 0
  %962 = vmatprep.subr.bf16.mxu0 0
  %963 = vmatpush1.bf16.msra.mxu0 0
  %964 = vmatprep.subr.bf16.mxu0 0
  %965 = vmatpush1.bf16.msra.mxu0 0
  %966 = vmatprep.subr.bf16.mxu0 0
  %967 = vmatpush1.bf16.msra.mxu0 0
  %968 = vmatprep.mubr.bf16.mxu0 0
  %969 = vmatmul.mubr.bf16.gmra.mrb[0].mxu0 %v935
  %v970 = vpop.f32.mrb[0].mxu0
  %v971 = vadd.f32 0.0, %v970
  %v972 = vpop.f32.mrb[0].mxu0
  %v973 = vpop.f32.mrb[0].mxu0
  %v974 = vpop.f32.mrb[0].mxu0
  %975 = vdwg.mxu0
  %v976 = vmul.f32 %v971, 0.125
  %v977 = vsel %vm808, %v976, -inf
  %978 = vmax.xlane.f32.xlu0 %v977
  %v979 = vpop.xlane.xlu0 %978
  %v980 = vsub.f32 %v976, %v979
  %v981 = vmul.f32 %v980, 1.442695
  %v982 = vpow.pop %v981
  %v983 = vsel %vm808, %v982, 0.0
  %984 = vadd.xlane.f32.xlu0 %v983
  %v985 = vpop.xlane.xlu0 %984
  %v986 = vrcp.pop %v985
  %v987 = vmul.f32 %v982, %v986
  %v988 = vpack.c.bf16 %v987, %v987
  %v990 = vsel %vm841, %v988, 0
  %992 = vmatprep.subr.bf16.mxu0 %v834
  %993 = vmatpush1.bf16.msra.mxu0 %v833
  %994 = vmatprep.subr.bf16.mxu0 %v836
  %995 = vmatpush1.bf16.msra.mxu0 %v835
  %996 = vmatprep.subr.bf16.mxu0 0
  %997 = vmatpush1.bf16.msra.mxu0 0
  %998 = vmatprep.subr.bf16.mxu0 0
  %999 = vmatpush1.bf16.msra.mxu0 0
  %1000 = vmatprep.subr.bf16.mxu0 0
  %1001 = vmatpush1.bf16.msra.mxu0 0
  %1002 = vmatprep.subr.bf16.mxu0 0
  %1003 = vmatpush1.bf16.msra.mxu0 0
  %1004 = vmatprep.subr.bf16.mxu0 0
  %1005 = vmatpush1.bf16.msra.mxu0 0
  %1006 = vmatprep.subr.bf16.mxu0 0
  %1007 = vmatpush1.bf16.msra.mxu0 0
  %1008 = vmatprep.subr.bf16.mxu0 0
  %1009 = vmatpush1.bf16.msra.mxu0 0
  %1010 = vmatprep.subr.bf16.mxu0 0
  %1011 = vmatpush1.bf16.msra.mxu0 0
  %1012 = vmatprep.subr.bf16.mxu0 0
  %1013 = vmatpush1.bf16.msra.mxu0 0
  %1014 = vmatprep.subr.bf16.mxu0 0
  %1015 = vmatpush1.bf16.msra.mxu0 0
  %1016 = vmatprep.subr.bf16.mxu0 0
  %1017 = vmatpush1.bf16.msra.mxu0 0
  %1018 = vmatprep.subr.bf16.mxu0 0
  %1019 = vmatpush1.bf16.msra.mxu0 0
  %1020 = vmatprep.subr.bf16.mxu0 0
  %1021 = vmatpush1.bf16.msra.mxu0 0
  %1022 = vmatprep.subr.bf16.mxu0 0
  %1023 = vmatpush1.bf16.msra.mxu0 0
  %1024 = vmatprep.mubr.bf16.mxu0 0
  %1025 = vmatmul.mubr.bf16.gmra.mrb[0].mxu0 %v990
  %v1026 = vpop.f32.mrb[0].mxu0
  %v1027 = vadd.f32 %v515, %v1026
  %v1028 = vpop.f32.mrb[0].mxu0
  %v1029 = vadd.f32 %v517, %v1028
  %v1030 = vpop.f32.mrb[0].mxu0
  %v1031 = vpop.f32.mrb[0].mxu0
  %1032 = vdwg.mxu0
  %v1033 = vmul.f32 %v1027, 0.5
  %v1034 = vmul.f32 %v1029, 0.5
  %v1037 = vcombine.low %v1033, %v1034
  %1039 = vst [vmem:[%s7 + $0x8] sm:$0xff] %v1037
  // Predicated region
  $region30: #{unet_forward.10} parent=0 // pred_check
    _
  $region31: #{unet_forward.10} parent=0 // pred_check_branch
    %1041 = sbr.rel (0) target = $region33
  $region32: #{unet_forward.10} parent=0 // pred_region
    _
  $region33: #{unet_forward.10} parent=0 // pred_fallthru
    _
  // Predicated region
  $region34: #{unet_forward.10} parent=0 // pred_check
    _
  $region35: #{unet_forward.10} parent=0 // pred_check_branch
    %1043 = sbr.rel (0) target = $region37
  $region36: #{unet_forward.10} parent=0 // pred_region
    _
  $region37: #{unet_forward.10} parent=0 // pred_fallthru
    _

</llo_original>
